<compile_context>
chip_gen: v7x
topology: tpu7x:2x2x1
jax: 0.10.0
libtpu: 0.0.40
codegen_flags: <defaults>
</compile_context>

<pallas_src>
import math
import functools

import jax
import jax.numpy as jnp
import numpy as np
from jax.experimental import pallas as pl
from jax.experimental.pallas import tpu as pltpu


# ----------------------------------------------------------------------------
# Config (matches the nn.Module hyper-parameters used for the demo)
# ----------------------------------------------------------------------------
class Config:
    img_dim = 16
    patch_dim = 4
    num_channels = 4
    embedding_dim = 32
    num_heads = 4
    num_layers = 2
    hidden_dim = 64
    out_dim = 10
    dropout_rate = 0.0          # identity at inference
    attn_dropout_rate = 0.0     # identity at inference
    use_representation = True
    conv_patch_representation = False

    num_patches = (img_dim // patch_dim) ** 2
    seq_length = num_patches + 1
    flatten_dim = patch_dim * patch_dim * num_channels
    head_dim = embedding_dim // num_heads


OPAD = 128   # lane-dense padded logits width


# ----------------------------------------------------------------------------
# Packed-buffer layout (shared by the packer and the kernel)
# ----------------------------------------------------------------------------
def _layout(cfg, n):
    E, H, F = cfg.embedding_dim, cfg.hidden_dim, cfg.flatten_dim
    S, L = cfg.seq_length, cfg.num_layers
    NS = n * S
    lo = {"NS": NS, "OPAD": OPAD}
    # --- bf16 weight buffer (rows, 128) ---
    lo["w_enc"] = 0                                 # (F, E)
    lo["w_layer"] = F                               # per-layer weight blocks
    lo["w_per_layer"] = E + E + E + H               # qkv | wo | fc1 | fc2
    lo["w_h1"] = F + L * lo["w_per_layer"]          # (E, H)
    lo["w_h2"] = lo["w_h1"] + E                     # (H, OPAD)
    lo["w_rows"] = lo["w_h2"] + H
    # --- f32 vector buffer (rows, 128) ---
    lo["v_base"] = 0                                # (NS, E) tiled cls+pos+enc_b
    lo["v_mask"] = NS                               # (NS, NS) block-diag mask
    lo["v_layer"] = 2 * NS                          # 8 rows per layer
    lo["v_per_layer"] = 8
    lo["v_head"] = 2 * NS + L * 8                   # ph_g, ph_b, h1_b, h2_b(pad)
    lo["v_rows"] = lo["v_head"] + 4
    return lo


# ----------------------------------------------------------------------------
# Fused Pallas kernel: ONE invocation == full forward for the whole batch
# (batch stacked along sublanes, block-diagonal attention mask)
# ----------------------------------------------------------------------------
def _vit_kernel(x_ref, w_ref, v_ref, o_ref, *, cfg, lo):
    E, H, F = cfg.embedding_dim, cfg.hidden_dim, cfg.flatten_dim
    NH, HD, L = cfg.num_heads, cfg.head_dim, cfg.num_layers
    NS = lo["NS"]
    f32, bf16 = jnp.float32, jnp.bfloat16

    def layernorm(v, g, b):
        mu = jnp.mean(v, axis=-1, keepdims=True)
        c = v - mu
        var = jnp.mean(c * c, axis=-1, keepdims=True)
        return c * jax.lax.rsqrt(var + 1e-5) * g + b     # PyTorch LayerNorm eps

    # Patch embedding. cls token, positional embedding and encoding bias are
    # pre-folded into the (tiled) `base` rows of the vector buffer.
    x = x_ref[...].astype(bf16)                                           # (NS, F)
    h = (jnp.dot(x, w_ref[lo["w_enc"]:lo["w_enc"] + F, 0:E],
                 preferred_element_type=f32)
         + v_ref[lo["v_base"]:lo["v_base"] + NS, 0:E])                    # (NS, E)
    mask = v_ref[lo["v_mask"]:lo["v_mask"] + NS, 0:NS]                    # (NS, NS)

    for l in range(L):
        wr = lo["w_layer"] + l * lo["w_per_layer"]
        vr = lo["v_layer"] + l * lo["v_per_layer"]

        # ---- multi-head self-attention (pre-norm) ----
        y = layernorm(h, v_ref[vr:vr + 1, 0:E], v_ref[vr + 1:vr + 2, 0:E])
        # fused Q|K|V projection, 1/sqrt(d) already folded into the Q slice
        qkv = (jnp.dot(y.astype(bf16), w_ref[wr:wr + E, 0:3 * E],
                       preferred_element_type=f32)
               + v_ref[vr + 2:vr + 3, 0:3 * E])                           # (NS, 3E)
        heads = []
        for hi in range(NH):
            q = qkv[:, hi * HD:(hi + 1) * HD].astype(bf16)
            k = qkv[:, E + hi * HD:E + (hi + 1) * HD].astype(bf16)
            v = qkv[:, 2 * E + hi * HD:2 * E + (hi + 1) * HD].astype(bf16)
            # scores: contract dim 1 of both -> no materialized k.T
            s = jax.lax.dot_general(q, k, (((1,), (1,)), ((), ())),
                                    preferred_element_type=f32) + mask    # (NS,NS)
            m = jnp.max(s, axis=-1, keepdims=True)
            e = jnp.exp(s - m)
            pr = e * pl.reciprocal(jnp.sum(e, axis=-1, keepdims=True),
                                   approx=True)
            heads.append(jnp.dot(pr.astype(bf16), v,
                                 preferred_element_type=f32))             # (NS,HD)
        o = jnp.concatenate(heads, axis=-1).astype(bf16)                  # (NS, E)
        h = h + (jnp.dot(o, w_ref[wr + E:wr + 2 * E, 0:E],
                         preferred_element_type=f32)
                 + v_ref[vr + 3:vr + 4, 0:E])

        # ---- MLP (pre-norm) ----
        y = layernorm(h, v_ref[vr + 4:vr + 5, 0:E], v_ref[vr + 5:vr + 6, 0:E])
        m1 = (jnp.dot(y.astype(bf16), w_ref[wr + 2 * E:wr + 3 * E, 0:H],
                      preferred_element_type=f32)
              + v_ref[vr + 6:vr + 7, 0:H])
        # TODO(synk): PyTorch nn.GELU default is erf-based; tanh approximation
        # is used (reference TransformerModel source not provided).
        m1 = jax.nn.gelu(m1, approximate=True)
        h = h + (jnp.dot(m1.astype(bf16),
                         w_ref[wr + 3 * E:wr + 3 * E + H, 0:E],
                         preferred_element_type=f32)
                 + v_ref[vr + 7:vr + 8, 0:E])

    # ---- pre-head LN (full sequence, as in the PyTorch model) + MLP head ----
    hv = lo["v_head"]
    y = layernorm(h, v_ref[hv:hv + 1, 0:E], v_ref[hv + 1:hv + 2, 0:E])
    z = jnp.tanh(jnp.dot(y.astype(bf16), w_ref[lo["w_h1"]:lo["w_h1"] + E, 0:H],
                         preferred_element_type=f32)
                 + v_ref[hv + 2:hv + 3, 0:H])
    # padded logit columns get bias -1e30 and zero weights -> log_softmax
    # over the padded 128 lanes equals log_softmax over the real 10 classes.
    logits = (jnp.dot(z.astype(bf16), w_ref[lo["w_h2"]:lo["w_h2"] + H, 0:OPAD],
                      preferred_element_type=f32)
              + v_ref[hv + 3:hv + 4, 0:OPAD])                             # (NS,128)
    mm = jnp.max(logits, axis=-1, keepdims=True)
    sh = logits - mm
    lse = jnp.log(jnp.sum(jnp.exp(sh), axis=-1, keepdims=True))
    o_ref[...] = (sh - lse).astype(o_ref.dtype)       # lane-dense (NS, 128) store


def vit_forward(wbuf, vbuf, x, cfg):
    """Jitted forward: patch extraction + one fused pallas_call + tiny slice."""
    n = x.shape[0]
    S, F, O = cfg.seq_length, cfg.flatten_dim, cfg.out_dim
    lo = _layout(cfg, n)

    patches = extract_patches(x, cfg.patch_dim)                        # (n, P, F)
    # prepend a zero "patch" for the cls position (cls/pos/bias live in `base`)
    x_aug = jnp.concatenate(
        [jnp.zeros((n, 1, F), patches.dtype), patches], axis=1)        # (n, S, F)
    x_stacked = x_aug.reshape(n * S, F)                                # (NS, F)

    kernel = functools.partial(_vit_kernel, cfg=cfg, lo=lo)
    # No grid: whole forward in one invocation; 3 inputs -> 3 whole-array DMAs.
    out_pad = pl.pallas_call(
        kernel,
        out_shape=jax.ShapeDtypeStruct((n * S, OPAD), jnp.float32),
        cost_estimate=pl.CostEstimate(flops=2_500_000,
                                      transcendentals=20_000,
                                      bytes_accessed=200_000),
    )(x_stacked, wbuf, vbuf)
    # cls rows are at stride S; slice logits back to the real out_dim
    return out_pad.reshape(n, S, OPAD)[:, 0, :O]


# ----------------------------------------------------------------------------
# Parameter setup & ONE-TIME packing (done outside the jit / per-call path)
# ----------------------------------------------------------------------------
def init_params(key, cfg):
    """Deterministic synthetic parameter init (matches shapes of the nn.Module)."""
    p = {}
    ks = iter(jax.random.split(key, 64))

    def w(shape, scale=0.02):
        return (scale * jax.random.normal(next(ks), shape)).astype(jnp.float32)

    E, H, F, O, S = (cfg.embedding_dim, cfg.hidden_dim, cfg.flatten_dim,
                     cfg.out_dim, cfg.seq_length)

    p["cls_token"] = jnp.zeros((1, 1, E), jnp.float32)          # torch.zeros
    p["lin_enc_w"] = w((F, E)); p["lin_enc_b"] = jnp.zeros((E,), jnp.float32)
    p["pos_emb"] = w((1, S, E))                                 # learned PE

    layers = []
    for _ in range(cfg.num_layers):
        layers.append({
            "ln1_g": jnp.ones((E,), jnp.float32), "ln1_b": jnp.zeros((E,), jnp.float32),
            "qkv_w": w((E, 3 * E)),               "qkv_b": jnp.zeros((3 * E,), jnp.float32),
            "proj_w": w((E, E)),                  "proj_b": jnp.zeros((E,), jnp.float32),
            "ln2_g": jnp.ones((E,), jnp.float32), "ln2_b": jnp.zeros((E,), jnp.float32),
            "fc1_w": w((E, H)),                   "fc1_b": jnp.zeros((H,), jnp.float32),
            "fc2_w": w((H, E)),                   "fc2_b": jnp.zeros((E,), jnp.float32),
        })
    p["layers"] = layers

    p["pre_head_g"] = jnp.ones((E,), jnp.float32)
    p["pre_head_b"] = jnp.zeros((E,), jnp.float32)
    # use_representation=True: Linear(E, H) -> Tanh -> Linear(H, out_dim)
    p["head1_w"] = w((E, H)); p["head1_b"] = jnp.zeros((H,), jnp.float32)
    p["head2_w"] = w((H, O)); p["head2_b"] = jnp.zeros((O,), jnp.float32)
    return p


def pack_params(params, cfg, n):
    """Pack all parameters into 2 lane-dense buffers (bf16 weights, f32 vectors).
    Called ONCE outside jit; the result is reused for every forward call."""
    E, H, F, O = (cfg.embedding_dim, cfg.hidden_dim, cfg.flatten_dim, cfg.out_dim)
    S, L, HD = cfg.seq_length, cfg.num_layers, cfg.head_dim
    NS = n * S
    lo = _layout(cfg, n)
    scale = 1.0 / math.sqrt(HD)

    # ---- bf16 weight buffer ----
    wb = np.zeros((lo["w_rows"], 128), np.float32)
    wb[lo["w_enc"]:lo["w_enc"] + F, 0:E] = np.asarray(params["lin_enc_w"])
    for l, lp in enumerate(params["layers"]):
        r = lo["w_layer"] + l * lo["w_per_layer"]
        qkv_w = np.asarray(lp["qkv_w"]).copy()            # (E, 3E) packed [Q|K|V]
        qkv_w[:, 0:E] *= scale                            # fold 1/sqrt(d) into Q
        wb[r:r + E, 0:3 * E] = qkv_w
        wb[r + E:r + 2 * E, 0:E] = np.asarray(lp["proj_w"])
        wb[r + 2 * E:r + 3 * E, 0:H] = np.asarray(lp["fc1_w"])
        wb[r + 3 * E:r + 3 * E + H, 0:E] = np.asarray(lp["fc2_w"])
    wb[lo["w_h1"]:lo["w_h1"] + E, 0:H] = np.asarray(params["head1_w"])
    wb[lo["w_h2"]:lo["w_h2"] + H, 0:O] = np.asarray(params["head2_w"])
    wbuf = jnp.asarray(wb).astype(jnp.bfloat16)

    # ---- f32 vector buffer ----
    vb = np.zeros((lo["v_rows"], 128), np.float32)
    base = np.asarray(params["pos_emb"][0]).copy()                    # (S, E)
    base[1:] += np.asarray(params["lin_enc_b"])[None, :]
    base[0] += np.asarray(params["cls_token"][0, 0])
    vb[lo["v_base"]:lo["v_base"] + NS, 0:E] = np.tile(base, (n, 1))
    mask = np.full((NS, NS), -1e30, np.float32)                       # block-diag
    for b in range(n):
        mask[b * S:(b + 1) * S, b * S:(b + 1) * S] = 0.0
    vb[lo["v_mask"]:lo["v_mask"] + NS, 0:NS] = mask
    for l, lp in enumerate(params["layers"]):
        r = lo["v_layer"] + l * lo["v_per_layer"]
        vb[r + 0, 0:E] = np.asarray(lp["ln1_g"])
        vb[r + 1, 0:E] = np.asarray(lp["ln1_b"])
        qkv_b = np.asarray(lp["qkv_b"]).copy()
        qkv_b[0:E] *= scale
        vb[r + 2, 0:3 * E] = qkv_b
        vb[r + 3, 0:E] = np.asarray(lp["proj_b"])
        vb[r + 4, 0:E] = np.asarray(lp["ln2_g"])
        vb[r + 5, 0:E] = np.asarray(lp["ln2_b"])
        vb[r + 6, 0:H] = np.asarray(lp["fc1_b"])
        vb[r + 7, 0:E] = np.asarray(lp["fc2_b"])
    hv = lo["v_head"]
    vb[hv + 0, 0:E] = np.asarray(params["pre_head_g"])
    vb[hv + 1, 0:E] = np.asarray(params["pre_head_b"])
    vb[hv + 2, 0:H] = np.asarray(params["head1_b"])
    vb[hv + 3, :] = -1e30                                  # padded logit columns
    vb[hv + 3, 0:O] = np.asarray(params["head2_b"])
    vbuf = jnp.asarray(vb)
    return wbuf, vbuf


def extract_patches(x, patch_dim):
    """torch unfold/permute/view flatten order: (n, P, p*p*c),
    flat index within a patch = pixel_row_major * C + channel."""
    n, c, h, w_ = x.shape
    gh, gw = h // patch_dim, w_ // patch_dim
    x = x.reshape(n, c, gh, patch_dim, gw, patch_dim)
    x = jnp.transpose(x, (0, 2, 4, 3, 5, 1))          # (n, gh, gw, ph, pw, c)
    return x.reshape(n, gh * gw, patch_dim * patch_dim * c)


if __name__ == "__main__":
    cfg = Config()
    key = jax.random.PRNGKey(0)
    k_param, k_x = jax.random.split(key)

    params = init_params(k_param, cfg)
    x = jax.random.normal(
        k_x, (2, cfg.num_channels, cfg.img_dim, cfg.img_dim), dtype=jnp.float32
    )  # NCHW, as in PyTorch

    # One-time parameter preprocessing / packing (hoisted out of the jit path).
    wbuf, vbuf = pack_params(params, cfg, n=x.shape[0])

    fwd = jax.jit(functools.partial(vit_forward, cfg=cfg))
    out = jax.block_until_ready(fwd(wbuf, vbuf, x))

    assert out.shape == (2, cfg.out_dim)
    assert bool(jnp.all(jnp.isfinite(out)))
    # log_softmax rows should (approximately) exponentiate-sum to 1
    assert bool(jnp.allclose(jnp.sum(jnp.exp(out), axis=-1), 1.0, atol=1e-4))
    print("KERNEL_OK")
</pallas_src>

<mosaic_0001>
module attributes {stable_mosaic.version = 11 : i64} {
  func.func @_vit_kernel(%arg0: memref<34x64xf32, #tpu.memory_space<vmem>>, %arg1: memref<480x128xbf16, #tpu.memory_space<vmem>>, %arg2: memref<88x128xf32, #tpu.memory_space<vmem>>, %arg3: memref<34x128xf32, #tpu.memory_space<vmem>>) attributes {dimension_semantics = [], scalar_prefetch = 0 : i64, scratch_operands = 0 : i64, tpu.core_type = #tpu.core_type<tc>} {
    %c0 = arith.constant 0 : index
    %c0_0 = arith.constant 0 : index
    %0 = vector.load %arg0[%c0, %c0_0] : memref<34x64xf32, #tpu.memory_space<vmem>>, vector<34x64xf32>
    %1 = arith.truncf %0 : vector<34x64xf32> to vector<34x64xbf16>
    %c0_1 = arith.constant 0 : index
    %c0_2 = arith.constant 0 : index
    %2 = vector.load %arg1[%c0_1, %c0_2] : memref<480x128xbf16, #tpu.memory_space<vmem>>, vector<64x32xbf16>
    %cst = arith.constant dense<0.000000e+00> : vector<34x32xf32>
    %3 = tpu.matmul %1, %2, %cst {dimension_numbers = #tpu.dot_dimension_numbers<[1], [0], [0], [1], [0, 0, 1, 1], [], []>} : vector<34x64xbf16>, vector<64x32xbf16>, vector<34x32xf32> -> vector<34x32xf32>
    %c0_3 = arith.constant 0 : index
    %c0_4 = arith.constant 0 : index
    %4 = vector.load %arg2[%c0_3, %c0_4] : memref<88x128xf32, #tpu.memory_space<vmem>>, vector<34x32xf32>
    %5 = arith.addf %3, %4 : vector<34x32xf32>
    %c34 = arith.constant 34 : index
    %c0_5 = arith.constant 0 : index
    %6 = vector.load %arg2[%c34, %c0_5] : memref<88x128xf32, #tpu.memory_space<vmem>>, vector<34x34xf32>
    %c68 = arith.constant 68 : index
    %c0_6 = arith.constant 0 : index
    %7 = vector.load %arg2[%c68, %c0_6] : memref<88x128xf32, #tpu.memory_space<vmem>>, vector<1x32xf32>
    %c69 = arith.constant 69 : index
    %c0_7 = arith.constant 0 : index
    %8 = vector.load %arg2[%c69, %c0_7] : memref<88x128xf32, #tpu.memory_space<vmem>>, vector<1x32xf32>
    %cst_8 = arith.constant dense<0.000000e+00> : vector<34xf32>
    %9 = vector.multi_reduction <add>, %5, %cst_8 [1] : vector<34x32xf32> to vector<34xf32>
    %10 = vector.shape_cast %9 : vector<34xf32> to vector<34x1xf32>
    %cst_9 = arith.constant 3.200000e+01 : f32
    %11 = vector.broadcast %cst_9 : f32 to vector<34x1xf32>
    %12 = arith.divf %10, %11 : vector<34x1xf32>
    %13 = vector.broadcast %12 : vector<34x1xf32> to vector<34x32xf32>
    %14 = arith.subf %5, %13 : vector<34x32xf32>
    %15 = arith.mulf %14, %14 : vector<34x32xf32>
    %cst_10 = arith.constant dense<0.000000e+00> : vector<34xf32>
    %16 = vector.multi_reduction <add>, %15, %cst_10 [1] : vector<34x32xf32> to vector<34xf32>
    %17 = vector.shape_cast %16 : vector<34xf32> to vector<34x1xf32>
    %cst_11 = arith.constant 3.200000e+01 : f32
    %18 = vector.broadcast %cst_11 : f32 to vector<34x1xf32>
    %19 = arith.divf %17, %18 : vector<34x1xf32>
    %cst_12 = arith.constant 9.99999974E-6 : f32
    %20 = vector.broadcast %cst_12 : f32 to vector<34x1xf32>
    %21 = arith.addf %19, %20 : vector<34x1xf32>
    %22 = math.rsqrt %21 : vector<34x1xf32>
    %23 = vector.broadcast %22 : vector<34x1xf32> to vector<34x32xf32>
    %24 = arith.mulf %14, %23 : vector<34x32xf32>
    %25 = vector.broadcast %7 : vector<1x32xf32> to vector<34x32xf32>
    %26 = arith.mulf %24, %25 : vector<34x32xf32>
    %27 = vector.broadcast %8 : vector<1x32xf32> to vector<34x32xf32>
    %28 = arith.addf %26, %27 : vector<34x32xf32>
    %29 = arith.truncf %28 : vector<34x32xf32> to vector<34x32xbf16>
    %c64 = arith.constant 64 : index
    %c0_13 = arith.constant 0 : index
    %30 = vector.load %arg1[%c64, %c0_13] : memref<480x128xbf16, #tpu.memory_space<vmem>>, vector<32x96xbf16>
    %cst_14 = arith.constant dense<0.000000e+00> : vector<34x96xf32>
    %31 = tpu.matmul %29, %30, %cst_14 {dimension_numbers = #tpu.dot_dimension_numbers<[1], [0], [0], [1], [0, 0, 1, 1], [], []>} : vector<34x32xbf16>, vector<32x96xbf16>, vector<34x96xf32> -> vector<34x96xf32>
    %c70 = arith.constant 70 : index
    %c0_15 = arith.constant 0 : index
    %32 = vector.load %arg2[%c70, %c0_15] : memref<88x128xf32, #tpu.memory_space<vmem>>, vector<1x96xf32>
    %33 = vector.broadcast %32 : vector<1x96xf32> to vector<34x96xf32>
    %34 = arith.addf %31, %33 : vector<34x96xf32>
    %35 = vector.extract_strided_slice %34 {offsets = [0, 0], sizes = [34, 8], strides = [1, 1]} : vector<34x96xf32> to vector<34x8xf32>
    %36 = arith.truncf %35 : vector<34x8xf32> to vector<34x8xbf16>
    %37 = vector.extract_strided_slice %34 {offsets = [0, 32], sizes = [34, 8], strides = [1, 1]} : vector<34x96xf32> to vector<34x8xf32>
    %38 = arith.truncf %37 : vector<34x8xf32> to vector<34x8xbf16>
    %39 = vector.extract_strided_slice %34 {offsets = [0, 64], sizes = [34, 8], strides = [1, 1]} : vector<34x96xf32> to vector<34x8xf32>
    %40 = arith.truncf %39 : vector<34x8xf32> to vector<34x8xbf16>
    %cst_16 = arith.constant dense<0.000000e+00> : vector<34x34xf32>
    %41 = tpu.matmul %36, %38, %cst_16 {dimension_numbers = #tpu.dot_dimension_numbers<[1], [1], [0], [0], [0, 0, 1, 0], [], []>} : vector<34x8xbf16>, vector<34x8xbf16>, vector<34x34xf32> -> vector<34x34xf32>
    %42 = arith.addf %41, %6 : vector<34x34xf32>
    %cst_17 = arith.constant dense<0xFF800000> : vector<34xf32>
    %43 = vector.multi_reduction <maximumf>, %42, %cst_17 [1] : vector<34x34xf32> to vector<34xf32>
    %44 = vector.shape_cast %43 : vector<34xf32> to vector<34x1xf32>
    %45 = vector.broadcast %44 : vector<34x1xf32> to vector<34x34xf32>
    %46 = arith.subf %42, %45 : vector<34x34xf32>
    %47 = math.exp %46 : vector<34x34xf32>
    %cst_18 = arith.constant dense<0.000000e+00> : vector<34xf32>
    %48 = vector.multi_reduction <add>, %47, %cst_18 [1] : vector<34x34xf32> to vector<34xf32>
    %49 = vector.shape_cast %48 : vector<34xf32> to vector<34x1xf32>
    %50 = tpu.reciprocal %49 {approx = true} : vector<34x1xf32> -> vector<34x1xf32>
    %51 = vector.broadcast %50 : vector<34x1xf32> to vector<34x34xf32>
    %52 = arith.mulf %47, %51 : vector<34x34xf32>
    %53 = arith.truncf %52 : vector<34x34xf32> to vector<34x34xbf16>
    %cst_19 = arith.constant dense<0.000000e+00> : vector<34x8xf32>
    %54 = tpu.matmul %53, %40, %cst_19 {dimension_numbers = #tpu.dot_dimension_numbers<[1], [0], [0], [1], [0, 0, 1, 1], [], []>} : vector<34x34xbf16>, vector<34x8xbf16>, vector<34x8xf32> -> vector<34x8xf32>
    %55 = vector.extract_strided_slice %34 {offsets = [0, 8], sizes = [34, 8], strides = [1, 1]} : vector<34x96xf32> to vector<34x8xf32>
    %56 = arith.truncf %55 : vector<34x8xf32> to vector<34x8xbf16>
    %57 = vector.extract_strided_slice %34 {offsets = [0, 40], sizes = [34, 8], strides = [1, 1]} : vector<34x96xf32> to vector<34x8xf32>
    %58 = arith.truncf %57 : vector<34x8xf32> to vector<34x8xbf16>
    %59 = vector.extract_strided_slice %34 {offsets = [0, 72], sizes = [34, 8], strides = [1, 1]} : vector<34x96xf32> to vector<34x8xf32>
    %60 = arith.truncf %59 : vector<34x8xf32> to vector<34x8xbf16>
    %cst_20 = arith.constant dense<0.000000e+00> : vector<34x34xf32>
    %61 = tpu.matmul %56, %58, %cst_20 {dimension_numbers = #tpu.dot_dimension_numbers<[1], [1], [0], [0], [0, 0, 1, 0], [], []>} : vector<34x8xbf16>, vector<34x8xbf16>, vector<34x34xf32> -> vector<34x34xf32>
    %62 = arith.addf %61, %6 : vector<34x34xf32>
    %cst_21 = arith.constant dense<0xFF800000> : vector<34xf32>
    %63 = vector.multi_reduction <maximumf>, %62, %cst_21 [1] : vector<34x34xf32> to vector<34xf32>
    %64 = vector.shape_cast %63 : vector<34xf32> to vector<34x1xf32>
    %65 = vector.broadcast %64 : vector<34x1xf32> to vector<34x34xf32>
    %66 = arith.subf %62, %65 : vector<34x34xf32>
    %67 = math.exp %66 : vector<34x34xf32>
    %cst_22 = arith.constant dense<0.000000e+00> : vector<34xf32>
    %68 = vector.multi_reduction <add>, %67, %cst_22 [1] : vector<34x34xf32> to vector<34xf32>
    %69 = vector.shape_cast %68 : vector<34xf32> to vector<34x1xf32>
    %70 = tpu.reciprocal %69 {approx = true} : vector<34x1xf32> -> vector<34x1xf32>
    %71 = vector.broadcast %70 : vector<34x1xf32> to vector<34x34xf32>
    %72 = arith.mulf %67, %71 : vector<34x34xf32>
    %73 = arith.truncf %72 : vector<34x34xf32> to vector<34x34xbf16>
    %cst_23 = arith.constant dense<0.000000e+00> : vector<34x8xf32>
    %74 = tpu.matmul %73, %60, %cst_23 {dimension_numbers = #tpu.dot_dimension_numbers<[1], [0], [0], [1], [0, 0, 1, 1], [], []>} : vector<34x34xbf16>, vector<34x8xbf16>, vector<34x8xf32> -> vector<34x8xf32>
    %75 = vector.extract_strided_slice %34 {offsets = [0, 16], sizes = [34, 8], strides = [1, 1]} : vector<34x96xf32> to vector<34x8xf32>
    %76 = arith.truncf %75 : vector<34x8xf32> to vector<34x8xbf16>
    %77 = vector.extract_strided_slice %34 {offsets = [0, 48], sizes = [34, 8], strides = [1, 1]} : vector<34x96xf32> to vector<34x8xf32>
    %78 = arith.truncf %77 : vector<34x8xf32> to vector<34x8xbf16>
    %79 = vector.extract_strided_slice %34 {offsets = [0, 80], sizes = [34, 8], strides = [1, 1]} : vector<34x96xf32> to vector<34x8xf32>
    %80 = arith.truncf %79 : vector<34x8xf32> to vector<34x8xbf16>
    %cst_24 = arith.constant dense<0.000000e+00> : vector<34x34xf32>
    %81 = tpu.matmul %76, %78, %cst_24 {dimension_numbers = #tpu.dot_dimension_numbers<[1], [1], [0], [0], [0, 0, 1, 0], [], []>} : vector<34x8xbf16>, vector<34x8xbf16>, vector<34x34xf32> -> vector<34x34xf32>
    %82 = arith.addf %81, %6 : vector<34x34xf32>
    %cst_25 = arith.constant dense<0xFF800000> : vector<34xf32>
    %83 = vector.multi_reduction <maximumf>, %82, %cst_25 [1] : vector<34x34xf32> to vector<34xf32>
    %84 = vector.shape_cast %83 : vector<34xf32> to vector<34x1xf32>
    %85 = vector.broadcast %84 : vector<34x1xf32> to vector<34x34xf32>
    %86 = arith.subf %82, %85 : vector<34x34xf32>
    %87 = math.exp %86 : vector<34x34xf32>
    %cst_26 = arith.constant dense<0.000000e+00> : vector<34xf32>
    %88 = vector.multi_reduction <add>, %87, %cst_26 [1] : vector<34x34xf32> to vector<34xf32>
    %89 = vector.shape_cast %88 : vector<34xf32> to vector<34x1xf32>
    %90 = tpu.reciprocal %89 {approx = true} : vector<34x1xf32> -> vector<34x1xf32>
    %91 = vector.broadcast %90 : vector<34x1xf32> to vector<34x34xf32>
    %92 = arith.mulf %87, %91 : vector<34x34xf32>
    %93 = arith.truncf %92 : vector<34x34xf32> to vector<34x34xbf16>
    %cst_27 = arith.constant dense<0.000000e+00> : vector<34x8xf32>
    %94 = tpu.matmul %93, %80, %cst_27 {dimension_numbers = #tpu.dot_dimension_numbers<[1], [0], [0], [1], [0, 0, 1, 1], [], []>} : vector<34x34xbf16>, vector<34x8xbf16>, vector<34x8xf32> -> vector<34x8xf32>
    %95 = vector.extract_strided_slice %34 {offsets = [0, 24], sizes = [34, 8], strides = [1, 1]} : vector<34x96xf32> to vector<34x8xf32>
    %96 = arith.truncf %95 : vector<34x8xf32> to vector<34x8xbf16>
    %97 = vector.extract_strided_slice %34 {offsets = [0, 56], sizes = [34, 8], strides = [1, 1]} : vector<34x96xf32> to vector<34x8xf32>
    %98 = arith.truncf %97 : vector<34x8xf32> to vector<34x8xbf16>
    %99 = vector.extract_strided_slice %34 {offsets = [0, 88], sizes = [34, 8], strides = [1, 1]} : vector<34x96xf32> to vector<34x8xf32>
    %100 = arith.truncf %99 : vector<34x8xf32> to vector<34x8xbf16>
    %cst_28 = arith.constant dense<0.000000e+00> : vector<34x34xf32>
    %101 = tpu.matmul %96, %98, %cst_28 {dimension_numbers = #tpu.dot_dimension_numbers<[1], [1], [0], [0], [0, 0, 1, 0], [], []>} : vector<34x8xbf16>, vector<34x8xbf16>, vector<34x34xf32> -> vector<34x34xf32>
    %102 = arith.addf %101, %6 : vector<34x34xf32>
    %cst_29 = arith.constant dense<0xFF800000> : vector<34xf32>
    %103 = vector.multi_reduction <maximumf>, %102, %cst_29 [1] : vector<34x34xf32> to vector<34xf32>
    %104 = vector.shape_cast %103 : vector<34xf32> to vector<34x1xf32>
    %105 = vector.broadcast %104 : vector<34x1xf32> to vector<34x34xf32>
    %106 = arith.subf %102, %105 : vector<34x34xf32>
    %107 = math.exp %106 : vector<34x34xf32>
    %cst_30 = arith.constant dense<0.000000e+00> : vector<34xf32>
    %108 = vector.multi_reduction <add>, %107, %cst_30 [1] : vector<34x34xf32> to vector<34xf32>
    %109 = vector.shape_cast %108 : vector<34xf32> to vector<34x1xf32>
    %110 = tpu.reciprocal %109 {approx = true} : vector<34x1xf32> -> vector<34x1xf32>
    %111 = vector.broadcast %110 : vector<34x1xf32> to vector<34x34xf32>
    %112 = arith.mulf %107, %111 : vector<34x34xf32>
    %113 = arith.truncf %112 : vector<34x34xf32> to vector<34x34xbf16>
    %cst_31 = arith.constant dense<0.000000e+00> : vector<34x8xf32>
    %114 = tpu.matmul %113, %100, %cst_31 {dimension_numbers = #tpu.dot_dimension_numbers<[1], [0], [0], [1], [0, 0, 1, 1], [], []>} : vector<34x34xbf16>, vector<34x8xbf16>, vector<34x8xf32> -> vector<34x8xf32>
    %115 = tpu.concatenate %54, %74, %94, %114 in 1 : vector<34x8xf32>, vector<34x8xf32>, vector<34x8xf32>, vector<34x8xf32> -> vector<34x32xf32>
    %116 = arith.truncf %115 : vector<34x32xf32> to vector<34x32xbf16>
    %c96 = arith.constant 96 : index
    %c0_32 = arith.constant 0 : index
    %117 = vector.load %arg1[%c96, %c0_32] : memref<480x128xbf16, #tpu.memory_space<vmem>>, vector<32x32xbf16>
    %cst_33 = arith.constant dense<0.000000e+00> : vector<34x32xf32>
    %118 = tpu.matmul %116, %117, %cst_33 {dimension_numbers = #tpu.dot_dimension_numbers<[1], [0], [0], [1], [0, 0, 1, 1], [], []>} : vector<34x32xbf16>, vector<32x32xbf16>, vector<34x32xf32> -> vector<34x32xf32>
    %c71 = arith.constant 71 : index
    %c0_34 = arith.constant 0 : index
    %119 = vector.load %arg2[%c71, %c0_34] : memref<88x128xf32, #tpu.memory_space<vmem>>, vector<1x32xf32>
    %120 = vector.broadcast %119 : vector<1x32xf32> to vector<34x32xf32>
    %121 = arith.addf %118, %120 : vector<34x32xf32>
    %122 = arith.addf %5, %121 : vector<34x32xf32>
    %c72 = arith.constant 72 : index
    %c0_35 = arith.constant 0 : index
    %123 = vector.load %arg2[%c72, %c0_35] : memref<88x128xf32, #tpu.memory_space<vmem>>, vector<1x32xf32>
    %c73 = arith.constant 73 : index
    %c0_36 = arith.constant 0 : index
    %124 = vector.load %arg2[%c73, %c0_36] : memref<88x128xf32, #tpu.memory_space<vmem>>, vector<1x32xf32>
    %cst_37 = arith.constant dense<0.000000e+00> : vector<34xf32>
    %125 = vector.multi_reduction <add>, %122, %cst_37 [1] : vector<34x32xf32> to vector<34xf32>
    %126 = vector.shape_cast %125 : vector<34xf32> to vector<34x1xf32>
    %cst_38 = arith.constant 3.200000e+01 : f32
    %127 = vector.broadcast %cst_38 : f32 to vector<34x1xf32>
    %128 = arith.divf %126, %127 : vector<34x1xf32>
    %129 = vector.broadcast %128 : vector<34x1xf32> to vector<34x32xf32>
    %130 = arith.subf %122, %129 : vector<34x32xf32>
    %131 = arith.mulf %130, %130 : vector<34x32xf32>
    %cst_39 = arith.constant dense<0.000000e+00> : vector<34xf32>
    %132 = vector.multi_reduction <add>, %131, %cst_39 [1] : vector<34x32xf32> to vector<34xf32>
    %133 = vector.shape_cast %132 : vector<34xf32> to vector<34x1xf32>
    %cst_40 = arith.constant 3.200000e+01 : f32
    %134 = vector.broadcast %cst_40 : f32 to vector<34x1xf32>
    %135 = arith.divf %133, %134 : vector<34x1xf32>
    %cst_41 = arith.constant 9.99999974E-6 : f32
    %136 = vector.broadcast %cst_41 : f32 to vector<34x1xf32>
    %137 = arith.addf %135, %136 : vector<34x1xf32>
    %138 = math.rsqrt %137 : vector<34x1xf32>
    %139 = vector.broadcast %138 : vector<34x1xf32> to vector<34x32xf32>
    %140 = arith.mulf %130, %139 : vector<34x32xf32>
    %141 = vector.broadcast %123 : vector<1x32xf32> to vector<34x32xf32>
    %142 = arith.mulf %140, %141 : vector<34x32xf32>
    %143 = vector.broadcast %124 : vector<1x32xf32> to vector<34x32xf32>
    %144 = arith.addf %142, %143 : vector<34x32xf32>
    %145 = arith.truncf %144 : vector<34x32xf32> to vector<34x32xbf16>
    %c128 = arith.constant 128 : index
    %c0_42 = arith.constant 0 : index
    %146 = vector.load %arg1[%c128, %c0_42] : memref<480x128xbf16, #tpu.memory_space<vmem>>, vector<32x64xbf16>
    %cst_43 = arith.constant dense<0.000000e+00> : vector<34x64xf32>
    %147 = tpu.matmul %145, %146, %cst_43 {dimension_numbers = #tpu.dot_dimension_numbers<[1], [0], [0], [1], [0, 0, 1, 1], [], []>} : vector<34x32xbf16>, vector<32x64xbf16>, vector<34x64xf32> -> vector<34x64xf32>
    %c74 = arith.constant 74 : index
    %c0_44 = arith.constant 0 : index
    %148 = vector.load %arg2[%c74, %c0_44] : memref<88x128xf32, #tpu.memory_space<vmem>>, vector<1x64xf32>
    %149 = vector.broadcast %148 : vector<1x64xf32> to vector<34x64xf32>
    %150 = arith.addf %147, %149 : vector<34x64xf32>
    %151 = arith.mulf %150, %150 : vector<34x64xf32>
    %152 = arith.mulf %150, %151 : vector<34x64xf32>
    %cst_45 = arith.constant 4.471500e-02 : f32
    %153 = vector.broadcast %cst_45 : f32 to vector<34x64xf32>
    %154 = arith.mulf %153, %152 : vector<34x64xf32>
    %155 = arith.addf %150, %154 : vector<34x64xf32>
    %cst_46 = arith.constant 0.797884583 : f32
    %156 = vector.broadcast %cst_46 : f32 to vector<34x64xf32>
    %157 = arith.mulf %156, %155 : vector<34x64xf32>
    %158 = math.tanh %157 : vector<34x64xf32>
    %cst_47 = arith.constant 1.000000e+00 : f32
    %159 = vector.broadcast %cst_47 : f32 to vector<34x64xf32>
    %160 = arith.addf %159, %158 : vector<34x64xf32>
    %cst_48 = arith.constant 5.000000e-01 : f32
    %161 = vector.broadcast %cst_48 : f32 to vector<34x64xf32>
    %162 = arith.mulf %161, %160 : vector<34x64xf32>
    %163 = arith.mulf %150, %162 : vector<34x64xf32>
    %164 = arith.truncf %163 : vector<34x64xf32> to vector<34x64xbf16>
    %c160 = arith.constant 160 : index
    %c0_49 = arith.constant 0 : index
    %165 = vector.load %arg1[%c160, %c0_49] : memref<480x128xbf16, #tpu.memory_space<vmem>>, vector<64x32xbf16>
    %cst_50 = arith.constant dense<0.000000e+00> : vector<34x32xf32>
    %166 = tpu.matmul %164, %165, %cst_50 {dimension_numbers = #tpu.dot_dimension_numbers<[1], [0], [0], [1], [0, 0, 1, 1], [], []>} : vector<34x64xbf16>, vector<64x32xbf16>, vector<34x32xf32> -> vector<34x32xf32>
    %c75 = arith.constant 75 : index
    %c0_51 = arith.constant 0 : index
    %167 = vector.load %arg2[%c75, %c0_51] : memref<88x128xf32, #tpu.memory_space<vmem>>, vector<1x32xf32>
    %168 = vector.broadcast %167 : vector<1x32xf32> to vector<34x32xf32>
    %169 = arith.addf %166, %168 : vector<34x32xf32>
    %170 = arith.addf %122, %169 : vector<34x32xf32>
    %c76 = arith.constant 76 : index
    %c0_52 = arith.constant 0 : index
    %171 = vector.load %arg2[%c76, %c0_52] : memref<88x128xf32, #tpu.memory_space<vmem>>, vector<1x32xf32>
    %c77 = arith.constant 77 : index
    %c0_53 = arith.constant 0 : index
    %172 = vector.load %arg2[%c77, %c0_53] : memref<88x128xf32, #tpu.memory_space<vmem>>, vector<1x32xf32>
    %cst_54 = arith.constant dense<0.000000e+00> : vector<34xf32>
    %173 = vector.multi_reduction <add>, %170, %cst_54 [1] : vector<34x32xf32> to vector<34xf32>
    %174 = vector.shape_cast %173 : vector<34xf32> to vector<34x1xf32>
    %cst_55 = arith.constant 3.200000e+01 : f32
    %175 = vector.broadcast %cst_55 : f32 to vector<34x1xf32>
    %176 = arith.divf %174, %175 : vector<34x1xf32>
    %177 = vector.broadcast %176 : vector<34x1xf32> to vector<34x32xf32>
    %178 = arith.subf %170, %177 : vector<34x32xf32>
    %179 = arith.mulf %178, %178 : vector<34x32xf32>
    %cst_56 = arith.constant dense<0.000000e+00> : vector<34xf32>
    %180 = vector.multi_reduction <add>, %179, %cst_56 [1] : vector<34x32xf32> to vector<34xf32>
    %181 = vector.shape_cast %180 : vector<34xf32> to vector<34x1xf32>
    %cst_57 = arith.constant 3.200000e+01 : f32
    %182 = vector.broadcast %cst_57 : f32 to vector<34x1xf32>
    %183 = arith.divf %181, %182 : vector<34x1xf32>
    %cst_58 = arith.constant 9.99999974E-6 : f32
    %184 = vector.broadcast %cst_58 : f32 to vector<34x1xf32>
    %185 = arith.addf %183, %184 : vector<34x1xf32>
    %186 = math.rsqrt %185 : vector<34x1xf32>
    %187 = vector.broadcast %186 : vector<34x1xf32> to vector<34x32xf32>
    %188 = arith.mulf %178, %187 : vector<34x32xf32>
    %189 = vector.broadcast %171 : vector<1x32xf32> to vector<34x32xf32>
    %190 = arith.mulf %188, %189 : vector<34x32xf32>
    %191 = vector.broadcast %172 : vector<1x32xf32> to vector<34x32xf32>
    %192 = arith.addf %190, %191 : vector<34x32xf32>
    %193 = arith.truncf %192 : vector<34x32xf32> to vector<34x32xbf16>
    %c224 = arith.constant 224 : index
    %c0_59 = arith.constant 0 : index
    %194 = vector.load %arg1[%c224, %c0_59] : memref<480x128xbf16, #tpu.memory_space<vmem>>, vector<32x96xbf16>
    %cst_60 = arith.constant dense<0.000000e+00> : vector<34x96xf32>
    %195 = tpu.matmul %193, %194, %cst_60 {dimension_numbers = #tpu.dot_dimension_numbers<[1], [0], [0], [1], [0, 0, 1, 1], [], []>} : vector<34x32xbf16>, vector<32x96xbf16>, vector<34x96xf32> -> vector<34x96xf32>
    %c78 = arith.constant 78 : index
    %c0_61 = arith.constant 0 : index
    %196 = vector.load %arg2[%c78, %c0_61] : memref<88x128xf32, #tpu.memory_space<vmem>>, vector<1x96xf32>
    %197 = vector.broadcast %196 : vector<1x96xf32> to vector<34x96xf32>
    %198 = arith.addf %195, %197 : vector<34x96xf32>
    %199 = vector.extract_strided_slice %198 {offsets = [0, 0], sizes = [34, 8], strides = [1, 1]} : vector<34x96xf32> to vector<34x8xf32>
    %200 = arith.truncf %199 : vector<34x8xf32> to vector<34x8xbf16>
    %201 = vector.extract_strided_slice %198 {offsets = [0, 32], sizes = [34, 8], strides = [1, 1]} : vector<34x96xf32> to vector<34x8xf32>
    %202 = arith.truncf %201 : vector<34x8xf32> to vector<34x8xbf16>
    %203 = vector.extract_strided_slice %198 {offsets = [0, 64], sizes = [34, 8], strides = [1, 1]} : vector<34x96xf32> to vector<34x8xf32>
    %204 = arith.truncf %203 : vector<34x8xf32> to vector<34x8xbf16>
    %cst_62 = arith.constant dense<0.000000e+00> : vector<34x34xf32>
    %205 = tpu.matmul %200, %202, %cst_62 {dimension_numbers = #tpu.dot_dimension_numbers<[1], [1], [0], [0], [0, 0, 1, 0], [], []>} : vector<34x8xbf16>, vector<34x8xbf16>, vector<34x34xf32> -> vector<34x34xf32>
    %206 = arith.addf %205, %6 : vector<34x34xf32>
    %cst_63 = arith.constant dense<0xFF800000> : vector<34xf32>
    %207 = vector.multi_reduction <maximumf>, %206, %cst_63 [1] : vector<34x34xf32> to vector<34xf32>
    %208 = vector.shape_cast %207 : vector<34xf32> to vector<34x1xf32>
    %209 = vector.broadcast %208 : vector<34x1xf32> to vector<34x34xf32>
    %210 = arith.subf %206, %209 : vector<34x34xf32>
    %211 = math.exp %210 : vector<34x34xf32>
    %cst_64 = arith.constant dense<0.000000e+00> : vector<34xf32>
    %212 = vector.multi_reduction <add>, %211, %cst_64 [1] : vector<34x34xf32> to vector<34xf32>
    %213 = vector.shape_cast %212 : vector<34xf32> to vector<34x1xf32>
    %214 = tpu.reciprocal %213 {approx = true} : vector<34x1xf32> -> vector<34x1xf32>
    %215 = vector.broadcast %214 : vector<34x1xf32> to vector<34x34xf32>
    %216 = arith.mulf %211, %215 : vector<34x34xf32>
    %217 = arith.truncf %216 : vector<34x34xf32> to vector<34x34xbf16>
    %cst_65 = arith.constant dense<0.000000e+00> : vector<34x8xf32>
    %218 = tpu.matmul %217, %204, %cst_65 {dimension_numbers = #tpu.dot_dimension_numbers<[1], [0], [0], [1], [0, 0, 1, 1], [], []>} : vector<34x34xbf16>, vector<34x8xbf16>, vector<34x8xf32> -> vector<34x8xf32>
    %219 = vector.extract_strided_slice %198 {offsets = [0, 8], sizes = [34, 8], strides = [1, 1]} : vector<34x96xf32> to vector<34x8xf32>
    %220 = arith.truncf %219 : vector<34x8xf32> to vector<34x8xbf16>
    %221 = vector.extract_strided_slice %198 {offsets = [0, 40], sizes = [34, 8], strides = [1, 1]} : vector<34x96xf32> to vector<34x8xf32>
    %222 = arith.truncf %221 : vector<34x8xf32> to vector<34x8xbf16>
    %223 = vector.extract_strided_slice %198 {offsets = [0, 72], sizes = [34, 8], strides = [1, 1]} : vector<34x96xf32> to vector<34x8xf32>
    %224 = arith.truncf %223 : vector<34x8xf32> to vector<34x8xbf16>
    %cst_66 = arith.constant dense<0.000000e+00> : vector<34x34xf32>
    %225 = tpu.matmul %220, %222, %cst_66 {dimension_numbers = #tpu.dot_dimension_numbers<[1], [1], [0], [0], [0, 0, 1, 0], [], []>} : vector<34x8xbf16>, vector<34x8xbf16>, vector<34x34xf32> -> vector<34x34xf32>
    %226 = arith.addf %225, %6 : vector<34x34xf32>
    %cst_67 = arith.constant dense<0xFF800000> : vector<34xf32>
    %227 = vector.multi_reduction <maximumf>, %226, %cst_67 [1] : vector<34x34xf32> to vector<34xf32>
    %228 = vector.shape_cast %227 : vector<34xf32> to vector<34x1xf32>
    %229 = vector.broadcast %228 : vector<34x1xf32> to vector<34x34xf32>
    %230 = arith.subf %226, %229 : vector<34x34xf32>
    %231 = math.exp %230 : vector<34x34xf32>
    %cst_68 = arith.constant dense<0.000000e+00> : vector<34xf32>
    %232 = vector.multi_reduction <add>, %231, %cst_68 [1] : vector<34x34xf32> to vector<34xf32>
    %233 = vector.shape_cast %232 : vector<34xf32> to vector<34x1xf32>
    %234 = tpu.reciprocal %233 {approx = true} : vector<34x1xf32> -> vector<34x1xf32>
    %235 = vector.broadcast %234 : vector<34x1xf32> to vector<34x34xf32>
    %236 = arith.mulf %231, %235 : vector<34x34xf32>
    %237 = arith.truncf %236 : vector<34x34xf32> to vector<34x34xbf16>
    %cst_69 = arith.constant dense<0.000000e+00> : vector<34x8xf32>
    %238 = tpu.matmul %237, %224, %cst_69 {dimension_numbers = #tpu.dot_dimension_numbers<[1], [0], [0], [1], [0, 0, 1, 1], [], []>} : vector<34x34xbf16>, vector<34x8xbf16>, vector<34x8xf32> -> vector<34x8xf32>
    %239 = vector.extract_strided_slice %198 {offsets = [0, 16], sizes = [34, 8], strides = [1, 1]} : vector<34x96xf32> to vector<34x8xf32>
    %240 = arith.truncf %239 : vector<34x8xf32> to vector<34x8xbf16>
    %241 = vector.extract_strided_slice %198 {offsets = [0, 48], sizes = [34, 8], strides = [1, 1]} : vector<34x96xf32> to vector<34x8xf32>
    %242 = arith.truncf %241 : vector<34x8xf32> to vector<34x8xbf16>
    %243 = vector.extract_strided_slice %198 {offsets = [0, 80], sizes = [34, 8], strides = [1, 1]} : vector<34x96xf32> to vector<34x8xf32>
    %244 = arith.truncf %243 : vector<34x8xf32> to vector<34x8xbf16>
    %cst_70 = arith.constant dense<0.000000e+00> : vector<34x34xf32>
    %245 = tpu.matmul %240, %242, %cst_70 {dimension_numbers = #tpu.dot_dimension_numbers<[1], [1], [0], [0], [0, 0, 1, 0], [], []>} : vector<34x8xbf16>, vector<34x8xbf16>, vector<34x34xf32> -> vector<34x34xf32>
    %246 = arith.addf %245, %6 : vector<34x34xf32>
    %cst_71 = arith.constant dense<0xFF800000> : vector<34xf32>
    %247 = vector.multi_reduction <maximumf>, %246, %cst_71 [1] : vector<34x34xf32> to vector<34xf32>
    %248 = vector.shape_cast %247 : vector<34xf32> to vector<34x1xf32>
    %249 = vector.broadcast %248 : vector<34x1xf32> to vector<34x34xf32>
    %250 = arith.subf %246, %249 : vector<34x34xf32>
    %251 = math.exp %250 : vector<34x34xf32>
    %cst_72 = arith.constant dense<0.000000e+00> : vector<34xf32>
    %252 = vector.multi_reduction <add>, %251, %cst_72 [1] : vector<34x34xf32> to vector<34xf32>
    %253 = vector.shape_cast %252 : vector<34xf32> to vector<34x1xf32>
    %254 = tpu.reciprocal %253 {approx = true} : vector<34x1xf32> -> vector<34x1xf32>
    %255 = vector.broadcast %254 : vector<34x1xf32> to vector<34x34xf32>
    %256 = arith.mulf %251, %255 : vector<34x34xf32>
    %257 = arith.truncf %256 : vector<34x34xf32> to vector<34x34xbf16>
    %cst_73 = arith.constant dense<0.000000e+00> : vector<34x8xf32>
    %258 = tpu.matmul %257, %244, %cst_73 {dimension_numbers = #tpu.dot_dimension_numbers<[1], [0], [0], [1], [0, 0, 1, 1], [], []>} : vector<34x34xbf16>, vector<34x8xbf16>, vector<34x8xf32> -> vector<34x8xf32>
    %259 = vector.extract_strided_slice %198 {offsets = [0, 24], sizes = [34, 8], strides = [1, 1]} : vector<34x96xf32> to vector<34x8xf32>
    %260 = arith.truncf %259 : vector<34x8xf32> to vector<34x8xbf16>
    %261 = vector.extract_strided_slice %198 {offsets = [0, 56], sizes = [34, 8], strides = [1, 1]} : vector<34x96xf32> to vector<34x8xf32>
    %262 = arith.truncf %261 : vector<34x8xf32> to vector<34x8xbf16>
    %263 = vector.extract_strided_slice %198 {offsets = [0, 88], sizes = [34, 8], strides = [1, 1]} : vector<34x96xf32> to vector<34x8xf32>
    %264 = arith.truncf %263 : vector<34x8xf32> to vector<34x8xbf16>
    %cst_74 = arith.constant dense<0.000000e+00> : vector<34x34xf32>
    %265 = tpu.matmul %260, %262, %cst_74 {dimension_numbers = #tpu.dot_dimension_numbers<[1], [1], [0], [0], [0, 0, 1, 0], [], []>} : vector<34x8xbf16>, vector<34x8xbf16>, vector<34x34xf32> -> vector<34x34xf32>
    %266 = arith.addf %265, %6 : vector<34x34xf32>
    %cst_75 = arith.constant dense<0xFF800000> : vector<34xf32>
    %267 = vector.multi_reduction <maximumf>, %266, %cst_75 [1] : vector<34x34xf32> to vector<34xf32>
    %268 = vector.shape_cast %267 : vector<34xf32> to vector<34x1xf32>
    %269 = vector.broadcast %268 : vector<34x1xf32> to vector<34x34xf32>
    %270 = arith.subf %266, %269 : vector<34x34xf32>
    %271 = math.exp %270 : vector<34x34xf32>
    %cst_76 = arith.constant dense<0.000000e+00> : vector<34xf32>
    %272 = vector.multi_reduction <add>, %271, %cst_76 [1] : vector<34x34xf32> to vector<34xf32>
    %273 = vector.shape_cast %272 : vector<34xf32> to vector<34x1xf32>
    %274 = tpu.reciprocal %273 {approx = true} : vector<34x1xf32> -> vector<34x1xf32>
    %275 = vector.broadcast %274 : vector<34x1xf32> to vector<34x34xf32>
    %276 = arith.mulf %271, %275 : vector<34x34xf32>
    %277 = arith.truncf %276 : vector<34x34xf32> to vector<34x34xbf16>
    %cst_77 = arith.constant dense<0.000000e+00> : vector<34x8xf32>
    %278 = tpu.matmul %277, %264, %cst_77 {dimension_numbers = #tpu.dot_dimension_numbers<[1], [0], [0], [1], [0, 0, 1, 1], [], []>} : vector<34x34xbf16>, vector<34x8xbf16>, vector<34x8xf32> -> vector<34x8xf32>
    %279 = tpu.concatenate %218, %238, %258, %278 in 1 : vector<34x8xf32>, vector<34x8xf32>, vector<34x8xf32>, vector<34x8xf32> -> vector<34x32xf32>
    %280 = arith.truncf %279 : vector<34x32xf32> to vector<34x32xbf16>
    %c256 = arith.constant 256 : index
    %c0_78 = arith.constant 0 : index
    %281 = vector.load %arg1[%c256, %c0_78] : memref<480x128xbf16, #tpu.memory_space<vmem>>, vector<32x32xbf16>
    %cst_79 = arith.constant dense<0.000000e+00> : vector<34x32xf32>
    %282 = tpu.matmul %280, %281, %cst_79 {dimension_numbers = #tpu.dot_dimension_numbers<[1], [0], [0], [1], [0, 0, 1, 1], [], []>} : vector<34x32xbf16>, vector<32x32xbf16>, vector<34x32xf32> -> vector<34x32xf32>
    %c79 = arith.constant 79 : index
    %c0_80 = arith.constant 0 : index
    %283 = vector.load %arg2[%c79, %c0_80] : memref<88x128xf32, #tpu.memory_space<vmem>>, vector<1x32xf32>
    %284 = vector.broadcast %283 : vector<1x32xf32> to vector<34x32xf32>
    %285 = arith.addf %282, %284 : vector<34x32xf32>
    %286 = arith.addf %170, %285 : vector<34x32xf32>
    %c80 = arith.constant 80 : index
    %c0_81 = arith.constant 0 : index
    %287 = vector.load %arg2[%c80, %c0_81] : memref<88x128xf32, #tpu.memory_space<vmem>>, vector<1x32xf32>
    %c81 = arith.constant 81 : index
    %c0_82 = arith.constant 0 : index
    %288 = vector.load %arg2[%c81, %c0_82] : memref<88x128xf32, #tpu.memory_space<vmem>>, vector<1x32xf32>
    %cst_83 = arith.constant dense<0.000000e+00> : vector<34xf32>
    %289 = vector.multi_reduction <add>, %286, %cst_83 [1] : vector<34x32xf32> to vector<34xf32>
    %290 = vector.shape_cast %289 : vector<34xf32> to vector<34x1xf32>
    %cst_84 = arith.constant 3.200000e+01 : f32
    %291 = vector.broadcast %cst_84 : f32 to vector<34x1xf32>
    %292 = arith.divf %290, %291 : vector<34x1xf32>
    %293 = vector.broadcast %292 : vector<34x1xf32> to vector<34x32xf32>
    %294 = arith.subf %286, %293 : vector<34x32xf32>
    %295 = arith.mulf %294, %294 : vector<34x32xf32>
    %cst_85 = arith.constant dense<0.000000e+00> : vector<34xf32>
    %296 = vector.multi_reduction <add>, %295, %cst_85 [1] : vector<34x32xf32> to vector<34xf32>
    %297 = vector.shape_cast %296 : vector<34xf32> to vector<34x1xf32>
    %cst_86 = arith.constant 3.200000e+01 : f32
    %298 = vector.broadcast %cst_86 : f32 to vector<34x1xf32>
    %299 = arith.divf %297, %298 : vector<34x1xf32>
    %cst_87 = arith.constant 9.99999974E-6 : f32
    %300 = vector.broadcast %cst_87 : f32 to vector<34x1xf32>
    %301 = arith.addf %299, %300 : vector<34x1xf32>
    %302 = math.rsqrt %301 : vector<34x1xf32>
    %303 = vector.broadcast %302 : vector<34x1xf32> to vector<34x32xf32>
    %304 = arith.mulf %294, %303 : vector<34x32xf32>
    %305 = vector.broadcast %287 : vector<1x32xf32> to vector<34x32xf32>
    %306 = arith.mulf %304, %305 : vector<34x32xf32>
    %307 = vector.broadcast %288 : vector<1x32xf32> to vector<34x32xf32>
    %308 = arith.addf %306, %307 : vector<34x32xf32>
    %309 = arith.truncf %308 : vector<34x32xf32> to vector<34x32xbf16>
    %c288 = arith.constant 288 : index
    %c0_88 = arith.constant 0 : index
    %310 = vector.load %arg1[%c288, %c0_88] : memref<480x128xbf16, #tpu.memory_space<vmem>>, vector<32x64xbf16>
    %cst_89 = arith.constant dense<0.000000e+00> : vector<34x64xf32>
    %311 = tpu.matmul %309, %310, %cst_89 {dimension_numbers = #tpu.dot_dimension_numbers<[1], [0], [0], [1], [0, 0, 1, 1], [], []>} : vector<34x32xbf16>, vector<32x64xbf16>, vector<34x64xf32> -> vector<34x64xf32>
    %c82 = arith.constant 82 : index
    %c0_90 = arith.constant 0 : index
    %312 = vector.load %arg2[%c82, %c0_90] : memref<88x128xf32, #tpu.memory_space<vmem>>, vector<1x64xf32>
    %313 = vector.broadcast %312 : vector<1x64xf32> to vector<34x64xf32>
    %314 = arith.addf %311, %313 : vector<34x64xf32>
    %315 = arith.mulf %314, %314 : vector<34x64xf32>
    %316 = arith.mulf %314, %315 : vector<34x64xf32>
    %cst_91 = arith.constant 4.471500e-02 : f32
    %317 = vector.broadcast %cst_91 : f32 to vector<34x64xf32>
    %318 = arith.mulf %317, %316 : vector<34x64xf32>
    %319 = arith.addf %314, %318 : vector<34x64xf32>
    %cst_92 = arith.constant 0.797884583 : f32
    %320 = vector.broadcast %cst_92 : f32 to vector<34x64xf32>
    %321 = arith.mulf %320, %319 : vector<34x64xf32>
    %322 = math.tanh %321 : vector<34x64xf32>
    %cst_93 = arith.constant 1.000000e+00 : f32
    %323 = vector.broadcast %cst_93 : f32 to vector<34x64xf32>
    %324 = arith.addf %323, %322 : vector<34x64xf32>
    %cst_94 = arith.constant 5.000000e-01 : f32
    %325 = vector.broadcast %cst_94 : f32 to vector<34x64xf32>
    %326 = arith.mulf %325, %324 : vector<34x64xf32>
    %327 = arith.mulf %314, %326 : vector<34x64xf32>
    %328 = arith.truncf %327 : vector<34x64xf32> to vector<34x64xbf16>
    %c320 = arith.constant 320 : index
    %c0_95 = arith.constant 0 : index
    %329 = vector.load %arg1[%c320, %c0_95] : memref<480x128xbf16, #tpu.memory_space<vmem>>, vector<64x32xbf16>
    %cst_96 = arith.constant dense<0.000000e+00> : vector<34x32xf32>
    %330 = tpu.matmul %328, %329, %cst_96 {dimension_numbers = #tpu.dot_dimension_numbers<[1], [0], [0], [1], [0, 0, 1, 1], [], []>} : vector<34x64xbf16>, vector<64x32xbf16>, vector<34x32xf32> -> vector<34x32xf32>
    %c83 = arith.constant 83 : index
    %c0_97 = arith.constant 0 : index
    %331 = vector.load %arg2[%c83, %c0_97] : memref<88x128xf32, #tpu.memory_space<vmem>>, vector<1x32xf32>
    %332 = vector.broadcast %331 : vector<1x32xf32> to vector<34x32xf32>
    %333 = arith.addf %330, %332 : vector<34x32xf32>
    %334 = arith.addf %286, %333 : vector<34x32xf32>
    %c84 = arith.constant 84 : index
    %c0_98 = arith.constant 0 : index
    %335 = vector.load %arg2[%c84, %c0_98] : memref<88x128xf32, #tpu.memory_space<vmem>>, vector<1x32xf32>
    %c85 = arith.constant 85 : index
    %c0_99 = arith.constant 0 : index
    %336 = vector.load %arg2[%c85, %c0_99] : memref<88x128xf32, #tpu.memory_space<vmem>>, vector<1x32xf32>
    %cst_100 = arith.constant dense<0.000000e+00> : vector<34xf32>
    %337 = vector.multi_reduction <add>, %334, %cst_100 [1] : vector<34x32xf32> to vector<34xf32>
    %338 = vector.shape_cast %337 : vector<34xf32> to vector<34x1xf32>
    %cst_101 = arith.constant 3.200000e+01 : f32
    %339 = vector.broadcast %cst_101 : f32 to vector<34x1xf32>
    %340 = arith.divf %338, %339 : vector<34x1xf32>
    %341 = vector.broadcast %340 : vector<34x1xf32> to vector<34x32xf32>
    %342 = arith.subf %334, %341 : vector<34x32xf32>
    %343 = arith.mulf %342, %342 : vector<34x32xf32>
    %cst_102 = arith.constant dense<0.000000e+00> : vector<34xf32>
    %344 = vector.multi_reduction <add>, %343, %cst_102 [1] : vector<34x32xf32> to vector<34xf32>
    %345 = vector.shape_cast %344 : vector<34xf32> to vector<34x1xf32>
    %cst_103 = arith.constant 3.200000e+01 : f32
    %346 = vector.broadcast %cst_103 : f32 to vector<34x1xf32>
    %347 = arith.divf %345, %346 : vector<34x1xf32>
    %cst_104 = arith.constant 9.99999974E-6 : f32
    %348 = vector.broadcast %cst_104 : f32 to vector<34x1xf32>
    %349 = arith.addf %347, %348 : vector<34x1xf32>
    %350 = math.rsqrt %349 : vector<34x1xf32>
    %351 = vector.broadcast %350 : vector<34x1xf32> to vector<34x32xf32>
    %352 = arith.mulf %342, %351 : vector<34x32xf32>
    %353 = vector.broadcast %335 : vector<1x32xf32> to vector<34x32xf32>
    %354 = arith.mulf %352, %353 : vector<34x32xf32>
    %355 = vector.broadcast %336 : vector<1x32xf32> to vector<34x32xf32>
    %356 = arith.addf %354, %355 : vector<34x32xf32>
    %357 = arith.truncf %356 : vector<34x32xf32> to vector<34x32xbf16>
    %c384 = arith.constant 384 : index
    %c0_105 = arith.constant 0 : index
    %358 = vector.load %arg1[%c384, %c0_105] : memref<480x128xbf16, #tpu.memory_space<vmem>>, vector<32x64xbf16>
    %cst_106 = arith.constant dense<0.000000e+00> : vector<34x64xf32>
    %359 = tpu.matmul %357, %358, %cst_106 {dimension_numbers = #tpu.dot_dimension_numbers<[1], [0], [0], [1], [0, 0, 1, 1], [], []>} : vector<34x32xbf16>, vector<32x64xbf16>, vector<34x64xf32> -> vector<34x64xf32>
    %c86 = arith.constant 86 : index
    %c0_107 = arith.constant 0 : index
    %360 = vector.load %arg2[%c86, %c0_107] : memref<88x128xf32, #tpu.memory_space<vmem>>, vector<1x64xf32>
    %361 = vector.broadcast %360 : vector<1x64xf32> to vector<34x64xf32>
    %362 = arith.addf %359, %361 : vector<34x64xf32>
    %363 = math.tanh %362 : vector<34x64xf32>
    %364 = arith.truncf %363 : vector<34x64xf32> to vector<34x64xbf16>
    %c416 = arith.constant 416 : index
    %c0_108 = arith.constant 0 : index
    %365 = vector.load %arg1[%c416, %c0_108] : memref<480x128xbf16, #tpu.memory_space<vmem>>, vector<64x128xbf16>
    %cst_109 = arith.constant dense<0.000000e+00> : vector<34x128xf32>
    %366 = tpu.matmul %364, %365, %cst_109 {dimension_numbers = #tpu.dot_dimension_numbers<[1], [0], [0], [1], [0, 0, 1, 1], [], []>} : vector<34x64xbf16>, vector<64x128xbf16>, vector<34x128xf32> -> vector<34x128xf32>
    %c87 = arith.constant 87 : index
    %c0_110 = arith.constant 0 : index
    %367 = vector.load %arg2[%c87, %c0_110] : memref<88x128xf32, #tpu.memory_space<vmem>>, vector<1x128xf32>
    %368 = vector.broadcast %367 : vector<1x128xf32> to vector<34x128xf32>
    %369 = arith.addf %366, %368 : vector<34x128xf32>
    %cst_111 = arith.constant dense<0xFF800000> : vector<34xf32>
    %370 = vector.multi_reduction <maximumf>, %369, %cst_111 [1] : vector<34x128xf32> to vector<34xf32>
    %371 = vector.shape_cast %370 : vector<34xf32> to vector<34x1xf32>
    %372 = vector.broadcast %371 : vector<34x1xf32> to vector<34x128xf32>
    %373 = arith.subf %369, %372 : vector<34x128xf32>
    %374 = math.exp %373 : vector<34x128xf32>
    %cst_112 = arith.constant dense<0.000000e+00> : vector<34xf32>
    %375 = vector.multi_reduction <add>, %374, %cst_112 [1] : vector<34x128xf32> to vector<34xf32>
    %376 = vector.shape_cast %375 : vector<34xf32> to vector<34x1xf32>
    %377 = math.log %376 : vector<34x1xf32>
    %378 = vector.broadcast %377 : vector<34x1xf32> to vector<34x128xf32>
    %379 = arith.subf %373, %378 : vector<34x128xf32>
    %c0_113 = arith.constant 0 : index
    %c0_114 = arith.constant 0 : index
    %380 = vector.load %arg3[%c0_113, %c0_114] : memref<34x128xf32, #tpu.memory_space<vmem>>, vector<34x128xf32>
    tpu.vector_store %arg3[%c0_113, %c0_114], %379 {strides = array<i32>} : memref<34x128xf32, #tpu.memory_space<vmem>>, vector<34x128xf32>,
    return
  }
}

</mosaic_0001>

<llo_original>
// kernel: vit_forward.1
$region0: #{vit_forward.1}
  #allocation0 [shape = 'u32[]', space=smem, size = 0x4, offset = 0x4, fixed_abs, tag = 'smem constant byte address 0x4 - core index']
  #allocation1 [shape = 'u32[144,128]{1,0:T(1,128)}', space=vmem, size = 0x12000, scoped, tag = 'internal scratch']
  %s0 = inlined_call_operand.vmem [shape: f32[34,64], index: 0, kind: input, shape index: {}]
  %s1 = inlined_call_operand.vmem [shape: bf16[480,128], index: 1, kind: input, shape index: {}]
  %s2 = inlined_call_operand.vmem [shape: f32[88,128], index: 2, kind: input, shape index: {}]
  %s3 = inlined_call_operand.vmem [shape: f32[34,128], index: 3, kind: output, shape index: {}]
  %s4 = sld [smem:[#allocation0]]
  $region22: #{vit_forward.1} parent=0
    _
  %s6 = ssub.s32 1, %s4
  %s7 = scalar_select 0, %s6, %s4
  // Predicated region
  $region2: #{vit_forward.1} parent=0 // pred_check
    _
  $region3: #{vit_forward.1} parent=0 // pred_check_branch
    %9 = sbr.rel (0) target = $region5
  $region4: #{vit_forward.1} parent=0 // pred_region
    _
  $region5: #{vit_forward.1} parent=0 // pred_fallthru
    _
  // Predicated region
  $region6: #{vit_forward.1} parent=0 // pred_check
    _
  $region7: #{vit_forward.1} parent=0 // pred_check_branch
    %11 = sbr.rel (0) target = $region9
  $region8: #{vit_forward.1} parent=0 // pred_region
    _
  $region9: #{vit_forward.1} parent=0 // pred_fallthru
    _
  // Predicated region
  $region10: #{vit_forward.1} parent=0 // pred_check
    _
  $region11: #{vit_forward.1} parent=0 // pred_check_branch
    %13 = sbr.rel (0) target = $region13
  $region12: #{vit_forward.1} parent=0 // pred_region
    _
  $region13: #{vit_forward.1} parent=0 // pred_fallthru
    _
  %v15 = vld [vmem:[%s0] sm:$0xff]
  %v16 = vld [vmem:[%s0 + $0x8] sm:$0xff]
  %v17 = vld [vmem:[%s0 + $0x10] sm:$0xff]
  %v18 = vld [vmem:[%s0 + $0x18] sm:$0xff]
  %v19 = vld [vmem:[%s0 + $0x20] sm:$0x3]
  %v20 = vpack.c.bf16 %v16, %v15
  %v21 = vpack.c.bf16 %v18, %v17
  %v22 = vpack.c.bf16 %v19, %v19
  %v23 = vld [vmem:[%s1] sm:$0xf]
  %v24 = vld [vmem:[%s1 + $0x4] sm:$0xf]
  %v25 = vld [vmem:[%s1 + $0x8] sm:$0xf]
  %v26 = vld [vmem:[%s1 + $0xc] sm:$0xf]
  %v27 = vld [vmem:[%s1 + $0x10] sm:$0xf]
  %v28 = vld [vmem:[%s1 + $0x14] sm:$0xf]
  %v29 = vld [vmem:[%s1 + $0x18] sm:$0xf]
  %v30 = vld [vmem:[%s1 + $0x1c] sm:$0xf]
  %v31 = vld [vmem:[%s2] sm:$0xff]
  %v32 = vld [vmem:[%s2 + $0x8] sm:$0xff]
  %v33 = vld [vmem:[%s2 + $0x10] sm:$0xff]
  %v34 = vld [vmem:[%s2 + $0x18] sm:$0xff]
  %v35 = vld [vmem:[%s2 + $0x20] sm:$0x3]
  %v44 = vunpack.c.l.b16 %v23
  %v45 = vunpack.c.l.b16 %v24
  %v46 = vunpack.c.l.b16 %v25
  %v47 = vunpack.c.l.b16 %v26
  %v48 = vunpack.c.l.b16 %v27
  %v49 = vunpack.c.l.b16 %v28
  %v50 = vunpack.c.l.b16 %v29
  %v51 = vunpack.c.l.b16 %v30
  %v52 = vpack.c.b16 %v45, %v44
  %v53 = vpack.c.b16 %v47, %v46
  %v54 = vpack.c.b16 %v49, %v48
  %v55 = vpack.c.b16 %v51, %v50
  %vm60 = vcmask 523264
  %v62 = vsel %vm60, %v20, 0
  %v65 = vsel %vm60, %v21, 0
  %v68 = vsel %vm60, %v22, 0
  %70 = vmatprep.subr.bf16.mxu0 0
  %71 = vmatpush1.bf16.msra.mxu0 %v52
  %72 = vmatprep.subr.bf16.mxu0 0
  %73 = vmatpush1.bf16.msra.mxu0 %v53
  %74 = vmatprep.subr.bf16.mxu0 0
  %75 = vmatpush1.bf16.msra.mxu0 %v54
  %76 = vmatprep.subr.bf16.mxu0 0
  %77 = vmatpush1.bf16.msra.mxu0 %v55
  %78 = vmatprep.subr.bf16.mxu0 0
  %79 = vmatpush1.bf16.msra.mxu0 0
  %80 = vmatprep.subr.bf16.mxu0 0
  %81 = vmatpush1.bf16.msra.mxu0 0
  %82 = vmatprep.subr.bf16.mxu0 0
  %83 = vmatpush1.bf16.msra.mxu0 0
  %84 = vmatprep.subr.bf16.mxu0 0
  %85 = vmatpush1.bf16.msra.mxu0 0
  %86 = vmatprep.subr.bf16.mxu0 0
  %87 = vmatpush1.bf16.msra.mxu0 0
  %88 = vmatprep.subr.bf16.mxu0 0
  %89 = vmatpush1.bf16.msra.mxu0 0
  %90 = vmatprep.subr.bf16.mxu0 0
  %91 = vmatpush1.bf16.msra.mxu0 0
  %92 = vmatprep.subr.bf16.mxu0 0
  %93 = vmatpush1.bf16.msra.mxu0 0
  %94 = vmatprep.subr.bf16.mxu0 0
  %95 = vmatpush1.bf16.msra.mxu0 0
  %96 = vmatprep.subr.bf16.mxu0 0
  %97 = vmatpush1.bf16.msra.mxu0 0
  %98 = vmatprep.subr.bf16.mxu0 0
  %99 = vmatpush1.bf16.msra.mxu0 0
  %100 = vmatprep.subr.bf16.mxu0 0
  %101 = vmatpush1.bf16.msra.mxu0 0
  %102 = vmatprep.mubr.bf16.mxu0 0
  %103 = vmatmul.mubr.bf16.gmra.mrb[0].mxu0 %v62
  %v104 = vpop.f32.mrb[0].mxu0
  %v105 = vadd.f32 %v31, %v104
  %v106 = vpop.f32.mrb[0].mxu0
  %v107 = vpop.f32.mrb[0].mxu0
  %v108 = vadd.f32 %v32, %v107
  %v109 = vpop.f32.mrb[0].mxu0
  %110 = vmatprep.mubr.bf16.mxu0 0
  %111 = vmatmul.mubr.bf16.gmra.mrb[0].mxu0 %v65
  %v112 = vpop.f32.mrb[0].mxu0
  %v113 = vadd.f32 %v33, %v112
  %v114 = vpop.f32.mrb[0].mxu0
  %v115 = vpop.f32.mrb[0].mxu0
  %v116 = vadd.f32 %v34, %v115
  %v117 = vpop.f32.mrb[0].mxu0
  %118 = vmatprep.mubr.bf16.mxu0 0
  %119 = vmatmul.mubr.bf16.gmra.mrb[0].mxu0 %v68
  %v120 = vpop.f32.mrb[0].mxu0
  %v121 = vadd.f32 %v35, %v120
  %v122 = vpop.f32.mrb[0].mxu0
  %v123 = vpop.f32.mrb[0].mxu0
  %v124 = vpop.f32.mrb[0].mxu0
  %125 = vdwg.mxu0
  %v126 = vld [vmem:[%s2 + $0x22] sm:$0xff]
  %v127 = vld [vmem:[%s2 + $0x2a] sm:$0xff]
  %v128 = vld [vmem:[%s2 + $0x32] sm:$0xff]
  %v129 = vld [vmem:[%s2 + $0x3a] sm:$0xff]
  %v130 = vld [vmem:[%s2 + $0x42] sm:$0x3]
  %v131 = vld [vmem:[%s2 + $0x44] sm:$0x1]
  %v132 = vld [vmem:[%s2 + $0x45] sm:$0x1]
  %vm133 = vcmask 261120
  %v134 = vsel %vm133, %v105, 0.0
  %135 = vadd.xlane.f32.xlu0 %v134
  %v136 = vpop.xlane.xlu0 %135
  %v137 = vsel %vm133, %v108, 0.0
  %138 = vadd.xlane.f32.xlu0 %v137
  %v139 = vpop.xlane.xlu0 %138
  %v140 = vsel %vm133, %v113, 0.0
  %141 = vadd.xlane.f32.xlu0 %v140
  %v142 = vpop.xlane.xlu0 %141
  %v143 = vsel %vm133, %v116, 0.0
  %144 = vadd.xlane.f32.xlu0 %v143
  %v145 = vpop.xlane.xlu0 %144
  %vm146 = vcmask 254976
  %v147 = vsel %vm146, %v121, 0.0
  %148 = vadd.xlane.f32.xlu0 %v147
  %v149 = vpop.xlane.xlu0 %148
  %v150 = vrcp.pop 32.0
  %v151 = vmul.f32 %v136, %v150
  %v152 = vmul.f32 %v139, %v150
  %v153 = vmul.f32 %v142, %v150
  %v154 = vmul.f32 %v145, %v150
  %v155 = vmul.f32 %v149, %v150
  %v156 = vsub.f32 %v105, %v151
  %v157 = vsub.f32 %v108, %v152
  %v158 = vsub.f32 %v113, %v153
  %v159 = vsub.f32 %v116, %v154
  %v160 = vsub.f32 %v121, %v155
  %v161 = vmul.f32 %v156, %v156
  %v162 = vmul.f32 %v157, %v157
  %v163 = vmul.f32 %v158, %v158
  %v164 = vmul.f32 %v159, %v159
  %v165 = vmul.f32 %v160, %v160
  %v166 = vsel %vm133, %v161, 0.0
  %167 = vadd.xlane.f32.xlu0 %v166
  %v168 = vpop.xlane.xlu0 %167
  %v169 = vsel %vm133, %v162, 0.0
  %170 = vadd.xlane.f32.xlu0 %v169
  %v171 = vpop.xlane.xlu0 %170
  %v172 = vsel %vm133, %v163, 0.0
  %173 = vadd.xlane.f32.xlu0 %v172
  %v174 = vpop.xlane.xlu0 %173
  %v175 = vsel %vm133, %v164, 0.0
  %176 = vadd.xlane.f32.xlu0 %v175
  %v177 = vpop.xlane.xlu0 %176
  %v178 = vsel %vm146, %v165, 0.0
  %179 = vadd.xlane.f32.xlu0 %v178
  %v180 = vpop.xlane.xlu0 %179
  %v181 = vmul.f32 %v168, %v150
  %v182 = vmul.f32 %v171, %v150
  %v183 = vmul.f32 %v174, %v150
  %v184 = vmul.f32 %v177, %v150
  %v185 = vmul.f32 %v180, %v150
  %v186 = vadd.f32 %v181, 1e-05
  %v187 = vadd.f32 %v182, 1e-05
  %v188 = vadd.f32 %v183, 1e-05
  %v189 = vadd.f32 %v184, 1e-05
  %v190 = vadd.f32 %v185, 1e-05
  %v191 = vrsqrt.pop %v186
  %v192 = vrsqrt.pop %v187
  %v193 = vrsqrt.pop %v188
  %v194 = vrsqrt.pop %v189
  %v195 = vrsqrt.pop %v190
  %v196 = vmul.f32 %v156, %v191
  %v197 = vmul.f32 %v157, %v192
  %v198 = vmul.f32 %v158, %v193
  %v199 = vmul.f32 %v159, %v194
  %v200 = vmul.f32 %v160, %v195
  %v201 = vlaneseq
  %v202 = vshrl.u32 %v201, 7
  %v203 = vsub.s32 0, %v202
  %v204 = vrot.slane %v131, %v203
  %v205 = vmul.f32 %v196, %v204
  %v206 = vmul.f32 %v197, %v204
  %v207 = vmul.f32 %v198, %v204
  %v208 = vmul.f32 %v199, %v204
  %v209 = vmul.f32 %v200, %v204
  %v210 = vlaneseq
  %v211 = vshrl.u32 %v210, 7
  %v212 = vsub.s32 0, %v211
  %v213 = vrot.slane %v132, %v212
  %v214 = vadd.f32 %v205, %v213
  %v215 = vadd.f32 %v206, %v213
  %v216 = vadd.f32 %v207, %v213
  %v217 = vadd.f32 %v208, %v213
  %v218 = vadd.f32 %v209, %v213
  %v219 = vpack.c.bf16 %v215, %v214
  %v220 = vpack.c.bf16 %v217, %v216
  %v221 = vpack.c.bf16 %v218, %v218
  %v222 = vld [vmem:[%s1 + $0x20] sm:$0xf]
  %v223 = vld [vmem:[%s1 + $0x24] sm:$0xf]
  %v224 = vld [vmem:[%s1 + $0x28] sm:$0xf]
  %v225 = vld [vmem:[%s1 + $0x2c] sm:$0xf]
  %v226 = vld [vmem:[%s2 + $0x46] sm:$0x1]
  %v227 = vlaneseq
  %v228 = vshrl.u32 %v227, 7
  %v229 = vsub.s32 0, %v228
  %v230 = vrot.slane %v226, %v229
  %v235 = vunpack.c.l.b16 %v222
  %v236 = vunpack.c.l.b16 %v223
  %v237 = vunpack.c.l.b16 %v224
  %v238 = vunpack.c.l.b16 %v225
  %v239 = vpack.c.b16 %v236, %v235
  %v240 = vpack.c.b16 %v238, %v237
  %v244 = vsel %vm133, %v219, 0
  %v247 = vsel %vm133, %v220, 0
  %v250 = vsel %vm133, %v221, 0
  %252 = vmatprep.subr.bf16.mxu0 0
  %253 = vmatpush1.bf16.msra.mxu0 %v239
  %254 = vmatprep.subr.bf16.mxu0 0
  %255 = vmatpush1.bf16.msra.mxu0 %v240
  %256 = vmatprep.subr.bf16.mxu0 0
  %257 = vmatpush1.bf16.msra.mxu0 0
  %258 = vmatprep.subr.bf16.mxu0 0
  %259 = vmatpush1.bf16.msra.mxu0 0
  %260 = vmatprep.subr.bf16.mxu0 0
  %261 = vmatpush1.bf16.msra.mxu0 0
  %262 = vmatprep.subr.bf16.mxu0 0
  %263 = vmatpush1.bf16.msra.mxu0 0
  %264 = vmatprep.subr.bf16.mxu0 0
  %265 = vmatpush1.bf16.msra.mxu0 0
  %266 = vmatprep.subr.bf16.mxu0 0
  %267 = vmatpush1.bf16.msra.mxu0 0
  %268 = vmatprep.subr.bf16.mxu0 0
  %269 = vmatpush1.bf16.msra.mxu0 0
  %270 = vmatprep.subr.bf16.mxu0 0
  %271 = vmatpush1.bf16.msra.mxu0 0
  %272 = vmatprep.subr.bf16.mxu0 0
  %273 = vmatpush1.bf16.msra.mxu0 0
  %274 = vmatprep.subr.bf16.mxu0 0
  %275 = vmatpush1.bf16.msra.mxu0 0
  %276 = vmatprep.subr.bf16.mxu0 0
  %277 = vmatpush1.bf16.msra.mxu0 0
  %278 = vmatprep.subr.bf16.mxu0 0
  %279 = vmatpush1.bf16.msra.mxu0 0
  %280 = vmatprep.subr.bf16.mxu0 0
  %281 = vmatpush1.bf16.msra.mxu0 0
  %282 = vmatprep.subr.bf16.mxu0 0
  %283 = vmatpush1.bf16.msra.mxu0 0
  %284 = vmatprep.mubr.bf16.mxu0 0
  %285 = vmatmul.mubr.bf16.gmra.mrb[0].mxu0 %v244
  %v286 = vpop.f32.mrb[0].mxu0
  %v287 = vadd.f32 %v230, %v286
  %v288 = vpop.f32.mrb[0].mxu0
  %v289 = vpop.f32.mrb[0].mxu0
  %v290 = vadd.f32 %v230, %v289
  %v291 = vpop.f32.mrb[0].mxu0
  %292 = vmatprep.mubr.bf16.mxu0 0
  %293 = vmatmul.mubr.bf16.gmra.mrb[0].mxu0 %v247
  %v294 = vpop.f32.mrb[0].mxu0
  %v295 = vadd.f32 %v230, %v294
  %v296 = vpop.f32.mrb[0].mxu0
  %v297 = vpop.f32.mrb[0].mxu0
  %v298 = vadd.f32 %v230, %v297
  %v299 = vpop.f32.mrb[0].mxu0
  %300 = vmatprep.mubr.bf16.mxu0 0
  %301 = vmatmul.mubr.bf16.gmra.mrb[0].mxu0 %v250
  %v302 = vpop.f32.mrb[0].mxu0
  %v303 = vadd.f32 %v230, %v302
  %v304 = vpop.f32.mrb[0].mxu0
  %v305 = vpop.f32.mrb[0].mxu0
  %v306 = vpop.f32.mrb[0].mxu0
  %307 = vdwg.mxu0
  %v308 = vpack.c.bf16 %v290, %v287
  %v309 = vpack.c.bf16 %v298, %v295
  %v310 = vpack.c.bf16 %v303, %v303
  %314 = vrot.lane.b32.xlu0 %v308, 96
  %v315 = vpop.permute.xlu0 %314
  %316 = vrot.lane.b32.xlu0 %v309, 96
  %v317 = vpop.permute.xlu0 %316
  %318 = vrot.lane.b32.xlu0 %v310, 96
  %v319 = vpop.permute.xlu0 %318
  %vm320 = vcmask 64512
  %v322 = vsel %vm320, %v308, 0
  %v325 = vsel %vm320, %v309, 0
  %v328 = vsel %vm320, %v310, 0
  %v331 = vsel %vm320, %v315, 0
  %v334 = vsel %vm320, %v317, 0
  %v337 = vsel %vm320, %v319, 0
  %339 = vmatprep.subr.bf16.mxu0 0
  %340 = vmatpush1.bf16.xpose.msra.mxu0 %v331
  %341 = vmatprep.subr.bf16.mxu0 0
  %342 = vmatpush1.bf16.xpose.msra.mxu0 %v334
  %343 = vmatprep.subr.bf16.mxu0 0
  %344 = vmatpush1.bf16.xpose.msra.mxu0 %v337
  %345 = vmatprep.subr.bf16.mxu0 0
  %346 = vmatpush1.bf16.xpose.msra.mxu0 0
  %347 = vmatprep.subr.bf16.mxu0 0
  %348 = vmatpush1.bf16.xpose.msra.mxu0 0
  %349 = vmatprep.subr.bf16.mxu0 0
  %350 = vmatpush1.bf16.xpose.msra.mxu0 0
  %351 = vmatprep.subr.bf16.mxu0 0
  %352 = vmatpush1.bf16.xpose.msra.mxu0 0
  %353 = vmatprep.subr.bf16.mxu0 0
  %354 = vmatpush1.bf16.xpose.msra.mxu0 0
  %355 = vmatprep.subr.bf16.mxu0 0
  %356 = vmatpush1.bf16.xpose.msra.mxu0 0
  %357 = vmatprep.subr.bf16.mxu0 0
  %358 = vmatpush1.bf16.xpose.msra.mxu0 0
  %359 = vmatprep.subr.bf16.mxu0 0
  %360 = vmatpush1.bf16.xpose.msra.mxu0 0
  %361 = vmatprep.subr.bf16.mxu0 0
  %362 = vmatpush1.bf16.xpose.msra.mxu0 0
  %363 = vmatprep.subr.bf16.mxu0 0
  %364 = vmatpush1.bf16.xpose.msra.mxu0 0
  %365 = vmatprep.subr.bf16.mxu0 0
  %366 = vmatpush1.bf16.xpose.msra.mxu0 0
  %367 = vmatprep.subr.bf16.mxu0 0
  %368 = vmatpush1.bf16.xpose.msra.mxu0 0
  %369 = vmatprep.subr.bf16.mxu0 0
  %370 = vmatpush1.bf16.xpose.msra.mxu0 0
  %371 = vmatprep.mubr.bf16.mxu0 0
  %372 = vmatmul.mubr.bf16.gmra.mrb[0].mxu0 %v322
  %v373 = vpop.f32.mrb[0].mxu0
  %v374 = vadd.f32 %v126, %v373
  %v375 = vpop.f32.mrb[0].mxu0
  %v376 = vpop.f32.mrb[0].mxu0
  %v377 = vadd.f32 %v127, %v376
  %v378 = vpop.f32.mrb[0].mxu0
  %379 = vmatprep.mubr.bf16.mxu0 0
  %380 = vmatmul.mubr.bf16.gmra.mrb[0].mxu0 %v325
  %v381 = vpop.f32.mrb[0].mxu0
  %v382 = vadd.f32 %v128, %v381
  %v383 = vpop.f32.mrb[0].mxu0
  %v384 = vpop.f32.mrb[0].mxu0
  %v385 = vadd.f32 %v129, %v384
  %v386 = vpop.f32.mrb[0].mxu0
  %387 = vmatprep.mubr.bf16.mxu0 0
  %388 = vmatmul.mubr.bf16.gmra.mrb[0].mxu0 %v328
  %v389 = vpop.f32.mrb[0].mxu0
  %v390 = vadd.f32 %v130, %v389
  %v391 = vpop.f32.mrb[0].mxu0
  %v392 = vpop.f32.mrb[0].mxu0
  %v393 = vpop.f32.mrb[0].mxu0
  %394 = vdwg.mxu0
  %vm395 = vcmask 277504
  %v396 = vsel %vm395, %v374, -inf
  %397 = vmax.xlane.f32.xlu0 %v396
  %v398 = vpop.xlane.xlu0 %397
  %v399 = vsel %vm395, %v377, -inf
  %400 = vmax.xlane.f32.xlu0 %v399
  %v401 = vpop.xlane.xlu0 %400
  %v402 = vsel %vm395, %v382, -inf
  %403 = vmax.xlane.f32.xlu0 %v402
  %v404 = vpop.xlane.xlu0 %403
  %v405 = vsel %vm395, %v385, -inf
  %406 = vmax.xlane.f32.xlu0 %v405
  %v407 = vpop.xlane.xlu0 %406
  %vm408 = vcmask 271360
  %v409 = vsel %vm408, %v390, -inf
  %410 = vmax.xlane.f32.xlu0 %v409
  %v411 = vpop.xlane.xlu0 %410
  %v412 = vsub.f32 %v374, %v398
  %v413 = vsub.f32 %v377, %v401
  %v414 = vsub.f32 %v382, %v404
  %v415 = vsub.f32 %v385, %v407
  %v416 = vsub.f32 %v390, %v411
  %v417 = vmul.f32 %v412, 1.442695
  %v418 = vpow.pop %v417
  %v419 = vmul.f32 %v413, 1.442695
  %v420 = vpow.pop %v419
  %v421 = vmul.f32 %v414, 1.442695
  %v422 = vpow.pop %v421
  %v423 = vmul.f32 %v415, 1.442695
  %v424 = vpow.pop %v423
  %v425 = vmul.f32 %v416, 1.442695
  %v426 = vpow.pop %v425
  %v427 = vsel %vm395, %v418, 0.0
  %428 = vadd.xlane.f32.xlu0 %v427
  %v429 = vpop.xlane.xlu0 %428
  %v430 = vsel %vm395, %v420, 0.0
  %431 = vadd.xlane.f32.xlu0 %v430
  %v432 = vpop.xlane.xlu0 %431
  %v433 = vsel %vm395, %v422, 0.0
  %434 = vadd.xlane.f32.xlu0 %v433
  %v435 = vpop.xlane.xlu0 %434
  %v436 = vsel %vm395, %v424, 0.0
  %437 = vadd.xlane.f32.xlu0 %v436
  %v438 = vpop.xlane.xlu0 %437
  %v439 = vsel %vm408, %v426, 0.0
  %440 = vadd.xlane.f32.xlu0 %v439
  %v441 = vpop.xlane.xlu0 %440
  %v442 = vrcp.pop %v429
  %v443 = vrcp.pop %v432
  %v444 = vrcp.pop %v435
  %v445 = vrcp.pop %v438
  %v446 = vrcp.pop %v441
  %v447 = vmul.f32 %v418, %v442
  %v448 = vmul.f32 %v420, %v443
  %v449 = vmul.f32 %v422, %v444
  %v450 = vmul.f32 %v424, %v445
  %v451 = vmul.f32 %v426, %v446
  %v452 = vpack.c.bf16 %v448, %v447
  %v453 = vpack.c.bf16 %v450, %v449
  %v454 = vpack.c.bf16 %v451, %v451
  %455 = vrot.lane.b32.xlu0 %v308, 64
  %v456 = vpop.permute.xlu0 %455
  %457 = vrot.lane.b32.xlu0 %v309, 64
  %v458 = vpop.permute.xlu0 %457
  %459 = vrot.lane.b32.xlu0 %v310, 64
  %v460 = vpop.permute.xlu0 %459
  %v464 = vsel %vm395, %v452, 0
  %v467 = vsel %vm395, %v453, 0
  %v470 = vsel %vm395, %v454, 0
  %vm472 = vcmask 1040384
  %v474 = vsel %vm472, %v460, 0
  %476 = vmatprep.subr.bf16.mxu0 0
  %477 = vmatpush1.bf16.msra.mxu0 %v456
  %478 = vmatprep.subr.bf16.mxu0 0
  %479 = vmatpush1.bf16.msra.mxu0 %v458
  %480 = vmatprep.subr.bf16.mxu0 0
  %481 = vmatpush1.bf16.msra.mxu0 %v474
  %482 = vmatprep.subr.bf16.mxu0 0
  %483 = vmatpush1.bf16.msra.mxu0 0
  %484 = vmatprep.subr.bf16.mxu0 0
  %485 = vmatpush1.bf16.msra.mxu0 0
  %486 = vmatprep.subr.bf16.mxu0 0
  %487 = vmatpush1.bf16.msra.mxu0 0
  %488 = vmatprep.subr.bf16.mxu0 0
  %489 = vmatpush1.bf16.msra.mxu0 0
  %490 = vmatprep.subr.bf16.mxu0 0
  %491 = vmatpush1.bf16.msra.mxu0 0
  %492 = vmatprep.subr.bf16.mxu0 0
  %493 = vmatpush1.bf16.msra.mxu0 0
  %494 = vmatprep.subr.bf16.mxu0 0
  %495 = vmatpush1.bf16.msra.mxu0 0
  %496 = vmatprep.subr.bf16.mxu0 0
  %497 = vmatpush1.bf16.msra.mxu0 0
  %498 = vmatprep.subr.bf16.mxu0 0
  %499 = vmatpush1.bf16.msra.mxu0 0
  %500 = vmatprep.subr.bf16.mxu0 0
  %501 = vmatpush1.bf16.msra.mxu0 0
  %502 = vmatprep.subr.bf16.mxu0 0
  %503 = vmatpush1.bf16.msra.mxu0 0
  %504 = vmatprep.subr.bf16.mxu0 0
  %505 = vmatpush1.bf16.msra.mxu0 0
  %506 = vmatprep.subr.bf16.mxu0 0
  %507 = vmatpush1.bf16.msra.mxu0 0
  %508 = vmatprep.mubr.bf16.mxu0 0
  %509 = vmatmul.mubr.bf16.gmra.mrb[0].mxu0 %v464
  %v510 = vpop.f32.mrb[0].mxu0
  %v511 = vadd.f32 0.0, %v510
  %v512 = vpop.f32.mrb[0].mxu0
  %v513 = vpop.f32.mrb[0].mxu0
  %v514 = vadd.f32 0.0, %v513
  %v515 = vpop.f32.mrb[0].mxu0
  %516 = vmatprep.mubr.bf16.mxu0 0
  %517 = vmatmul.mubr.bf16.gmra.mrb[0].mxu0 %v467
  %v518 = vpop.f32.mrb[0].mxu0
  %v519 = vadd.f32 0.0, %v518
  %v520 = vpop.f32.mrb[0].mxu0
  %v521 = vpop.f32.mrb[0].mxu0
  %v522 = vadd.f32 0.0, %v521
  %v523 = vpop.f32.mrb[0].mxu0
  %524 = vmatprep.mubr.bf16.mxu0 0
  %525 = vmatmul.mubr.bf16.gmra.mrb[0].mxu0 %v470
  %v526 = vpop.f32.mrb[0].mxu0
  %v527 = vadd.f32 0.0, %v526
  %v528 = vpop.f32.mrb[0].mxu0
  %v529 = vpop.f32.mrb[0].mxu0
  %v530 = vpop.f32.mrb[0].mxu0
  %531 = vdwg.mxu0
  %532 = vrot.lane.b32.xlu0 %v308, 120
  %v533 = vpop.permute.xlu0 %532
  %534 = vrot.lane.b32.xlu0 %v309, 120
  %v535 = vpop.permute.xlu0 %534
  %536 = vrot.lane.b32.xlu0 %v310, 120
  %v537 = vpop.permute.xlu0 %536
  %538 = vrot.lane.b32.xlu0 %v308, 88
  %v539 = vpop.permute.xlu0 %538
  %540 = vrot.lane.b32.xlu0 %v309, 88
  %v541 = vpop.permute.xlu0 %540
  %542 = vrot.lane.b32.xlu0 %v310, 88
  %v543 = vpop.permute.xlu0 %542
  %v545 = vsel %vm320, %v533, 0
  %v548 = vsel %vm320, %v535, 0
  %v551 = vsel %vm320, %v537, 0
  %v554 = vsel %vm320, %v539, 0
  %v557 = vsel %vm320, %v541, 0
  %v560 = vsel %vm320, %v543, 0
  %562 = vmatprep.subr.bf16.mxu0 0
  %563 = vmatpush1.bf16.xpose.msra.mxu0 %v554
  %564 = vmatprep.subr.bf16.mxu0 0
  %565 = vmatpush1.bf16.xpose.msra.mxu0 %v557
  %566 = vmatprep.subr.bf16.mxu0 0
  %567 = vmatpush1.bf16.xpose.msra.mxu0 %v560
  %568 = vmatprep.subr.bf16.mxu0 0
  %569 = vmatpush1.bf16.xpose.msra.mxu0 0
  %570 = vmatprep.subr.bf16.mxu0 0
  %571 = vmatpush1.bf16.xpose.msra.mxu0 0
  %572 = vmatprep.subr.bf16.mxu0 0
  %573 = vmatpush1.bf16.xpose.msra.mxu0 0
  %574 = vmatprep.subr.bf16.mxu0 0
  %575 = vmatpush1.bf16.xpose.msra.mxu0 0
  %576 = vmatprep.subr.bf16.mxu0 0
  %577 = vmatpush1.bf16.xpose.msra.mxu0 0
  %578 = vmatprep.subr.bf16.mxu0 0
  %579 = vmatpush1.bf16.xpose.msra.mxu0 0
  %580 = vmatprep.subr.bf16.mxu0 0
  %581 = vmatpush1.bf16.xpose.msra.mxu0 0
  %582 = vmatprep.subr.bf16.mxu0 0
  %583 = vmatpush1.bf16.xpose.msra.mxu0 0
  %584 = vmatprep.subr.bf16.mxu0 0
  %585 = vmatpush1.bf16.xpose.msra.mxu0 0
  %586 = vmatprep.subr.bf16.mxu0 0
  %587 = vmatpush1.bf16.xpose.msra.mxu0 0
  %588 = vmatprep.subr.bf16.mxu0 0
  %589 = vmatpush1.bf16.xpose.msra.mxu0 0
  %590 = vmatprep.subr.bf16.mxu0 0
  %591 = vmatpush1.bf16.xpose.msra.mxu0 0
  %592 = vmatprep.subr.bf16.mxu0 0
  %593 = vmatpush1.bf16.xpose.msra.mxu0 0
  %594 = vmatprep.mubr.bf16.mxu0 0
  %595 = vmatmul.mubr.bf16.gmra.mrb[0].mxu0 %v545
  %v596 = vpop.f32.mrb[0].mxu0
  %v597 = vadd.f32 %v126, %v596
  %v598 = vpop.f32.mrb[0].mxu0
  %v599 = vpop.f32.mrb[0].mxu0
  %v600 = vadd.f32 %v127, %v599
  %v601 = vpop.f32.mrb[0].mxu0
  %602 = vmatprep.mubr.bf16.mxu0 0
  %603 = vmatmul.mubr.bf16.gmra.mrb[0].mxu0 %v548
  %v604 = vpop.f32.mrb[0].mxu0
  %v605 = vadd.f32 %v128, %v604
  %v606 = vpop.f32.mrb[0].mxu0
  %v607 = vpop.f32.mrb[0].mxu0
  %v608 = vadd.f32 %v129, %v607
  %v609 = vpop.f32.mrb[0].mxu0
  %610 = vmatprep.mubr.bf16.mxu0 0
  %611 = vmatmul.mubr.bf16.gmra.mrb[0].mxu0 %v551
  %v612 = vpop.f32.mrb[0].mxu0
  %v613 = vadd.f32 %v130, %v612
  %v614 = vpop.f32.mrb[0].mxu0
  %v615 = vpop.f32.mrb[0].mxu0
  %v616 = vpop.f32.mrb[0].mxu0
  %617 = vdwg.mxu0
  %v618 = vsel %vm395, %v597, -inf
  %619 = vmax.xlane.f32.xlu0 %v618
  %v620 = vpop.xlane.xlu0 %619
  %v621 = vsel %vm395, %v600, -inf
  %622 = vmax.xlane.f32.xlu0 %v621
  %v623 = vpop.xlane.xlu0 %622
  %v624 = vsel %vm395, %v605, -inf
  %625 = vmax.xlane.f32.xlu0 %v624
  %v626 = vpop.xlane.xlu0 %625
  %v627 = vsel %vm395, %v608, -inf
  %628 = vmax.xlane.f32.xlu0 %v627
  %v629 = vpop.xlane.xlu0 %628
  %v630 = vsel %vm408, %v613, -inf
  %631 = vmax.xlane.f32.xlu0 %v630
  %v632 = vpop.xlane.xlu0 %631
  %v633 = vsub.f32 %v597, %v620
  %v634 = vsub.f32 %v600, %v623
  %v635 = vsub.f32 %v605, %v626
  %v636 = vsub.f32 %v608, %v629
  %v637 = vsub.f32 %v613, %v632
  %v638 = vmul.f32 %v633, 1.442695
  %v639 = vpow.pop %v638
  %v640 = vmul.f32 %v634, 1.442695
  %v641 = vpow.pop %v640
  %v642 = vmul.f32 %v635, 1.442695
  %v643 = vpow.pop %v642
  %v644 = vmul.f32 %v636, 1.442695
  %v645 = vpow.pop %v644
  %v646 = vmul.f32 %v637, 1.442695
  %v647 = vpow.pop %v646
  %v648 = vsel %vm395, %v639, 0.0
  %649 = vadd.xlane.f32.xlu0 %v648
  %v650 = vpop.xlane.xlu0 %649
  %v651 = vsel %vm395, %v641, 0.0
  %652 = vadd.xlane.f32.xlu0 %v651
  %v653 = vpop.xlane.xlu0 %652
  %v654 = vsel %vm395, %v643, 0.0
  %655 = vadd.xlane.f32.xlu0 %v654
  %v656 = vpop.xlane.xlu0 %655
  %v657 = vsel %vm395, %v645, 0.0
  %658 = vadd.xlane.f32.xlu0 %v657
  %v659 = vpop.xlane.xlu0 %658
  %v660 = vsel %vm408, %v647, 0.0
  %661 = vadd.xlane.f32.xlu0 %v660
  %v662 = vpop.xlane.xlu0 %661
  %v663 = vrcp.pop %v650
  %v664 = vrcp.pop %v653
  %v665 = vrcp.pop %v656
  %v666 = vrcp.pop %v659
  %v667 = vrcp.pop %v662
  %v668 = vmul.f32 %v639, %v663
  %v669 = vmul.f32 %v641, %v664
  %v670 = vmul.f32 %v643, %v665
  %v671 = vmul.f32 %v645, %v666
  %v672 = vmul.f32 %v647, %v667
  %v673 = vpack.c.bf16 %v669, %v668
  %v674 = vpack.c.bf16 %v671, %v670
  %v675 = vpack.c.bf16 %v672, %v672
  %676 = vrot.lane.b32.xlu0 %v308, 56
  %v677 = vpop.permute.xlu0 %676
  %678 = vrot.lane.b32.xlu0 %v309, 56
  %v679 = vpop.permute.xlu0 %678
  %680 = vrot.lane.b32.xlu0 %v310, 56
  %v681 = vpop.permute.xlu0 %680
  %v685 = vsel %vm395, %v673, 0
  %v688 = vsel %vm395, %v674, 0
  %v691 = vsel %vm395, %v675, 0
  %v694 = vsel %vm472, %v681, 0
  %696 = vmatprep.subr.bf16.mxu0 0
  %697 = vmatpush1.bf16.msra.mxu0 %v677
  %698 = vmatprep.subr.bf16.mxu0 0
  %699 = vmatpush1.bf16.msra.mxu0 %v679
  %700 = vmatprep.subr.bf16.mxu0 0
  %701 = vmatpush1.bf16.msra.mxu0 %v694
  %702 = vmatprep.subr.bf16.mxu0 0
  %703 = vmatpush1.bf16.msra.mxu0 0
  %704 = vmatprep.subr.bf16.mxu0 0
  %705 = vmatpush1.bf16.msra.mxu0 0
  %706 = vmatprep.subr.bf16.mxu0 0
  %707 = vmatpush1.bf16.msra.mxu0 0
  %708 = vmatprep.subr.bf16.mxu0 0
  %709 = vmatpush1.bf16.msra.mxu0 0
  %710 = vmatprep.subr.bf16.mxu0 0
  %711 = vmatpush1.bf16.msra.mxu0 0
  %712 = vmatprep.subr.bf16.mxu0 0
  %713 = vmatpush1.bf16.msra.mxu0 0
  %714 = vmatprep.subr.bf16.mxu0 0
  %715 = vmatpush1.bf16.msra.mxu0 0
  %716 = vmatprep.subr.bf16.mxu0 0
  %717 = vmatpush1.bf16.msra.mxu0 0
  %718 = vmatprep.subr.bf16.mxu0 0
  %719 = vmatpush1.bf16.msra.mxu0 0
  %720 = vmatprep.subr.bf16.mxu0 0
  %721 = vmatpush1.bf16.msra.mxu0 0
  %722 = vmatprep.subr.bf16.mxu0 0
  %723 = vmatpush1.bf16.msra.mxu0 0
  %724 = vmatprep.subr.bf16.mxu0 0
  %725 = vmatpush1.bf16.msra.mxu0 0
  %726 = vmatprep.subr.bf16.mxu0 0
  %727 = vmatpush1.bf16.msra.mxu0 0
  %728 = vmatprep.mubr.bf16.mxu0 0
  %729 = vmatmul.mubr.bf16.gmra.mrb[0].mxu0 %v685
  %v730 = vpop.f32.mrb[0].mxu0
  %v731 = vadd.f32 0.0, %v730
  %v732 = vpop.f32.mrb[0].mxu0
  %v733 = vpop.f32.mrb[0].mxu0
  %v734 = vadd.f32 0.0, %v733
  %v735 = vpop.f32.mrb[0].mxu0
  %736 = vmatprep.mubr.bf16.mxu0 0
  %737 = vmatmul.mubr.bf16.gmra.mrb[0].mxu0 %v688
  %v738 = vpop.f32.mrb[0].mxu0
  %v739 = vadd.f32 0.0, %v738
  %v740 = vpop.f32.mrb[0].mxu0
  %v741 = vpop.f32.mrb[0].mxu0
  %v742 = vadd.f32 0.0, %v741
  %v743 = vpop.f32.mrb[0].mxu0
  %744 = vmatprep.mubr.bf16.mxu0 0
  %745 = vmatmul.mubr.bf16.gmra.mrb[0].mxu0 %v691
  %v746 = vpop.f32.mrb[0].mxu0
  %v747 = vadd.f32 0.0, %v746
  %v748 = vpop.f32.mrb[0].mxu0
  %v749 = vpop.f32.mrb[0].mxu0
  %v750 = vpop.f32.mrb[0].mxu0
  %751 = vdwg.mxu0
  %752 = vrot.lane.b32.xlu0 %v308, 112
  %v753 = vpop.permute.xlu0 %752
  %754 = vrot.lane.b32.xlu0 %v309, 112
  %v755 = vpop.permute.xlu0 %754
  %756 = vrot.lane.b32.xlu0 %v310, 112
  %v757 = vpop.permute.xlu0 %756
  %758 = vrot.lane.b32.xlu0 %v308, 80
  %v759 = vpop.permute.xlu0 %758
  %760 = vrot.lane.b32.xlu0 %v309, 80
  %v761 = vpop.permute.xlu0 %760
  %762 = vrot.lane.b32.xlu0 %v310, 80
  %v763 = vpop.permute.xlu0 %762
  %v765 = vsel %vm320, %v753, 0
  %v768 = vsel %vm320, %v755, 0
  %v771 = vsel %vm320, %v757, 0
  %v774 = vsel %vm320, %v759, 0
  %v777 = vsel %vm320, %v761, 0
  %v780 = vsel %vm320, %v763, 0
  %782 = vmatprep.subr.bf16.mxu0 0
  %783 = vmatpush1.bf16.xpose.msra.mxu0 %v774
  %784 = vmatprep.subr.bf16.mxu0 0
  %785 = vmatpush1.bf16.xpose.msra.mxu0 %v777
  %786 = vmatprep.subr.bf16.mxu0 0
  %787 = vmatpush1.bf16.xpose.msra.mxu0 %v780
  %788 = vmatprep.subr.bf16.mxu0 0
  %789 = vmatpush1.bf16.xpose.msra.mxu0 0
  %790 = vmatprep.subr.bf16.mxu0 0
  %791 = vmatpush1.bf16.xpose.msra.mxu0 0
  %792 = vmatprep.subr.bf16.mxu0 0
  %793 = vmatpush1.bf16.xpose.msra.mxu0 0
  %794 = vmatprep.subr.bf16.mxu0 0
  %795 = vmatpush1.bf16.xpose.msra.mxu0 0
  %796 = vmatprep.subr.bf16.mxu0 0
  %797 = vmatpush1.bf16.xpose.msra.mxu0 0
  %798 = vmatprep.subr.bf16.mxu0 0
  %799 = vmatpush1.bf16.xpose.msra.mxu0 0
  %800 = vmatprep.subr.bf16.mxu0 0
  %801 = vmatpush1.bf16.xpose.msra.mxu0 0
  %802 = vmatprep.subr.bf16.mxu0 0
  %803 = vmatpush1.bf16.xpose.msra.mxu0 0
  %804 = vmatprep.subr.bf16.mxu0 0
  %805 = vmatpush1.bf16.xpose.msra.mxu0 0
  %806 = vmatprep.subr.bf16.mxu0 0
  %807 = vmatpush1.bf16.xpose.msra.mxu0 0
  %808 = vmatprep.subr.bf16.mxu0 0
  %809 = vmatpush1.bf16.xpose.msra.mxu0 0
  %810 = vmatprep.subr.bf16.mxu0 0
  %811 = vmatpush1.bf16.xpose.msra.mxu0 0
  %812 = vmatprep.subr.bf16.mxu0 0
  %813 = vmatpush1.bf16.xpose.msra.mxu0 0
  %814 = vmatprep.mubr.bf16.mxu0 0
  %815 = vmatmul.mubr.bf16.gmra.mrb[0].mxu0 %v765
  %v816 = vpop.f32.mrb[0].mxu0
  %v817 = vadd.f32 %v126, %v816
  %v818 = vpop.f32.mrb[0].mxu0
  %v819 = vpop.f32.mrb[0].mxu0
  %v820 = vadd.f32 %v127, %v819
  %v821 = vpop.f32.mrb[0].mxu0
  %822 = vmatprep.mubr.bf16.mxu0 0
  %823 = vmatmul.mubr.bf16.gmra.mrb[0].mxu0 %v768
  %v824 = vpop.f32.mrb[0].mxu0
  %v825 = vadd.f32 %v128, %v824
  %v826 = vpop.f32.mrb[0].mxu0
  %v827 = vpop.f32.mrb[0].mxu0
  %v828 = vadd.f32 %v129, %v827
  %v829 = vpop.f32.mrb[0].mxu0
  %830 = vmatprep.mubr.bf16.mxu0 0
  %831 = vmatmul.mubr.bf16.gmra.mrb[0].mxu0 %v771
  %v832 = vpop.f32.mrb[0].mxu0
  %v833 = vadd.f32 %v130, %v832
  %v834 = vpop.f32.mrb[0].mxu0
  %v835 = vpop.f32.mrb[0].mxu0
  %v836 = vpop.f32.mrb[0].mxu0
  %837 = vdwg.mxu0
  %v838 = vsel %vm395, %v817, -inf
  %839 = vmax.xlane.f32.xlu0 %v838
  %v840 = vpop.xlane.xlu0 %839
  %v841 = vsel %vm395, %v820, -inf
  %842 = vmax.xlane.f32.xlu0 %v841
  %v843 = vpop.xlane.xlu0 %842
  %v844 = vsel %vm395, %v825, -inf
  %845 = vmax.xlane.f32.xlu0 %v844
  %v846 = vpop.xlane.xlu0 %845
  %v847 = vsel %vm395, %v828, -inf
  %848 = vmax.xlane.f32.xlu0 %v847
  %v849 = vpop.xlane.xlu0 %848
  %v850 = vsel %vm408, %v833, -inf
  %851 = vmax.xlane.f32.xlu0 %v850
  %v852 = vpop.xlane.xlu0 %851
  %v853 = vsub.f32 %v817, %v840
  %v854 = vsub.f32 %v820, %v843
  %v855 = vsub.f32 %v825, %v846
  %v856 = vsub.f32 %v828, %v849
  %v857 = vsub.f32 %v833, %v852
  %v858 = vmul.f32 %v853, 1.442695
  %v859 = vpow.pop %v858
  %v860 = vmul.f32 %v854, 1.442695
  %v861 = vpow.pop %v860
  %v862 = vmul.f32 %v855, 1.442695
  %v863 = vpow.pop %v862
  %v864 = vmul.f32 %v856, 1.442695
  %v865 = vpow.pop %v864
  %v866 = vmul.f32 %v857, 1.442695
  %v867 = vpow.pop %v866
  %v868 = vsel %vm395, %v859, 0.0
  %869 = vadd.xlane.f32.xlu0 %v868
  %v870 = vpop.xlane.xlu0 %869
  %v871 = vsel %vm395, %v861, 0.0
  %872 = vadd.xlane.f32.xlu0 %v871
  %v873 = vpop.xlane.xlu0 %872
  %v874 = vsel %vm395, %v863, 0.0
  %875 = vadd.xlane.f32.xlu0 %v874
  %v876 = vpop.xlane.xlu0 %875
  %v877 = vsel %vm395, %v865, 0.0
  %878 = vadd.xlane.f32.xlu0 %v877
  %v879 = vpop.xlane.xlu0 %878
  %v880 = vsel %vm408, %v867, 0.0
  %881 = vadd.xlane.f32.xlu0 %v880
  %v882 = vpop.xlane.xlu0 %881
  %v883 = vrcp.pop %v870
  %v884 = vrcp.pop %v873
  %v885 = vrcp.pop %v876
  %v886 = vrcp.pop %v879
  %v887 = vrcp.pop %v882
  %v888 = vmul.f32 %v859, %v883
  %v889 = vmul.f32 %v861, %v884
  %v890 = vmul.f32 %v863, %v885
  %v891 = vmul.f32 %v865, %v886
  %v892 = vmul.f32 %v867, %v887
  %v893 = vpack.c.bf16 %v889, %v888
  %v894 = vpack.c.bf16 %v891, %v890
  %v895 = vpack.c.bf16 %v892, %v892
  %896 = vrot.lane.b32.xlu0 %v308, 48
  %v897 = vpop.permute.xlu0 %896
  %898 = vrot.lane.b32.xlu0 %v309, 48
  %v899 = vpop.permute.xlu0 %898
  %900 = vrot.lane.b32.xlu0 %v310, 48
  %v901 = vpop.permute.xlu0 %900
  %v905 = vsel %vm395, %v893, 0
  %v908 = vsel %vm395, %v894, 0
  %v911 = vsel %vm395, %v895, 0
  %v914 = vsel %vm472, %v901, 0
  %916 = vmatprep.subr.bf16.mxu0 0
  %917 = vmatpush1.bf16.msra.mxu0 %v897
  %918 = vmatprep.subr.bf16.mxu0 0
  %919 = vmatpush1.bf16.msra.mxu0 %v899
  %920 = vmatprep.subr.bf16.mxu0 0
  %921 = vmatpush1.bf16.msra.mxu0 %v914
  %922 = vmatprep.subr.bf16.mxu0 0
  %923 = vmatpush1.bf16.msra.mxu0 0
  %924 = vmatprep.subr.bf16.mxu0 0
  %925 = vmatpush1.bf16.msra.mxu0 0
  %926 = vmatprep.subr.bf16.mxu0 0
  %927 = vmatpush1.bf16.msra.mxu0 0
  %928 = vmatprep.subr.bf16.mxu0 0
  %929 = vmatpush1.bf16.msra.mxu0 0
  %930 = vmatprep.subr.bf16.mxu0 0
  %931 = vmatpush1.bf16.msra.mxu0 0
  %932 = vmatprep.subr.bf16.mxu0 0
  %933 = vmatpush1.bf16.msra.mxu0 0
  %934 = vmatprep.subr.bf16.mxu0 0
  %935 = vmatpush1.bf16.msra.mxu0 0
  %936 = vmatprep.subr.bf16.mxu0 0
  %937 = vmatpush1.bf16.msra.mxu0 0
  %938 = vmatprep.subr.bf16.mxu0 0
  %939 = vmatpush1.bf16.msra.mxu0 0
  %940 = vmatprep.subr.bf16.mxu0 0
  %941 = vmatpush1.bf16.msra.mxu0 0
  %942 = vmatprep.subr.bf16.mxu0 0
  %943 = vmatpush1.bf16.msra.mxu0 0
  %944 = vmatprep.subr.bf16.mxu0 0
  %945 = vmatpush1.bf16.msra.mxu0 0
  %946 = vmatprep.subr.bf16.mxu0 0
  %947 = vmatpush1.bf16.msra.mxu0 0
  %948 = vmatprep.mubr.bf16.mxu0 0
  %949 = vmatmul.mubr.bf16.gmra.mrb[0].mxu0 %v905
  %v950 = vpop.f32.mrb[0].mxu0
  %v951 = vadd.f32 0.0, %v950
  %v952 = vpop.f32.mrb[0].mxu0
  %v953 = vpop.f32.mrb[0].mxu0
  %v954 = vadd.f32 0.0, %v953
  %v955 = vpop.f32.mrb[0].mxu0
  %956 = vmatprep.mubr.bf16.mxu0 0
  %957 = vmatmul.mubr.bf16.gmra.mrb[0].mxu0 %v908
  %v958 = vpop.f32.mrb[0].mxu0
  %v959 = vadd.f32 0.0, %v958
  %v960 = vpop.f32.mrb[0].mxu0
  %v961 = vpop.f32.mrb[0].mxu0
  %v962 = vadd.f32 0.0, %v961
  %v963 = vpop.f32.mrb[0].mxu0
  %964 = vmatprep.mubr.bf16.mxu0 0
  %965 = vmatmul.mubr.bf16.gmra.mrb[0].mxu0 %v911
  %v966 = vpop.f32.mrb[0].mxu0
  %v967 = vadd.f32 0.0, %v966
  %v968 = vpop.f32.mrb[0].mxu0
  %v969 = vpop.f32.mrb[0].mxu0
  %v970 = vpop.f32.mrb[0].mxu0
  %971 = vdwg.mxu0
  %972 = vrot.lane.b32.xlu0 %v308, 104
  %v973 = vpop.permute.xlu0 %972
  %974 = vrot.lane.b32.xlu0 %v309, 104
  %v975 = vpop.permute.xlu0 %974
  %976 = vrot.lane.b32.xlu0 %v310, 104
  %v977 = vpop.permute.xlu0 %976
  %978 = vrot.lane.b32.xlu0 %v308, 72
  %v979 = vpop.permute.xlu0 %978
  %980 = vrot.lane.b32.xlu0 %v309, 72
  %v981 = vpop.permute.xlu0 %980
  %982 = vrot.lane.b32.xlu0 %v310, 72
  %v983 = vpop.permute.xlu0 %982
  %v985 = vsel %vm320, %v973, 0
  %v988 = vsel %vm320, %v975, 0
  %v991 = vsel %vm320, %v977, 0
  %v994 = vsel %vm320, %v979, 0
  %v997 = vsel %vm320, %v981, 0
  %v1000 = vsel %vm320, %v983, 0
  %1002 = vmatprep.subr.bf16.mxu0 0
  %1003 = vmatpush1.bf16.xpose.msra.mxu0 %v994
  %1004 = vmatprep.subr.bf16.mxu0 0
  %1005 = vmatpush1.bf16.xpose.msra.mxu0 %v997
  %1006 = vmatprep.subr.bf16.mxu0 0
  %1007 = vmatpush1.bf16.xpose.msra.mxu0 %v1000
  %1008 = vmatprep.subr.bf16.mxu0 0
  %1009 = vmatpush1.bf16.xpose.msra.mxu0 0
  %1010 = vmatprep.subr.bf16.mxu0 0
  %1011 = vmatpush1.bf16.xpose.msra.mxu0 0
  %1012 = vmatprep.subr.bf16.mxu0 0
  %1013 = vmatpush1.bf16.xpose.msra.mxu0 0
  %1014 = vmatprep.subr.bf16.mxu0 0
  %1015 = vmatpush1.bf16.xpose.msra.mxu0 0
  %1016 = vmatprep.subr.bf16.mxu0 0
  %1017 = vmatpush1.bf16.xpose.msra.mxu0 0
  %1018 = vmatprep.subr.bf16.mxu0 0
  %1019 = vmatpush1.bf16.xpose.msra.mxu0 0
  %1020 = vmatprep.subr.bf16.mxu0 0
  %1021 = vmatpush1.bf16.xpose.msra.mxu0 0
  %1022 = vmatprep.subr.bf16.mxu0 0
  %1023 = vmatpush1.bf16.xpose.msra.mxu0 0
  %1024 = vmatprep.subr.bf16.mxu0 0
  %1025 = vmatpush1.bf16.xpose.msra.mxu0 0
  %1026 = vmatprep.subr.bf16.mxu0 0
  %1027 = vmatpush1.bf16.xpose.msra.mxu0 0
  %1028 = vmatprep.subr.bf16.mxu0 0
  %1029 = vmatpush1.bf16.xpose.msra.mxu0 0
  %1030 = vmatprep.subr.bf16.mxu0 0
  %1031 = vmatpush1.bf16.xpose.msra.mxu0 0
  %1032 = vmatprep.subr.bf16.mxu0 0
  %1033 = vmatpush1.bf16.xpose.msra.mxu0 0
  %1034 = vmatprep.mubr.bf16.mxu0 0
  %1035 = vmatmul.mubr.bf16.gmra.mrb[0].mxu0 %v985
  %v1036 = vpop.f32.mrb[0].mxu0
  %v1037 = vadd.f32 %v126, %v1036
  %v1038 = vpop.f32.mrb[0].mxu0
  %v1039 = vpop.f32.mrb[0].mxu0
  %v1040 = vadd.f32 %v127, %v1039
  %v1041 = vpop.f32.mrb[0].mxu0
  %1042 = vmatprep.mubr.bf16.mxu0 0
  %1043 = vmatmul.mubr.bf16.gmra.mrb[0].mxu0 %v988
  %v1044 = vpop.f32.mrb[0].mxu0
  %v1045 = vadd.f32 %v128, %v1044
  %v1046 = vpop.f32.mrb[0].mxu0
  %v1047 = vpop.f32.mrb[0].mxu0
  %v1048 = vadd.f32 %v129, %v1047
  %v1049 = vpop.f32.mrb[0].mxu0
  %1050 = vmatprep.mubr.bf16.mxu0 0
  %1051 = vmatmul.mubr.bf16.gmra.mrb[0].mxu0 %v991
  %v1052 = vpop.f32.mrb[0].mxu0
  %v1053 = vadd.f32 %v130, %v1052
  %v1054 = vpop.f32.mrb[0].mxu0
  %v1055 = vpop.f32.mrb[0].mxu0
  %v1056 = vpop.f32.mrb[0].mxu0
  %1057 = vdwg.mxu0
  %v1058 = vsel %vm395, %v1037, -inf
  %1059 = vmax.xlane.f32.xlu0 %v1058
  %v1060 = vpop.xlane.xlu0 %1059
  %v1061 = vsel %vm395, %v1040, -inf
  %1062 = vmax.xlane.f32.xlu0 %v1061
  %v1063 = vpop.xlane.xlu0 %1062
  %v1064 = vsel %vm395, %v1045, -inf
  %1065 = vmax.xlane.f32.xlu0 %v1064
  %v1066 = vpop.xlane.xlu0 %1065
  %v1067 = vsel %vm395, %v1048, -inf
  %1068 = vmax.xlane.f32.xlu0 %v1067
  %v1069 = vpop.xlane.xlu0 %1068
  %v1070 = vsel %vm408, %v1053, -inf
  %1071 = vmax.xlane.f32.xlu0 %v1070
  %v1072 = vpop.xlane.xlu0 %1071
  %v1073 = vsub.f32 %v1037, %v1060
  %v1074 = vsub.f32 %v1040, %v1063
  %v1075 = vsub.f32 %v1045, %v1066
  %v1076 = vsub.f32 %v1048, %v1069
  %v1077 = vsub.f32 %v1053, %v1072
  %v1078 = vmul.f32 %v1073, 1.442695
  %v1079 = vpow.pop %v1078
  %v1080 = vmul.f32 %v1074, 1.442695
  %v1081 = vpow.pop %v1080
  %v1082 = vmul.f32 %v1075, 1.442695
  %v1083 = vpow.pop %v1082
  %v1084 = vmul.f32 %v1076, 1.442695
  %v1085 = vpow.pop %v1084
  %v1086 = vmul.f32 %v1077, 1.442695
  %v1087 = vpow.pop %v1086
  %v1088 = vsel %vm395, %v1079, 0.0
  %1089 = vadd.xlane.f32.xlu0 %v1088
  %v1090 = vpop.xlane.xlu0 %1089
  %v1091 = vsel %vm395, %v1081, 0.0
  %1092 = vadd.xlane.f32.xlu0 %v1091
  %v1093 = vpop.xlane.xlu0 %1092
  %v1094 = vsel %vm395, %v1083, 0.0
  %1095 = vadd.xlane.f32.xlu0 %v1094
  %v1096 = vpop.xlane.xlu0 %1095
  %v1097 = vsel %vm395, %v1085, 0.0
  %1098 = vadd.xlane.f32.xlu0 %v1097
  %v1099 = vpop.xlane.xlu0 %1098
  %v1100 = vsel %vm408, %v1087, 0.0
  %1101 = vadd.xlane.f32.xlu0 %v1100
  %v1102 = vpop.xlane.xlu0 %1101
  %v1103 = vrcp.pop %v1090
  %v1104 = vrcp.pop %v1093
  %v1105 = vrcp.pop %v1096
  %v1106 = vrcp.pop %v1099
  %v1107 = vrcp.pop %v1102
  %v1108 = vmul.f32 %v1079, %v1103
  %v1109 = vmul.f32 %v1081, %v1104
  %v1110 = vmul.f32 %v1083, %v1105
  %v1111 = vmul.f32 %v1085, %v1106
  %v1112 = vmul.f32 %v1087, %v1107
  %v1113 = vpack.c.bf16 %v1109, %v1108
  %v1114 = vpack.c.bf16 %v1111, %v1110
  %v1115 = vpack.c.bf16 %v1112, %v1112
  %1116 = vrot.lane.b32.xlu0 %v308, 40
  %v1117 = vpop.permute.xlu0 %1116
  %1118 = vrot.lane.b32.xlu0 %v309, 40
  %v1119 = vpop.permute.xlu0 %1118
  %1120 = vrot.lane.b32.xlu0 %v310, 40
  %v1121 = vpop.permute.xlu0 %1120
  %v1125 = vsel %vm395, %v1113, 0
  %v1128 = vsel %vm395, %v1114, 0
  %v1131 = vsel %vm395, %v1115, 0
  %v1134 = vsel %vm472, %v1121, 0
  %1136 = vmatprep.subr.bf16.mxu0 0
  %1137 = vmatpush1.bf16.msra.mxu0 %v1117
  %1138 = vmatprep.subr.bf16.mxu0 0
  %1139 = vmatpush1.bf16.msra.mxu0 %v1119
  %1140 = vmatprep.subr.bf16.mxu0 0
  %1141 = vmatpush1.bf16.msra.mxu0 %v1134
  %1142 = vmatprep.subr.bf16.mxu0 0
  %1143 = vmatpush1.bf16.msra.mxu0 0
  %1144 = vmatprep.subr.bf16.mxu0 0
  %1145 = vmatpush1.bf16.msra.mxu0 0
  %1146 = vmatprep.subr.bf16.mxu0 0
  %1147 = vmatpush1.bf16.msra.mxu0 0
  %1148 = vmatprep.subr.bf16.mxu0 0
  %1149 = vmatpush1.bf16.msra.mxu0 0
  %1150 = vmatprep.subr.bf16.mxu0 0
  %1151 = vmatpush1.bf16.msra.mxu0 0
  %1152 = vmatprep.subr.bf16.mxu0 0
  %1153 = vmatpush1.bf16.msra.mxu0 0
  %1154 = vmatprep.subr.bf16.mxu0 0
  %1155 = vmatpush1.bf16.msra.mxu0 0
  %1156 = vmatprep.subr.bf16.mxu0 0
  %1157 = vmatpush1.bf16.msra.mxu0 0
  %1158 = vmatprep.subr.bf16.mxu0 0
  %1159 = vmatpush1.bf16.msra.mxu0 0
  %1160 = vmatprep.subr.bf16.mxu0 0
  %1161 = vmatpush1.bf16.msra.mxu0 0
  %1162 = vmatprep.subr.bf16.mxu0 0
  %1163 = vmatpush1.bf16.msra.mxu0 0
  %1164 = vmatprep.subr.bf16.mxu0 0
  %1165 = vmatpush1.bf16.msra.mxu0 0
  %1166 = vmatprep.subr.bf16.mxu0 0
  %1167 = vmatpush1.bf16.msra.mxu0 0
  %1168 = vmatprep.mubr.bf16.mxu0 0
  %1169 = vmatmul.mubr.bf16.gmra.mrb[0].mxu0 %v1125
  %v1170 = vpop.f32.mrb[0].mxu0
  %v1171 = vadd.f32 0.0, %v1170
  %v1172 = vpop.f32.mrb[0].mxu0
  %v1173 = vpop.f32.mrb[0].mxu0
  %v1174 = vadd.f32 0.0, %v1173
  %v1175 = vpop.f32.mrb[0].mxu0
  %1176 = vmatprep.mubr.bf16.mxu0 0
  %1177 = vmatmul.mubr.bf16.gmra.mrb[0].mxu0 %v1128
  %v1178 = vpop.f32.mrb[0].mxu0
  %v1179 = vadd.f32 0.0, %v1178
  %v1180 = vpop.f32.mrb[0].mxu0
  %v1181 = vpop.f32.mrb[0].mxu0
  %v1182 = vadd.f32 0.0, %v1181
  %v1183 = vpop.f32.mrb[0].mxu0
  %1184 = vmatprep.mubr.bf16.mxu0 0
  %1185 = vmatmul.mubr.bf16.gmra.mrb[0].mxu0 %v1131
  %v1186 = vpop.f32.mrb[0].mxu0
  %v1187 = vadd.f32 0.0, %v1186
  %v1188 = vpop.f32.mrb[0].mxu0
  %v1189 = vpop.f32.mrb[0].mxu0
  %v1190 = vpop.f32.mrb[0].mxu0
  %1191 = vdwg.mxu0
  %1197 = vrot.lane.b32.xlu0 %v731, 8
  %v1198 = vpop.permute.xlu0 %1197
  %1199 = vrot.lane.b32.xlu0 %v734, 8
  %v1200 = vpop.permute.xlu0 %1199
  %1201 = vrot.lane.b32.xlu0 %v739, 8
  %v1202 = vpop.permute.xlu0 %1201
  %1203 = vrot.lane.b32.xlu0 %v742, 8
  %v1204 = vpop.permute.xlu0 %1203
  %1205 = vrot.lane.b32.xlu0 %v747, 8
  %v1206 = vpop.permute.xlu0 %1205
  %1217 = vrot.lane.b32.xlu0 %v951, 16
  %v1218 = vpop.permute.xlu0 %1217
  %1219 = vrot.lane.b32.xlu0 %v954, 16
  %v1220 = vpop.permute.xlu0 %1219
  %1221 = vrot.lane.b32.xlu0 %v959, 16
  %v1222 = vpop.permute.xlu0 %1221
  %1223 = vrot.lane.b32.xlu0 %v962, 16
  %v1224 = vpop.permute.xlu0 %1223
  %1225 = vrot.lane.b32.xlu0 %v967, 16
  %v1226 = vpop.permute.xlu0 %1225
  %1237 = vrot.lane.b32.xlu0 %v1171, 24
  %v1238 = vpop.permute.xlu0 %1237
  %1239 = vrot.lane.b32.xlu0 %v1174, 24
  %v1240 = vpop.permute.xlu0 %1239
  %1241 = vrot.lane.b32.xlu0 %v1179, 24
  %v1242 = vpop.permute.xlu0 %1241
  %1243 = vrot.lane.b32.xlu0 %v1182, 24
  %v1244 = vpop.permute.xlu0 %1243
  %1245 = vrot.lane.b32.xlu0 %v1187, 24
  %v1246 = vpop.permute.xlu0 %1245
  %v1252 = vsel %vm320, %v511, %v1198
  %v1253 = vsel %vm320, %v514, %v1200
  %v1254 = vsel %vm320, %v519, %v1202
  %v1255 = vsel %vm320, %v522, %v1204
  %v1256 = vsel %vm320, %v527, %v1206
  %vm1257 = vcmask 130048
  %v1258 = vsel %vm1257, %v1252, %v1218
  %v1259 = vsel %vm1257, %v1253, %v1220
  %v1260 = vsel %vm1257, %v1254, %v1222
  %v1261 = vsel %vm1257, %v1255, %v1224
  %v1262 = vsel %vm1257, %v1256, %v1226
  %vm1263 = vcmask 195584
  %v1264 = vsel %vm1263, %v1258, %v1238
  %v1265 = vsel %vm1263, %v1259, %v1240
  %v1266 = vsel %vm1263, %v1260, %v1242
  %v1267 = vsel %vm1263, %v1261, %v1244
  %v1268 = vsel %vm1263, %v1262, %v1246
  %v1269 = vpack.c.bf16 %v1265, %v1264
  %v1270 = vpack.c.bf16 %v1267, %v1266
  %v1271 = vpack.c.bf16 %v1268, %v1268
  %v1272 = vld [vmem:[%s1 + $0x30] sm:$0xf]
  %v1273 = vld [vmem:[%s1 + $0x34] sm:$0xf]
  %v1274 = vld [vmem:[%s1 + $0x38] sm:$0xf]
  %v1275 = vld [vmem:[%s1 + $0x3c] sm:$0xf]
  %v1276 = vld [vmem:[%s2 + $0x47] sm:$0x1]
  %v1277 = vlaneseq
  %v1278 = vshrl.u32 %v1277, 7
  %v1279 = vsub.s32 0, %v1278
  %v1280 = vrot.slane %v1276, %v1279
  %v1285 = vunpack.c.l.b16 %v1272
  %v1286 = vunpack.c.l.b16 %v1273
  %v1287 = vunpack.c.l.b16 %v1274
  %v1288 = vunpack.c.l.b16 %v1275
  %v1289 = vpack.c.b16 %v1286, %v1285
  %v1290 = vpack.c.b16 %v1288, %v1287
  %v1294 = vsel %vm133, %v1269, 0
  %v1297 = vsel %vm133, %v1270, 0
  %v1300 = vsel %vm133, %v1271, 0
  %1302 = vmatprep.subr.bf16.mxu0 0
  %1303 = vmatpush1.bf16.msra.mxu0 %v1289
  %1304 = vmatprep.subr.bf16.mxu0 0
  %1305 = vmatpush1.bf16.msra.mxu0 %v1290
  %1306 = vmatprep.subr.bf16.mxu0 0
  %1307 = vmatpush1.bf16.msra.mxu0 0
  %1308 = vmatprep.subr.bf16.mxu0 0
  %1309 = vmatpush1.bf16.msra.mxu0 0
  %1310 = vmatprep.subr.bf16.mxu0 0
  %1311 = vmatpush1.bf16.msra.mxu0 0
  %1312 = vmatprep.subr.bf16.mxu0 0
  %1313 = vmatpush1.bf16.msra.mxu0 0
  %1314 = vmatprep.subr.bf16.mxu0 0
  %1315 = vmatpush1.bf16.msra.mxu0 0
  %1316 = vmatprep.subr.bf16.mxu0 0
  %1317 = vmatpush1.bf16.msra.mxu0 0
  %1318 = vmatprep.subr.bf16.mxu0 0
  %1319 = vmatpush1.bf16.msra.mxu0 0
  %1320 = vmatprep.subr.bf16.mxu0 0
  %1321 = vmatpush1.bf16.msra.mxu0 0
  %1322 = vmatprep.subr.bf16.mxu0 0
  %1323 = vmatpush1.bf16.msra.mxu0 0
  %1324 = vmatprep.subr.bf16.mxu0 0
  %1325 = vmatpush1.bf16.msra.mxu0 0
  %1326 = vmatprep.subr.bf16.mxu0 0
  %1327 = vmatpush1.bf16.msra.mxu0 0
  %1328 = vmatprep.subr.bf16.mxu0 0
  %1329 = vmatpush1.bf16.msra.mxu0 0
  %1330 = vmatprep.subr.bf16.mxu0 0
  %1331 = vmatpush1.bf16.msra.mxu0 0
  %1332 = vmatprep.subr.bf16.mxu0 0
  %1333 = vmatpush1.bf16.msra.mxu0 0
  %1334 = vmatprep.mubr.bf16.mxu0 0
  %1335 = vmatmul.mubr.bf16.gmra.mrb[0].mxu0 %v1294
  %v1336 = vpop.f32.mrb[0].mxu0
  %v1337 = vadd.f32 %v1280, %v1336
  %v1338 = vpop.f32.mrb[0].mxu0
  %v1339 = vpop.f32.mrb[0].mxu0
  %v1340 = vadd.f32 %v1280, %v1339
  %v1341 = vpop.f32.mrb[0].mxu0
  %1342 = vmatprep.mubr.bf16.mxu0 0
  %1343 = vmatmul.mubr.bf16.gmra.mrb[0].mxu0 %v1297
  %v1344 = vpop.f32.mrb[0].mxu0
  %v1345 = vadd.f32 %v1280, %v1344
  %v1346 = vpop.f32.mrb[0].mxu0
  %v1347 = vpop.f32.mrb[0].mxu0
  %v1348 = vadd.f32 %v1280, %v1347
  %v1349 = vpop.f32.mrb[0].mxu0
  %1350 = vmatprep.mubr.bf16.mxu0 0
  %1351 = vmatmul.mubr.bf16.gmra.mrb[0].mxu0 %v1300
  %v1352 = vpop.f32.mrb[0].mxu0
  %v1353 = vadd.f32 %v1280, %v1352
  %v1354 = vpop.f32.mrb[0].mxu0
  %v1355 = vpop.f32.mrb[0].mxu0
  %v1356 = vpop.f32.mrb[0].mxu0
  %1357 = vdwg.mxu0
  %v1358 = vadd.f32 %v105, %v1337
  %v1359 = vadd.f32 %v108, %v1340
  %v1360 = vadd.f32 %v113, %v1345
  %v1361 = vadd.f32 %v116, %v1348
  %v1362 = vadd.f32 %v121, %v1353
  %v1363 = vld [vmem:[%s2 + $0x48] sm:$0x1]
  %v1364 = vld [vmem:[%s2 + $0x49] sm:$0x1]
  %v1365 = vsel %vm133, %v1358, 0.0
  %1366 = vadd.xlane.f32.xlu0 %v1365
  %v1367 = vpop.xlane.xlu0 %1366
  %v1368 = vsel %vm133, %v1359, 0.0
  %1369 = vadd.xlane.f32.xlu0 %v1368
  %v1370 = vpop.xlane.xlu0 %1369
  %v1371 = vsel %vm133, %v1360, 0.0
  %1372 = vadd.xlane.f32.xlu0 %v1371
  %v1373 = vpop.xlane.xlu0 %1372
  %v1374 = vsel %vm133, %v1361, 0.0
  %1375 = vadd.xlane.f32.xlu0 %v1374
  %v1376 = vpop.xlane.xlu0 %1375
  %v1377 = vsel %vm146, %v1362, 0.0
  %1378 = vadd.xlane.f32.xlu0 %v1377
  %v1379 = vpop.xlane.xlu0 %1378
  %v1380 = vmul.f32 %v1367, %v150
  %v1381 = vmul.f32 %v1370, %v150
  %v1382 = vmul.f32 %v1373, %v150
  %v1383 = vmul.f32 %v1376, %v150
  %v1384 = vmul.f32 %v1379, %v150
  %v1385 = vsub.f32 %v1358, %v1380
  %v1386 = vsub.f32 %v1359, %v1381
  %v1387 = vsub.f32 %v1360, %v1382
  %v1388 = vsub.f32 %v1361, %v1383
  %v1389 = vsub.f32 %v1362, %v1384
  %v1390 = vmul.f32 %v1385, %v1385
  %v1391 = vmul.f32 %v1386, %v1386
  %v1392 = vmul.f32 %v1387, %v1387
  %v1393 = vmul.f32 %v1388, %v1388
  %v1394 = vmul.f32 %v1389, %v1389
  %v1395 = vsel %vm133, %v1390, 0.0
  %1396 = vadd.xlane.f32.xlu0 %v1395
  %v1397 = vpop.xlane.xlu0 %1396
  %v1398 = vsel %vm133, %v1391, 0.0
  %1399 = vadd.xlane.f32.xlu0 %v1398
  %v1400 = vpop.xlane.xlu0 %1399
  %v1401 = vsel %vm133, %v1392, 0.0
  %1402 = vadd.xlane.f32.xlu0 %v1401
  %v1403 = vpop.xlane.xlu0 %1402
  %v1404 = vsel %vm133, %v1393, 0.0
  %1405 = vadd.xlane.f32.xlu0 %v1404
  %v1406 = vpop.xlane.xlu0 %1405
  %v1407 = vsel %vm146, %v1394, 0.0
  %1408 = vadd.xlane.f32.xlu0 %v1407
  %v1409 = vpop.xlane.xlu0 %1408
  %v1410 = vmul.f32 %v1397, %v150
  %v1411 = vmul.f32 %v1400, %v150
  %v1412 = vmul.f32 %v1403, %v150
  %v1413 = vmul.f32 %v1406, %v150
  %v1414 = vmul.f32 %v1409, %v150
  %v1415 = vadd.f32 %v1410, 1e-05
  %v1416 = vadd.f32 %v1411, 1e-05
  %v1417 = vadd.f32 %v1412, 1e-05
  %v1418 = vadd.f32 %v1413, 1e-05
  %v1419 = vadd.f32 %v1414, 1e-05
  %v1420 = vrsqrt.pop %v1415
  %v1421 = vrsqrt.pop %v1416
  %v1422 = vrsqrt.pop %v1417
  %v1423 = vrsqrt.pop %v1418
  %v1424 = vrsqrt.pop %v1419
  %v1425 = vmul.f32 %v1385, %v1420
  %v1426 = vmul.f32 %v1386, %v1421
  %v1427 = vmul.f32 %v1387, %v1422
  %v1428 = vmul.f32 %v1388, %v1423
  %v1429 = vmul.f32 %v1389, %v1424
  %v1430 = vlaneseq
  %v1431 = vshrl.u32 %v1430, 7
  %v1432 = vsub.s32 0, %v1431
  %v1433 = vrot.slane %v1363, %v1432
  %v1434 = vmul.f32 %v1425, %v1433
  %v1435 = vmul.f32 %v1426, %v1433
  %v1436 = vmul.f32 %v1427, %v1433
  %v1437 = vmul.f32 %v1428, %v1433
  %v1438 = vmul.f32 %v1429, %v1433
  %v1439 = vlaneseq
  %v1440 = vshrl.u32 %v1439, 7
  %v1441 = vsub.s32 0, %v1440
  %v1442 = vrot.slane %v1364, %v1441
  %v1443 = vadd.f32 %v1434, %v1442
  %v1444 = vadd.f32 %v1435, %v1442
  %v1445 = vadd.f32 %v1436, %v1442
  %v1446 = vadd.f32 %v1437, %v1442
  %v1447 = vadd.f32 %v1438, %v1442
  %v1448 = vpack.c.bf16 %v1444, %v1443
  %v1449 = vpack.c.bf16 %v1446, %v1445
  %v1450 = vpack.c.bf16 %v1447, %v1447
  %v1451 = vld [vmem:[%s1 + $0x40] sm:$0xf]
  %v1452 = vld [vmem:[%s1 + $0x44] sm:$0xf]
  %v1453 = vld [vmem:[%s1 + $0x48] sm:$0xf]
  %v1454 = vld [vmem:[%s1 + $0x4c] sm:$0xf]
  %v1455 = vld [vmem:[%s2 + $0x4a] sm:$0x1]
  %v1456 = vlaneseq
  %v1457 = vshrl.u32 %v1456, 7
  %v1458 = vsub.s32 0, %v1457
  %v1459 = vrot.slane %v1455, %v1458
  %v1464 = vunpack.c.l.b16 %v1451
  %v1465 = vunpack.c.l.b16 %v1452
  %v1466 = vunpack.c.l.b16 %v1453
  %v1467 = vunpack.c.l.b16 %v1454
  %v1468 = vpack.c.b16 %v1465, %v1464
  %v1469 = vpack.c.b16 %v1467, %v1466
  %v1473 = vsel %vm133, %v1448, 0
  %v1476 = vsel %vm133, %v1449, 0
  %v1479 = vsel %vm133, %v1450, 0
  %1481 = vmatprep.subr.bf16.mxu0 0
  %1482 = vmatpush1.bf16.msra.mxu0 %v1468
  %1483 = vmatprep.subr.bf16.mxu0 0
  %1484 = vmatpush1.bf16.msra.mxu0 %v1469
  %1485 = vmatprep.subr.bf16.mxu0 0
  %1486 = vmatpush1.bf16.msra.mxu0 0
  %1487 = vmatprep.subr.bf16.mxu0 0
  %1488 = vmatpush1.bf16.msra.mxu0 0
  %1489 = vmatprep.subr.bf16.mxu0 0
  %1490 = vmatpush1.bf16.msra.mxu0 0
  %1491 = vmatprep.subr.bf16.mxu0 0
  %1492 = vmatpush1.bf16.msra.mxu0 0
  %1493 = vmatprep.subr.bf16.mxu0 0
  %1494 = vmatpush1.bf16.msra.mxu0 0
  %1495 = vmatprep.subr.bf16.mxu0 0
  %1496 = vmatpush1.bf16.msra.mxu0 0
  %1497 = vmatprep.subr.bf16.mxu0 0
  %1498 = vmatpush1.bf16.msra.mxu0 0
  %1499 = vmatprep.subr.bf16.mxu0 0
  %1500 = vmatpush1.bf16.msra.mxu0 0
  %1501 = vmatprep.subr.bf16.mxu0 0
  %1502 = vmatpush1.bf16.msra.mxu0 0
  %1503 = vmatprep.subr.bf16.mxu0 0
  %1504 = vmatpush1.bf16.msra.mxu0 0
  %1505 = vmatprep.subr.bf16.mxu0 0
  %1506 = vmatpush1.bf16.msra.mxu0 0
  %1507 = vmatprep.subr.bf16.mxu0 0
  %1508 = vmatpush1.bf16.msra.mxu0 0
  %1509 = vmatprep.subr.bf16.mxu0 0
  %1510 = vmatpush1.bf16.msra.mxu0 0
  %1511 = vmatprep.subr.bf16.mxu0 0
  %1512 = vmatpush1.bf16.msra.mxu0 0
  %1513 = vmatprep.mubr.bf16.mxu0 0
  %1514 = vmatmul.mubr.bf16.gmra.mrb[0].mxu0 %v1473
  %v1515 = vpop.f32.mrb[0].mxu0
  %v1516 = vadd.f32 %v1459, %v1515
  %v1517 = vpop.f32.mrb[0].mxu0
  %v1518 = vpop.f32.mrb[0].mxu0
  %v1519 = vadd.f32 %v1459, %v1518
  %v1520 = vpop.f32.mrb[0].mxu0
  %1521 = vmatprep.mubr.bf16.mxu0 0
  %1522 = vmatmul.mubr.bf16.gmra.mrb[0].mxu0 %v1476
  %v1523 = vpop.f32.mrb[0].mxu0
  %v1524 = vadd.f32 %v1459, %v1523
  %v1525 = vpop.f32.mrb[0].mxu0
  %v1526 = vpop.f32.mrb[0].mxu0
  %v1527 = vadd.f32 %v1459, %v1526
  %v1528 = vpop.f32.mrb[0].mxu0
  %1529 = vmatprep.mubr.bf16.mxu0 0
  %1530 = vmatmul.mubr.bf16.gmra.mrb[0].mxu0 %v1479
  %v1531 = vpop.f32.mrb[0].mxu0
  %v1532 = vadd.f32 %v1459, %v1531
  %v1533 = vpop.f32.mrb[0].mxu0
  %v1534 = vpop.f32.mrb[0].mxu0
  %v1535 = vpop.f32.mrb[0].mxu0
  %1536 = vdwg.mxu0
  %v1537 = vmul.f32 %v1516, %v1516
  %v1538 = vmul.f32 %v1519, %v1519
  %v1539 = vmul.f32 %v1524, %v1524
  %v1540 = vmul.f32 %v1527, %v1527
  %v1541 = vmul.f32 %v1532, %v1532
  %v1542 = vmul.f32 %v1516, %v1537
  %v1543 = vmul.f32 %v1519, %v1538
  %v1544 = vmul.f32 %v1524, %v1539
  %v1545 = vmul.f32 %v1527, %v1540
  %v1546 = vmul.f32 %v1532, %v1541
  %v1547 = vmul.f32 %v1542, 0.044715
  %v1548 = vmul.f32 %v1543, 0.044715
  %v1549 = vmul.f32 %v1544, 0.044715
  %v1550 = vmul.f32 %v1545, 0.044715
  %v1551 = vmul.f32 %v1546, 0.044715
  %v1552 = vadd.f32 %v1516, %v1547
  %v1553 = vadd.f32 %v1519, %v1548
  %v1554 = vadd.f32 %v1524, %v1549
  %v1555 = vadd.f32 %v1527, %v1550
  %v1556 = vadd.f32 %v1532, %v1551
  %v1557 = vmul.f32 %v1552, 0.7978846
  %v1558 = vmul.f32 %v1553, 0.7978846
  %v1559 = vmul.f32 %v1554, 0.7978846
  %v1560 = vmul.f32 %v1555, 0.7978846
  %v1561 = vmul.f32 %v1556, 0.7978846
  %v1562 = vtanh.pop %v1557
  %v1563 = vtanh.pop %v1558
  %v1564 = vtanh.pop %v1559
  %v1565 = vtanh.pop %v1560
  %v1566 = vtanh.pop %v1561
  %v1567 = vadd.f32 %v1562, 1.0
  %v1568 = vadd.f32 %v1563, 1.0
  %v1569 = vadd.f32 %v1564, 1.0
  %v1570 = vadd.f32 %v1565, 1.0
  %v1571 = vadd.f32 %v1566, 1.0
  %v1572 = vmul.f32 %v1567, 0.5
  %v1573 = vmul.f32 %v1568, 0.5
  %v1574 = vmul.f32 %v1569, 0.5
  %v1575 = vmul.f32 %v1570, 0.5
  %v1576 = vmul.f32 %v1571, 0.5
  %v1577 = vmul.f32 %v1516, %v1572
  %v1578 = vmul.f32 %v1519, %v1573
  %v1579 = vmul.f32 %v1524, %v1574
  %v1580 = vmul.f32 %v1527, %v1575
  %v1581 = vmul.f32 %v1532, %v1576
  %v1582 = vpack.c.bf16 %v1578, %v1577
  %v1583 = vpack.c.bf16 %v1580, %v1579
  %v1584 = vpack.c.bf16 %v1581, %v1581
  %v1585 = vld [vmem:[%s1 + $0x50] sm:$0xf]
  %v1586 = vld [vmem:[%s1 + $0x54] sm:$0xf]
  %v1587 = vld [vmem:[%s1 + $0x58] sm:$0xf]
  %v1588 = vld [vmem:[%s1 + $0x5c] sm:$0xf]
  %v1589 = vld [vmem:[%s1 + $0x60] sm:$0xf]
  %v1590 = vld [vmem:[%s1 + $0x64] sm:$0xf]
  %v1591 = vld [vmem:[%s1 + $0x68] sm:$0xf]
  %v1592 = vld [vmem:[%s1 + $0x6c] sm:$0xf]
  %v1593 = vld [vmem:[%s2 + $0x4b] sm:$0x1]
  %v1594 = vlaneseq
  %v1595 = vshrl.u32 %v1594, 7
  %v1596 = vsub.s32 0, %v1595
  %v1597 = vrot.slane %v1593, %v1596
  %v1606 = vunpack.c.l.b16 %v1585
  %v1607 = vunpack.c.l.b16 %v1586
  %v1608 = vunpack.c.l.b16 %v1587
  %v1609 = vunpack.c.l.b16 %v1588
  %v1610 = vunpack.c.l.b16 %v1589
  %v1611 = vunpack.c.l.b16 %v1590
  %v1612 = vunpack.c.l.b16 %v1591
  %v1613 = vunpack.c.l.b16 %v1592
  %v1614 = vpack.c.b16 %v1607, %v1606
  %v1615 = vpack.c.b16 %v1609, %v1608
  %v1616 = vpack.c.b16 %v1611, %v1610
  %v1617 = vpack.c.b16 %v1613, %v1612
  %v1623 = vsel %vm60, %v1582, 0
  %v1626 = vsel %vm60, %v1583, 0
  %v1629 = vsel %vm60, %v1584, 0
  %1631 = vmatprep.subr.bf16.mxu0 0
  %1632 = vmatpush1.bf16.msra.mxu0 %v1614
  %1633 = vmatprep.subr.bf16.mxu0 0
  %1634 = vmatpush1.bf16.msra.mxu0 %v1615
  %1635 = vmatprep.subr.bf16.mxu0 0
  %1636 = vmatpush1.bf16.msra.mxu0 %v1616
  %1637 = vmatprep.subr.bf16.mxu0 0
  %1638 = vmatpush1.bf16.msra.mxu0 %v1617
  %1639 = vmatprep.subr.bf16.mxu0 0
  %1640 = vmatpush1.bf16.msra.mxu0 0
  %1641 = vmatprep.subr.bf16.mxu0 0
  %1642 = vmatpush1.bf16.msra.mxu0 0
  %1643 = vmatprep.subr.bf16.mxu0 0
  %1644 = vmatpush1.bf16.msra.mxu0 0
  %1645 = vmatprep.subr.bf16.mxu0 0
  %1646 = vmatpush1.bf16.msra.mxu0 0
  %1647 = vmatprep.subr.bf16.mxu0 0
  %1648 = vmatpush1.bf16.msra.mxu0 0
  %1649 = vmatprep.subr.bf16.mxu0 0
  %1650 = vmatpush1.bf16.msra.mxu0 0
  %1651 = vmatprep.subr.bf16.mxu0 0
  %1652 = vmatpush1.bf16.msra.mxu0 0
  %1653 = vmatprep.subr.bf16.mxu0 0
  %1654 = vmatpush1.bf16.msra.mxu0 0
  %1655 = vmatprep.subr.bf16.mxu0 0
  %1656 = vmatpush1.bf16.msra.mxu0 0
  %1657 = vmatprep.subr.bf16.mxu0 0
  %1658 = vmatpush1.bf16.msra.mxu0 0
  %1659 = vmatprep.subr.bf16.mxu0 0
  %1660 = vmatpush1.bf16.msra.mxu0 0
  %1661 = vmatprep.subr.bf16.mxu0 0
  %1662 = vmatpush1.bf16.msra.mxu0 0
  %1663 = vmatprep.mubr.bf16.mxu0 0
  %1664 = vmatmul.mubr.bf16.gmra.mrb[0].mxu0 %v1623
  %v1665 = vpop.f32.mrb[0].mxu0
  %v1666 = vadd.f32 %v1597, %v1665
  %v1667 = vpop.f32.mrb[0].mxu0
  %v1668 = vpop.f32.mrb[0].mxu0
  %v1669 = vadd.f32 %v1597, %v1668
  %v1670 = vpop.f32.mrb[0].mxu0
  %1671 = vmatprep.mubr.bf16.mxu0 0
  %1672 = vmatmul.mubr.bf16.gmra.mrb[0].mxu0 %v1626
  %v1673 = vpop.f32.mrb[0].mxu0
  %v1674 = vadd.f32 %v1597, %v1673
  %v1675 = vpop.f32.mrb[0].mxu0
  %v1676 = vpop.f32.mrb[0].mxu0
  %v1677 = vadd.f32 %v1597, %v1676
  %v1678 = vpop.f32.mrb[0].mxu0
  %1679 = vmatprep.mubr.bf16.mxu0 0
  %1680 = vmatmul.mubr.bf16.gmra.mrb[0].mxu0 %v1629
  %v1681 = vpop.f32.mrb[0].mxu0
  %v1682 = vadd.f32 %v1597, %v1681
  %v1683 = vpop.f32.mrb[0].mxu0
  %v1684 = vpop.f32.mrb[0].mxu0
  %v1685 = vpop.f32.mrb[0].mxu0
  %1686 = vdwg.mxu0
  %v1687 = vadd.f32 %v1358, %v1666
  %v1688 = vadd.f32 %v1359, %v1669
  %v1689 = vadd.f32 %v1360, %v1674
  %v1690 = vadd.f32 %v1361, %v1677
  %v1691 = vadd.f32 %v1362, %v1682
  %v1692 = vld [vmem:[%s2 + $0x4c] sm:$0x1]
  %v1693 = vld [vmem:[%s2 + $0x4d] sm:$0x1]
  %v1694 = vsel %vm133, %v1687, 0.0
  %1695 = vadd.xlane.f32.xlu0 %v1694
  %v1696 = vpop.xlane.xlu0 %1695
  %v1697 = vsel %vm133, %v1688, 0.0
  %1698 = vadd.xlane.f32.xlu0 %v1697
  %v1699 = vpop.xlane.xlu0 %1698
  %v1700 = vsel %vm133, %v1689, 0.0
  %1701 = vadd.xlane.f32.xlu0 %v1700
  %v1702 = vpop.xlane.xlu0 %1701
  %v1703 = vsel %vm133, %v1690, 0.0
  %1704 = vadd.xlane.f32.xlu0 %v1703
  %v1705 = vpop.xlane.xlu0 %1704
  %v1706 = vsel %vm146, %v1691, 0.0
  %1707 = vadd.xlane.f32.xlu0 %v1706
  %v1708 = vpop.xlane.xlu0 %1707
  %v1709 = vmul.f32 %v1696, %v150
  %v1710 = vmul.f32 %v1699, %v150
  %v1711 = vmul.f32 %v1702, %v150
  %v1712 = vmul.f32 %v1705, %v150
  %v1713 = vmul.f32 %v1708, %v150
  %v1714 = vsub.f32 %v1687, %v1709
  %v1715 = vsub.f32 %v1688, %v1710
  %v1716 = vsub.f32 %v1689, %v1711
  %v1717 = vsub.f32 %v1690, %v1712
  %v1718 = vsub.f32 %v1691, %v1713
  %v1719 = vmul.f32 %v1714, %v1714
  %v1720 = vmul.f32 %v1715, %v1715
  %v1721 = vmul.f32 %v1716, %v1716
  %v1722 = vmul.f32 %v1717, %v1717
  %v1723 = vmul.f32 %v1718, %v1718
  %v1724 = vsel %vm133, %v1719, 0.0
  %1725 = vadd.xlane.f32.xlu0 %v1724
  %v1726 = vpop.xlane.xlu0 %1725
  %v1727 = vsel %vm133, %v1720, 0.0
  %1728 = vadd.xlane.f32.xlu0 %v1727
  %v1729 = vpop.xlane.xlu0 %1728
  %v1730 = vsel %vm133, %v1721, 0.0
  %1731 = vadd.xlane.f32.xlu0 %v1730
  %v1732 = vpop.xlane.xlu0 %1731
  %v1733 = vsel %vm133, %v1722, 0.0
  %1734 = vadd.xlane.f32.xlu0 %v1733
  %v1735 = vpop.xlane.xlu0 %1734
  %v1736 = vsel %vm146, %v1723, 0.0
  %1737 = vadd.xlane.f32.xlu0 %v1736
  %v1738 = vpop.xlane.xlu0 %1737
  %v1739 = vmul.f32 %v1726, %v150
  %v1740 = vmul.f32 %v1729, %v150
  %v1741 = vmul.f32 %v1732, %v150
  %v1742 = vmul.f32 %v1735, %v150
  %v1743 = vmul.f32 %v1738, %v150
  %v1744 = vadd.f32 %v1739, 1e-05
  %v1745 = vadd.f32 %v1740, 1e-05
  %v1746 = vadd.f32 %v1741, 1e-05
  %v1747 = vadd.f32 %v1742, 1e-05
  %v1748 = vadd.f32 %v1743, 1e-05
  %v1749 = vrsqrt.pop %v1744
  %v1750 = vrsqrt.pop %v1745
  %v1751 = vrsqrt.pop %v1746
  %v1752 = vrsqrt.pop %v1747
  %v1753 = vrsqrt.pop %v1748
  %v1754 = vmul.f32 %v1714, %v1749
  %v1755 = vmul.f32 %v1715, %v1750
  %v1756 = vmul.f32 %v1716, %v1751
  %v1757 = vmul.f32 %v1717, %v1752
  %v1758 = vmul.f32 %v1718, %v1753
  %v1759 = vlaneseq
  %v1760 = vshrl.u32 %v1759, 7
  %v1761 = vsub.s32 0, %v1760
  %v1762 = vrot.slane %v1692, %v1761
  %v1763 = vmul.f32 %v1754, %v1762
  %v1764 = vmul.f32 %v1755, %v1762
  %v1765 = vmul.f32 %v1756, %v1762
  %v1766 = vmul.f32 %v1757, %v1762
  %v1767 = vmul.f32 %v1758, %v1762
  %v1768 = vlaneseq
  %v1769 = vshrl.u32 %v1768, 7
  %v1770 = vsub.s32 0, %v1769
  %v1771 = vrot.slane %v1693, %v1770
  %v1772 = vadd.f32 %v1763, %v1771
  %v1773 = vadd.f32 %v1764, %v1771
  %v1774 = vadd.f32 %v1765, %v1771
  %v1775 = vadd.f32 %v1766, %v1771
  %v1776 = vadd.f32 %v1767, %v1771
  %v1777 = vpack.c.bf16 %v1773, %v1772
  %v1778 = vpack.c.bf16 %v1775, %v1774
  %v1779 = vpack.c.bf16 %v1776, %v1776
  %v1780 = vld [vmem:[%s1 + $0x70] sm:$0xf]
  %v1781 = vld [vmem:[%s1 + $0x74] sm:$0xf]
  %v1782 = vld [vmem:[%s1 + $0x78] sm:$0xf]
  %v1783 = vld [vmem:[%s1 + $0x7c] sm:$0xf]
  %v1784 = vld [vmem:[%s2 + $0x4e] sm:$0x1]
  %v1785 = vlaneseq
  %v1786 = vshrl.u32 %v1785, 7
  %v1787 = vsub.s32 0, %v1786
  %v1788 = vrot.slane %v1784, %v1787
  %v1793 = vunpack.c.l.b16 %v1780
  %v1794 = vunpack.c.l.b16 %v1781
  %v1795 = vunpack.c.l.b16 %v1782
  %v1796 = vunpack.c.l.b16 %v1783
  %v1797 = vpack.c.b16 %v1794, %v1793
  %v1798 = vpack.c.b16 %v1796, %v1795
  %v1802 = vsel %vm133, %v1777, 0
  %v1805 = vsel %vm133, %v1778, 0
  %v1808 = vsel %vm133, %v1779, 0
  %1810 = vmatprep.subr.bf16.mxu0 0
  %1811 = vmatpush1.bf16.msra.mxu0 %v1797
  %1812 = vmatprep.subr.bf16.mxu0 0
  %1813 = vmatpush1.bf16.msra.mxu0 %v1798
  %1814 = vmatprep.subr.bf16.mxu0 0
  %1815 = vmatpush1.bf16.msra.mxu0 0
  %1816 = vmatprep.subr.bf16.mxu0 0
  %1817 = vmatpush1.bf16.msra.mxu0 0
  %1818 = vmatprep.subr.bf16.mxu0 0
  %1819 = vmatpush1.bf16.msra.mxu0 0
  %1820 = vmatprep.subr.bf16.mxu0 0
  %1821 = vmatpush1.bf16.msra.mxu0 0
  %1822 = vmatprep.subr.bf16.mxu0 0
  %1823 = vmatpush1.bf16.msra.mxu0 0
  %1824 = vmatprep.subr.bf16.mxu0 0
  %1825 = vmatpush1.bf16.msra.mxu0 0
  %1826 = vmatprep.subr.bf16.mxu0 0
  %1827 = vmatpush1.bf16.msra.mxu0 0
  %1828 = vmatprep.subr.bf16.mxu0 0
  %1829 = vmatpush1.bf16.msra.mxu0 0
  %1830 = vmatprep.subr.bf16.mxu0 0
  %1831 = vmatpush1.bf16.msra.mxu0 0
  %1832 = vmatprep.subr.bf16.mxu0 0
  %1833 = vmatpush1.bf16.msra.mxu0 0
  %1834 = vmatprep.subr.bf16.mxu0 0
  %1835 = vmatpush1.bf16.msra.mxu0 0
  %1836 = vmatprep.subr.bf16.mxu0 0
  %1837 = vmatpush1.bf16.msra.mxu0 0
  %1838 = vmatprep.subr.bf16.mxu0 0
  %1839 = vmatpush1.bf16.msra.mxu0 0
  %1840 = vmatprep.subr.bf16.mxu0 0
  %1841 = vmatpush1.bf16.msra.mxu0 0
  %1842 = vmatprep.mubr.bf16.mxu0 0
  %1843 = vmatmul.mubr.bf16.gmra.mrb[0].mxu0 %v1802
  %v1844 = vpop.f32.mrb[0].mxu0
  %v1845 = vadd.f32 %v1788, %v1844
  %v1846 = vpop.f32.mrb[0].mxu0
  %v1847 = vpop.f32.mrb[0].mxu0
  %v1848 = vadd.f32 %v1788, %v1847
  %v1849 = vpop.f32.mrb[0].mxu0
  %1850 = vmatprep.mubr.bf16.mxu0 0
  %1851 = vmatmul.mubr.bf16.gmra.mrb[0].mxu0 %v1805
  %v1852 = vpop.f32.mrb[0].mxu0
  %v1853 = vadd.f32 %v1788, %v1852
  %v1854 = vpop.f32.mrb[0].mxu0
  %v1855 = vpop.f32.mrb[0].mxu0
  %v1856 = vadd.f32 %v1788, %v1855
  %v1857 = vpop.f32.mrb[0].mxu0
  %1858 = vmatprep.mubr.bf16.mxu0 0
  %1859 = vmatmul.mubr.bf16.gmra.mrb[0].mxu0 %v1808
  %v1860 = vpop.f32.mrb[0].mxu0
  %v1861 = vadd.f32 %v1788, %v1860
  %v1862 = vpop.f32.mrb[0].mxu0
  %v1863 = vpop.f32.mrb[0].mxu0
  %v1864 = vpop.f32.mrb[0].mxu0
  %1865 = vdwg.mxu0
  %v1866 = vpack.c.bf16 %v1848, %v1845
  %v1867 = vpack.c.bf16 %v1856, %v1853
  %v1868 = vpack.c.bf16 %v1861, %v1861
  %1872 = vrot.lane.b32.xlu0 %v1866, 96
  %v1873 = vpop.permute.xlu0 %1872
  %1874 = vrot.lane.b32.xlu0 %v1867, 96
  %v1875 = vpop.permute.xlu0 %1874
  %1876 = vrot.lane.b32.xlu0 %v1868, 96
  %v1877 = vpop.permute.xlu0 %1876
  %v1879 = vsel %vm320, %v1866, 0
  %v1882 = vsel %vm320, %v1867, 0
  %v1885 = vsel %vm320, %v1868, 0
  %v1888 = vsel %vm320, %v1873, 0
  %v1891 = vsel %vm320, %v1875, 0
  %v1894 = vsel %vm320, %v1877, 0
  %1896 = vmatprep.subr.bf16.mxu0 0
  %1897 = vmatpush1.bf16.xpose.msra.mxu0 %v1888
  %1898 = vmatprep.subr.bf16.mxu0 0
  %1899 = vmatpush1.bf16.xpose.msra.mxu0 %v1891
  %1900 = vmatprep.subr.bf16.mxu0 0
  %1901 = vmatpush1.bf16.xpose.msra.mxu0 %v1894
  %1902 = vmatprep.subr.bf16.mxu0 0
  %1903 = vmatpush1.bf16.xpose.msra.mxu0 0
  %1904 = vmatprep.subr.bf16.mxu0 0
  %1905 = vmatpush1.bf16.xpose.msra.mxu0 0
  %1906 = vmatprep.subr.bf16.mxu0 0
  %1907 = vmatpush1.bf16.xpose.msra.mxu0 0
  %1908 = vmatprep.subr.bf16.mxu0 0
  %1909 = vmatpush1.bf16.xpose.msra.mxu0 0
  %1910 = vmatprep.subr.bf16.mxu0 0
  %1911 = vmatpush1.bf16.xpose.msra.mxu0 0
  %1912 = vmatprep.subr.bf16.mxu0 0
  %1913 = vmatpush1.bf16.xpose.msra.mxu0 0
  %1914 = vmatprep.subr.bf16.mxu0 0
  %1915 = vmatpush1.bf16.xpose.msra.mxu0 0
  %1916 = vmatprep.subr.bf16.mxu0 0
  %1917 = vmatpush1.bf16.xpose.msra.mxu0 0
  %1918 = vmatprep.subr.bf16.mxu0 0
  %1919 = vmatpush1.bf16.xpose.msra.mxu0 0
  %1920 = vmatprep.subr.bf16.mxu0 0
  %1921 = vmatpush1.bf16.xpose.msra.mxu0 0
  %1922 = vmatprep.subr.bf16.mxu0 0
  %1923 = vmatpush1.bf16.xpose.msra.mxu0 0
  %1924 = vmatprep.subr.bf16.mxu0 0
  %1925 = vmatpush1.bf16.xpose.msra.mxu0 0
  %1926 = vmatprep.subr.bf16.mxu0 0
  %1927 = vmatpush1.bf16.xpose.msra.mxu0 0
  %1928 = vmatprep.mubr.bf16.mxu0 0
  %1929 = vmatmul.mubr.bf16.gmra.mrb[0].mxu0 %v1879
  %v1930 = vpop.f32.mrb[0].mxu0
  %v1931 = vadd.f32 %v126, %v1930
  %v1932 = vpop.f32.mrb[0].mxu0
  %v1933 = vpop.f32.mrb[0].mxu0
  %v1934 = vadd.f32 %v127, %v1933
  %v1935 = vpop.f32.mrb[0].mxu0
  %1936 = vmatprep.mubr.bf16.mxu0 0
  %1937 = vmatmul.mubr.bf16.gmra.mrb[0].mxu0 %v1882
  %v1938 = vpop.f32.mrb[0].mxu0
  %v1939 = vadd.f32 %v128, %v1938
  %v1940 = vpop.f32.mrb[0].mxu0
  %v1941 = vpop.f32.mrb[0].mxu0
  %v1942 = vadd.f32 %v129, %v1941
  %v1943 = vpop.f32.mrb[0].mxu0
  %1944 = vmatprep.mubr.bf16.mxu0 0
  %1945 = vmatmul.mubr.bf16.gmra.mrb[0].mxu0 %v1885
  %v1946 = vpop.f32.mrb[0].mxu0
  %v1947 = vadd.f32 %v130, %v1946
  %v1948 = vpop.f32.mrb[0].mxu0
  %v1949 = vpop.f32.mrb[0].mxu0
  %v1950 = vpop.f32.mrb[0].mxu0
  %1951 = vdwg.mxu0
  %v1952 = vsel %vm395, %v1931, -inf
  %1953 = vmax.xlane.f32.xlu0 %v1952
  %v1954 = vpop.xlane.xlu0 %1953
  %v1955 = vsel %vm395, %v1934, -inf
  %1956 = vmax.xlane.f32.xlu0 %v1955
  %v1957 = vpop.xlane.xlu0 %1956
  %v1958 = vsel %vm395, %v1939, -inf
  %1959 = vmax.xlane.f32.xlu0 %v1958
  %v1960 = vpop.xlane.xlu0 %1959
  %v1961 = vsel %vm395, %v1942, -inf
  %1962 = vmax.xlane.f32.xlu0 %v1961
  %v1963 = vpop.xlane.xlu0 %1962
  %v1964 = vsel %vm408, %v1947, -inf
  %1965 = vmax.xlane.f32.xlu0 %v1964
  %v1966 = vpop.xlane.xlu0 %1965
  %v1967 = vsub.f32 %v1931, %v1954
  %v1968 = vsub.f32 %v1934, %v1957
  %v1969 = vsub.f32 %v1939, %v1960
  %v1970 = vsub.f32 %v1942, %v1963
  %v1971 = vsub.f32 %v1947, %v1966
  %v1972 = vmul.f32 %v1967, 1.442695
  %v1973 = vpow.pop %v1972
  %v1974 = vmul.f32 %v1968, 1.442695
  %v1975 = vpow.pop %v1974
  %v1976 = vmul.f32 %v1969, 1.442695
  %v1977 = vpow.pop %v1976
  %v1978 = vmul.f32 %v1970, 1.442695
  %v1979 = vpow.pop %v1978
  %v1980 = vmul.f32 %v1971, 1.442695
  %v1981 = vpow.pop %v1980
  %v1982 = vsel %vm395, %v1973, 0.0
  %1983 = vadd.xlane.f32.xlu0 %v1982
  %v1984 = vpop.xlane.xlu0 %1983
  %v1985 = vsel %vm395, %v1975, 0.0
  %1986 = vadd.xlane.f32.xlu0 %v1985
  %v1987 = vpop.xlane.xlu0 %1986
  %v1988 = vsel %vm395, %v1977, 0.0
  %1989 = vadd.xlane.f32.xlu0 %v1988
  %v1990 = vpop.xlane.xlu0 %1989
  %v1991 = vsel %vm395, %v1979, 0.0
  %1992 = vadd.xlane.f32.xlu0 %v1991
  %v1993 = vpop.xlane.xlu0 %1992
  %v1994 = vsel %vm408, %v1981, 0.0
  %1995 = vadd.xlane.f32.xlu0 %v1994
  %v1996 = vpop.xlane.xlu0 %1995
  %v1997 = vrcp.pop %v1984
  %v1998 = vrcp.pop %v1987
  %v1999 = vrcp.pop %v1990
  %v2000 = vrcp.pop %v1993
  %v2001 = vrcp.pop %v1996
  %v2002 = vmul.f32 %v1973, %v1997
  %v2003 = vmul.f32 %v1975, %v1998
  %v2004 = vmul.f32 %v1977, %v1999
  %v2005 = vmul.f32 %v1979, %v2000
  %v2006 = vmul.f32 %v1981, %v2001
  %v2007 = vpack.c.bf16 %v2003, %v2002
  %v2008 = vpack.c.bf16 %v2005, %v2004
  %v2009 = vpack.c.bf16 %v2006, %v2006
  %2010 = vrot.lane.b32.xlu0 %v1866, 64
  %v2011 = vpop.permute.xlu0 %2010
  %2012 = vrot.lane.b32.xlu0 %v1867, 64
  %v2013 = vpop.permute.xlu0 %2012
  %2014 = vrot.lane.b32.xlu0 %v1868, 64
  %v2015 = vpop.permute.xlu0 %2014
  %v2019 = vsel %vm395, %v2007, 0
  %v2022 = vsel %vm395, %v2008, 0
  %v2025 = vsel %vm395, %v2009, 0
  %v2028 = vsel %vm472, %v2015, 0
  %2030 = vmatprep.subr.bf16.mxu0 0
  %2031 = vmatpush1.bf16.msra.mxu0 %v2011
  %2032 = vmatprep.subr.bf16.mxu0 0
  %2033 = vmatpush1.bf16.msra.mxu0 %v2013
  %2034 = vmatprep.subr.bf16.mxu0 0
  %2035 = vmatpush1.bf16.msra.mxu0 %v2028
  %2036 = vmatprep.subr.bf16.mxu0 0
  %2037 = vmatpush1.bf16.msra.mxu0 0
  %2038 = vmatprep.subr.bf16.mxu0 0
  %2039 = vmatpush1.bf16.msra.mxu0 0
  %2040 = vmatprep.subr.bf16.mxu0 0
  %2041 = vmatpush1.bf16.msra.mxu0 0
  %2042 = vmatprep.subr.bf16.mxu0 0
  %2043 = vmatpush1.bf16.msra.mxu0 0
  %2044 = vmatprep.subr.bf16.mxu0 0
  %2045 = vmatpush1.bf16.msra.mxu0 0
  %2046 = vmatprep.subr.bf16.mxu0 0
  %2047 = vmatpush1.bf16.msra.mxu0 0
  %2048 = vmatprep.subr.bf16.mxu0 0
  %2049 = vmatpush1.bf16.msra.mxu0 0
  %2050 = vmatprep.subr.bf16.mxu0 0
  %2051 = vmatpush1.bf16.msra.mxu0 0
  %2052 = vmatprep.subr.bf16.mxu0 0
  %2053 = vmatpush1.bf16.msra.mxu0 0
  %2054 = vmatprep.subr.bf16.mxu0 0
  %2055 = vmatpush1.bf16.msra.mxu0 0
  %2056 = vmatprep.subr.bf16.mxu0 0
  %2057 = vmatpush1.bf16.msra.mxu0 0
  %2058 = vmatprep.subr.bf16.mxu0 0
  %2059 = vmatpush1.bf16.msra.mxu0 0
  %2060 = vmatprep.subr.bf16.mxu0 0
  %2061 = vmatpush1.bf16.msra.mxu0 0
  %2062 = vmatprep.mubr.bf16.mxu0 0
  %2063 = vmatmul.mubr.bf16.gmra.mrb[0].mxu0 %v2019
  %v2064 = vpop.f32.mrb[0].mxu0
  %v2065 = vadd.f32 0.0, %v2064
  %v2066 = vpop.f32.mrb[0].mxu0
  %v2067 = vpop.f32.mrb[0].mxu0
  %v2068 = vadd.f32 0.0, %v2067
  %v2069 = vpop.f32.mrb[0].mxu0
  %2070 = vmatprep.mubr.bf16.mxu0 0
  %2071 = vmatmul.mubr.bf16.gmra.mrb[0].mxu0 %v2022
  %v2072 = vpop.f32.mrb[0].mxu0
  %v2073 = vadd.f32 0.0, %v2072
  %v2074 = vpop.f32.mrb[0].mxu0
  %v2075 = vpop.f32.mrb[0].mxu0
  %v2076 = vadd.f32 0.0, %v2075
  %v2077 = vpop.f32.mrb[0].mxu0
  %2078 = vmatprep.mubr.bf16.mxu0 0
  %2079 = vmatmul.mubr.bf16.gmra.mrb[0].mxu0 %v2025
  %v2080 = vpop.f32.mrb[0].mxu0
  %v2081 = vadd.f32 0.0, %v2080
  %v2082 = vpop.f32.mrb[0].mxu0
  %v2083 = vpop.f32.mrb[0].mxu0
  %v2084 = vpop.f32.mrb[0].mxu0
  %2085 = vdwg.mxu0
  %2086 = vrot.lane.b32.xlu0 %v1866, 120
  %v2087 = vpop.permute.xlu0 %2086
  %2088 = vrot.lane.b32.xlu0 %v1867, 120
  %v2089 = vpop.permute.xlu0 %2088
  %2090 = vrot.lane.b32.xlu0 %v1868, 120
  %v2091 = vpop.permute.xlu0 %2090
  %2092 = vrot.lane.b32.xlu0 %v1866, 88
  %v2093 = vpop.permute.xlu0 %2092
  %2094 = vrot.lane.b32.xlu0 %v1867, 88
  %v2095 = vpop.permute.xlu0 %2094
  %2096 = vrot.lane.b32.xlu0 %v1868, 88
  %v2097 = vpop.permute.xlu0 %2096
  %v2099 = vsel %vm320, %v2087, 0
  %v2102 = vsel %vm320, %v2089, 0
  %v2105 = vsel %vm320, %v2091, 0
  %v2108 = vsel %vm320, %v2093, 0
  %v2111 = vsel %vm320, %v2095, 0
  %v2114 = vsel %vm320, %v2097, 0
  %2116 = vmatprep.subr.bf16.mxu0 0
  %2117 = vmatpush1.bf16.xpose.msra.mxu0 %v2108
  %2118 = vmatprep.subr.bf16.mxu0 0
  %2119 = vmatpush1.bf16.xpose.msra.mxu0 %v2111
  %2120 = vmatprep.subr.bf16.mxu0 0
  %2121 = vmatpush1.bf16.xpose.msra.mxu0 %v2114
  %2122 = vmatprep.subr.bf16.mxu0 0
  %2123 = vmatpush1.bf16.xpose.msra.mxu0 0
  %2124 = vmatprep.subr.bf16.mxu0 0
  %2125 = vmatpush1.bf16.xpose.msra.mxu0 0
  %2126 = vmatprep.subr.bf16.mxu0 0
  %2127 = vmatpush1.bf16.xpose.msra.mxu0 0
  %2128 = vmatprep.subr.bf16.mxu0 0
  %2129 = vmatpush1.bf16.xpose.msra.mxu0 0
  %2130 = vmatprep.subr.bf16.mxu0 0
  %2131 = vmatpush1.bf16.xpose.msra.mxu0 0
  %2132 = vmatprep.subr.bf16.mxu0 0
  %2133 = vmatpush1.bf16.xpose.msra.mxu0 0
  %2134 = vmatprep.subr.bf16.mxu0 0
  %2135 = vmatpush1.bf16.xpose.msra.mxu0 0
  %2136 = vmatprep.subr.bf16.mxu0 0
  %2137 = vmatpush1.bf16.xpose.msra.mxu0 0
  %2138 = vmatprep.subr.bf16.mxu0 0
  %2139 = vmatpush1.bf16.xpose.msra.mxu0 0
  %2140 = vmatprep.subr.bf16.mxu0 0
  %2141 = vmatpush1.bf16.xpose.msra.mxu0 0
  %2142 = vmatprep.subr.bf16.mxu0 0
  %2143 = vmatpush1.bf16.xpose.msra.mxu0 0
  %2144 = vmatprep.subr.bf16.mxu0 0
  %2145 = vmatpush1.bf16.xpose.msra.mxu0 0
  %2146 = vmatprep.subr.bf16.mxu0 0
  %2147 = vmatpush1.bf16.xpose.msra.mxu0 0
  %2148 = vmatprep.mubr.bf16.mxu0 0
  %2149 = vmatmul.mubr.bf16.gmra.mrb[0].mxu0 %v2099
  %v2150 = vpop.f32.mrb[0].mxu0
  %v2151 = vadd.f32 %v126, %v2150
  %v2152 = vpop.f32.mrb[0].mxu0
  %v2153 = vpop.f32.mrb[0].mxu0
  %v2154 = vadd.f32 %v127, %v2153
  %v2155 = vpop.f32.mrb[0].mxu0
  %2156 = vmatprep.mubr.bf16.mxu0 0
  %2157 = vmatmul.mubr.bf16.gmra.mrb[0].mxu0 %v2102
  %v2158 = vpop.f32.mrb[0].mxu0
  %v2159 = vadd.f32 %v128, %v2158
  %v2160 = vpop.f32.mrb[0].mxu0
  %v2161 = vpop.f32.mrb[0].mxu0
  %v2162 = vadd.f32 %v129, %v2161
  %v2163 = vpop.f32.mrb[0].mxu0
  %2164 = vmatprep.mubr.bf16.mxu0 0
  %2165 = vmatmul.mubr.bf16.gmra.mrb[0].mxu0 %v2105
  %v2166 = vpop.f32.mrb[0].mxu0
  %v2167 = vadd.f32 %v130, %v2166
  %v2168 = vpop.f32.mrb[0].mxu0
  %v2169 = vpop.f32.mrb[0].mxu0
  %v2170 = vpop.f32.mrb[0].mxu0
  %2171 = vdwg.mxu0
  %v2172 = vsel %vm395, %v2151, -inf
  %2173 = vmax.xlane.f32.xlu0 %v2172
  %v2174 = vpop.xlane.xlu0 %2173
  %v2175 = vsel %vm395, %v2154, -inf
  %2176 = vmax.xlane.f32.xlu0 %v2175
  %v2177 = vpop.xlane.xlu0 %2176
  %v2178 = vsel %vm395, %v2159, -inf
  %2179 = vmax.xlane.f32.xlu0 %v2178
  %v2180 = vpop.xlane.xlu0 %2179
  %v2181 = vsel %vm395, %v2162, -inf
  %2182 = vmax.xlane.f32.xlu0 %v2181
  %v2183 = vpop.xlane.xlu0 %2182
  %v2184 = vsel %vm408, %v2167, -inf
  %2185 = vmax.xlane.f32.xlu0 %v2184
  %v2186 = vpop.xlane.xlu0 %2185
  %v2187 = vsub.f32 %v2151, %v2174
  %v2188 = vsub.f32 %v2154, %v2177
  %v2189 = vsub.f32 %v2159, %v2180
  %v2190 = vsub.f32 %v2162, %v2183
  %v2191 = vsub.f32 %v2167, %v2186
  %v2192 = vmul.f32 %v2187, 1.442695
  %v2193 = vpow.pop %v2192
  %v2194 = vmul.f32 %v2188, 1.442695
  %v2195 = vpow.pop %v2194
  %v2196 = vmul.f32 %v2189, 1.442695
  %v2197 = vpow.pop %v2196
  %v2198 = vmul.f32 %v2190, 1.442695
  %v2199 = vpow.pop %v2198
  %v2200 = vmul.f32 %v2191, 1.442695
  %v2201 = vpow.pop %v2200
  %v2202 = vsel %vm395, %v2193, 0.0
  %2203 = vadd.xlane.f32.xlu0 %v2202
  %v2204 = vpop.xlane.xlu0 %2203
  %v2205 = vsel %vm395, %v2195, 0.0
  %2206 = vadd.xlane.f32.xlu0 %v2205
  %v2207 = vpop.xlane.xlu0 %2206
  %v2208 = vsel %vm395, %v2197, 0.0
  %2209 = vadd.xlane.f32.xlu0 %v2208
  %v2210 = vpop.xlane.xlu0 %2209
  %v2211 = vsel %vm395, %v2199, 0.0
  %2212 = vadd.xlane.f32.xlu0 %v2211
  %v2213 = vpop.xlane.xlu0 %2212
  %v2214 = vsel %vm408, %v2201, 0.0
  %2215 = vadd.xlane.f32.xlu0 %v2214
  %v2216 = vpop.xlane.xlu0 %2215
  %v2217 = vrcp.pop %v2204
  %v2218 = vrcp.pop %v2207
  %v2219 = vrcp.pop %v2210
  %v2220 = vrcp.pop %v2213
  %v2221 = vrcp.pop %v2216
  %v2222 = vmul.f32 %v2193, %v2217
  %v2223 = vmul.f32 %v2195, %v2218
  %v2224 = vmul.f32 %v2197, %v2219
  %v2225 = vmul.f32 %v2199, %v2220
  %v2226 = vmul.f32 %v2201, %v2221
  %v2227 = vpack.c.bf16 %v2223, %v2222
  %v2228 = vpack.c.bf16 %v2225, %v2224
  %v2229 = vpack.c.bf16 %v2226, %v2226
  %2230 = vrot.lane.b32.xlu0 %v1866, 56
  %v2231 = vpop.permute.xlu0 %2230
  %2232 = vrot.lane.b32.xlu0 %v1867, 56
  %v2233 = vpop.permute.xlu0 %2232
  %2234 = vrot.lane.b32.xlu0 %v1868, 56
  %v2235 = vpop.permute.xlu0 %2234
  %v2239 = vsel %vm395, %v2227, 0
  %v2242 = vsel %vm395, %v2228, 0
  %v2245 = vsel %vm395, %v2229, 0
  %v2248 = vsel %vm472, %v2235, 0
  %2250 = vmatprep.subr.bf16.mxu0 0
  %2251 = vmatpush1.bf16.msra.mxu0 %v2231
  %2252 = vmatprep.subr.bf16.mxu0 0
  %2253 = vmatpush1.bf16.msra.mxu0 %v2233
  %2254 = vmatprep.subr.bf16.mxu0 0
  %2255 = vmatpush1.bf16.msra.mxu0 %v2248
  %2256 = vmatprep.subr.bf16.mxu0 0
  %2257 = vmatpush1.bf16.msra.mxu0 0
  %2258 = vmatprep.subr.bf16.mxu0 0
  %2259 = vmatpush1.bf16.msra.mxu0 0
  %2260 = vmatprep.subr.bf16.mxu0 0
  %2261 = vmatpush1.bf16.msra.mxu0 0
  %2262 = vmatprep.subr.bf16.mxu0 0
  %2263 = vmatpush1.bf16.msra.mxu0 0
  %2264 = vmatprep.subr.bf16.mxu0 0
  %2265 = vmatpush1.bf16.msra.mxu0 0
  %2266 = vmatprep.subr.bf16.mxu0 0
  %2267 = vmatpush1.bf16.msra.mxu0 0
  %2268 = vmatprep.subr.bf16.mxu0 0
  %2269 = vmatpush1.bf16.msra.mxu0 0
  %2270 = vmatprep.subr.bf16.mxu0 0
  %2271 = vmatpush1.bf16.msra.mxu0 0
  %2272 = vmatprep.subr.bf16.mxu0 0
  %2273 = vmatpush1.bf16.msra.mxu0 0
  %2274 = vmatprep.subr.bf16.mxu0 0
  %2275 = vmatpush1.bf16.msra.mxu0 0
  %2276 = vmatprep.subr.bf16.mxu0 0
  %2277 = vmatpush1.bf16.msra.mxu0 0
  %2278 = vmatprep.subr.bf16.mxu0 0
  %2279 = vmatpush1.bf16.msra.mxu0 0
  %2280 = vmatprep.subr.bf16.mxu0 0
  %2281 = vmatpush1.bf16.msra.mxu0 0
  %2282 = vmatprep.mubr.bf16.mxu0 0
  %2283 = vmatmul.mubr.bf16.gmra.mrb[0].mxu0 %v2239
  %v2284 = vpop.f32.mrb[0].mxu0
  %v2285 = vadd.f32 0.0, %v2284
  %v2286 = vpop.f32.mrb[0].mxu0
  %v2287 = vpop.f32.mrb[0].mxu0
  %v2288 = vadd.f32 0.0, %v2287
  %v2289 = vpop.f32.mrb[0].mxu0
  %2290 = vmatprep.mubr.bf16.mxu0 0
  %2291 = vmatmul.mubr.bf16.gmra.mrb[0].mxu0 %v2242
  %v2292 = vpop.f32.mrb[0].mxu0
  %v2293 = vadd.f32 0.0, %v2292
  %v2294 = vpop.f32.mrb[0].mxu0
  %v2295 = vpop.f32.mrb[0].mxu0
  %v2296 = vadd.f32 0.0, %v2295
  %v2297 = vpop.f32.mrb[0].mxu0
  %2298 = vmatprep.mubr.bf16.mxu0 0
  %2299 = vmatmul.mubr.bf16.gmra.mrb[0].mxu0 %v2245
  %v2300 = vpop.f32.mrb[0].mxu0
  %v2301 = vadd.f32 0.0, %v2300
  %v2302 = vpop.f32.mrb[0].mxu0
  %v2303 = vpop.f32.mrb[0].mxu0
  %v2304 = vpop.f32.mrb[0].mxu0
  %2305 = vdwg.mxu0
  %2306 = vrot.lane.b32.xlu0 %v1866, 112
  %v2307 = vpop.permute.xlu0 %2306
  %2308 = vrot.lane.b32.xlu0 %v1867, 112
  %v2309 = vpop.permute.xlu0 %2308
  %2310 = vrot.lane.b32.xlu0 %v1868, 112
  %v2311 = vpop.permute.xlu0 %2310
  %2312 = vrot.lane.b32.xlu0 %v1866, 80
  %v2313 = vpop.permute.xlu0 %2312
  %2314 = vrot.lane.b32.xlu0 %v1867, 80
  %v2315 = vpop.permute.xlu0 %2314
  %2316 = vrot.lane.b32.xlu0 %v1868, 80
  %v2317 = vpop.permute.xlu0 %2316
  %v2319 = vsel %vm320, %v2307, 0
  %v2322 = vsel %vm320, %v2309, 0
  %v2325 = vsel %vm320, %v2311, 0
  %v2328 = vsel %vm320, %v2313, 0
  %v2331 = vsel %vm320, %v2315, 0
  %v2334 = vsel %vm320, %v2317, 0
  %2336 = vmatprep.subr.bf16.mxu0 0
  %2337 = vmatpush1.bf16.xpose.msra.mxu0 %v2328
  %2338 = vmatprep.subr.bf16.mxu0 0
  %2339 = vmatpush1.bf16.xpose.msra.mxu0 %v2331
  %2340 = vmatprep.subr.bf16.mxu0 0
  %2341 = vmatpush1.bf16.xpose.msra.mxu0 %v2334
  %2342 = vmatprep.subr.bf16.mxu0 0
  %2343 = vmatpush1.bf16.xpose.msra.mxu0 0
  %2344 = vmatprep.subr.bf16.mxu0 0
  %2345 = vmatpush1.bf16.xpose.msra.mxu0 0
  %2346 = vmatprep.subr.bf16.mxu0 0
  %2347 = vmatpush1.bf16.xpose.msra.mxu0 0
  %2348 = vmatprep.subr.bf16.mxu0 0
  %2349 = vmatpush1.bf16.xpose.msra.mxu0 0
  %2350 = vmatprep.subr.bf16.mxu0 0
  %2351 = vmatpush1.bf16.xpose.msra.mxu0 0
  %2352 = vmatprep.subr.bf16.mxu0 0
  %2353 = vmatpush1.bf16.xpose.msra.mxu0 0
  %2354 = vmatprep.subr.bf16.mxu0 0
  %2355 = vmatpush1.bf16.xpose.msra.mxu0 0
  %2356 = vmatprep.subr.bf16.mxu0 0
  %2357 = vmatpush1.bf16.xpose.msra.mxu0 0
  %2358 = vmatprep.subr.bf16.mxu0 0
  %2359 = vmatpush1.bf16.xpose.msra.mxu0 0
  %2360 = vmatprep.subr.bf16.mxu0 0
  %2361 = vmatpush1.bf16.xpose.msra.mxu0 0
  %2362 = vmatprep.subr.bf16.mxu0 0
  %2363 = vmatpush1.bf16.xpose.msra.mxu0 0
  %2364 = vmatprep.subr.bf16.mxu0 0
  %2365 = vmatpush1.bf16.xpose.msra.mxu0 0
  %2366 = vmatprep.subr.bf16.mxu0 0
  %2367 = vmatpush1.bf16.xpose.msra.mxu0 0
  %2368 = vmatprep.mubr.bf16.mxu0 0
  %2369 = vmatmul.mubr.bf16.gmra.mrb[0].mxu0 %v2319
  %v2370 = vpop.f32.mrb[0].mxu0
  %v2371 = vadd.f32 %v126, %v2370
  %v2372 = vpop.f32.mrb[0].mxu0
  %v2373 = vpop.f32.mrb[0].mxu0
  %v2374 = vadd.f32 %v127, %v2373
  %v2375 = vpop.f32.mrb[0].mxu0
  %2376 = vmatprep.mubr.bf16.mxu0 0
  %2377 = vmatmul.mubr.bf16.gmra.mrb[0].mxu0 %v2322
  %v2378 = vpop.f32.mrb[0].mxu0
  %v2379 = vadd.f32 %v128, %v2378
  %v2380 = vpop.f32.mrb[0].mxu0
  %v2381 = vpop.f32.mrb[0].mxu0
  %v2382 = vadd.f32 %v129, %v2381
  %v2383 = vpop.f32.mrb[0].mxu0
  %2384 = vmatprep.mubr.bf16.mxu0 0
  %2385 = vmatmul.mubr.bf16.gmra.mrb[0].mxu0 %v2325
  %v2386 = vpop.f32.mrb[0].mxu0
  %v2387 = vadd.f32 %v130, %v2386
  %v2388 = vpop.f32.mrb[0].mxu0
  %v2389 = vpop.f32.mrb[0].mxu0
  %v2390 = vpop.f32.mrb[0].mxu0
  %2391 = vdwg.mxu0
  %v2392 = vsel %vm395, %v2371, -inf
  %2393 = vmax.xlane.f32.xlu0 %v2392
  %v2394 = vpop.xlane.xlu0 %2393
  %v2395 = vsel %vm395, %v2374, -inf
  %2396 = vmax.xlane.f32.xlu0 %v2395
  %v2397 = vpop.xlane.xlu0 %2396
  %v2398 = vsel %vm395, %v2379, -inf
  %2399 = vmax.xlane.f32.xlu0 %v2398
  %v2400 = vpop.xlane.xlu0 %2399
  %v2401 = vsel %vm395, %v2382, -inf
  %2402 = vmax.xlane.f32.xlu0 %v2401
  %v2403 = vpop.xlane.xlu0 %2402
  %v2404 = vsel %vm408, %v2387, -inf
  %2405 = vmax.xlane.f32.xlu0 %v2404
  %v2406 = vpop.xlane.xlu0 %2405
  %v2407 = vsub.f32 %v2371, %v2394
  %v2408 = vsub.f32 %v2374, %v2397
  %v2409 = vsub.f32 %v2379, %v2400
  %v2410 = vsub.f32 %v2382, %v2403
  %v2411 = vsub.f32 %v2387, %v2406
  %v2412 = vmul.f32 %v2407, 1.442695
  %v2413 = vpow.pop %v2412
  %v2414 = vmul.f32 %v2408, 1.442695
  %v2415 = vpow.pop %v2414
  %v2416 = vmul.f32 %v2409, 1.442695
  %v2417 = vpow.pop %v2416
  %v2418 = vmul.f32 %v2410, 1.442695
  %v2419 = vpow.pop %v2418
  %v2420 = vmul.f32 %v2411, 1.442695
  %v2421 = vpow.pop %v2420
  %v2422 = vsel %vm395, %v2413, 0.0
  %2423 = vadd.xlane.f32.xlu0 %v2422
  %v2424 = vpop.xlane.xlu0 %2423
  %v2425 = vsel %vm395, %v2415, 0.0
  %2426 = vadd.xlane.f32.xlu0 %v2425
  %v2427 = vpop.xlane.xlu0 %2426
  %v2428 = vsel %vm395, %v2417, 0.0
  %2429 = vadd.xlane.f32.xlu0 %v2428
  %v2430 = vpop.xlane.xlu0 %2429
  %v2431 = vsel %vm395, %v2419, 0.0
  %2432 = vadd.xlane.f32.xlu0 %v2431
  %v2433 = vpop.xlane.xlu0 %2432
  %v2434 = vsel %vm408, %v2421, 0.0
  %2435 = vadd.xlane.f32.xlu0 %v2434
  %v2436 = vpop.xlane.xlu0 %2435
  %v2437 = vrcp.pop %v2424
  %v2438 = vrcp.pop %v2427
  %v2439 = vrcp.pop %v2430
  %v2440 = vrcp.pop %v2433
  %v2441 = vrcp.pop %v2436
  %v2442 = vmul.f32 %v2413, %v2437
  %v2443 = vmul.f32 %v2415, %v2438
  %v2444 = vmul.f32 %v2417, %v2439
  %v2445 = vmul.f32 %v2419, %v2440
  %v2446 = vmul.f32 %v2421, %v2441
  %v2447 = vpack.c.bf16 %v2443, %v2442
  %v2448 = vpack.c.bf16 %v2445, %v2444
  %v2449 = vpack.c.bf16 %v2446, %v2446
  %2450 = vrot.lane.b32.xlu0 %v1866, 48
  %v2451 = vpop.permute.xlu0 %2450
  %2452 = vrot.lane.b32.xlu0 %v1867, 48
  %v2453 = vpop.permute.xlu0 %2452
  %2454 = vrot.lane.b32.xlu0 %v1868, 48
  %v2455 = vpop.permute.xlu0 %2454
  %v2459 = vsel %vm395, %v2447, 0
  %v2462 = vsel %vm395, %v2448, 0
  %v2465 = vsel %vm395, %v2449, 0
  %v2468 = vsel %vm472, %v2455, 0
  %2470 = vmatprep.subr.bf16.mxu0 0
  %2471 = vmatpush1.bf16.msra.mxu0 %v2451
  %2472 = vmatprep.subr.bf16.mxu0 0
  %2473 = vmatpush1.bf16.msra.mxu0 %v2453
  %2474 = vmatprep.subr.bf16.mxu0 0
  %2475 = vmatpush1.bf16.msra.mxu0 %v2468
  %2476 = vmatprep.subr.bf16.mxu0 0
  %2477 = vmatpush1.bf16.msra.mxu0 0
  %2478 = vmatprep.subr.bf16.mxu0 0
  %2479 = vmatpush1.bf16.msra.mxu0 0
  %2480 = vmatprep.subr.bf16.mxu0 0
  %2481 = vmatpush1.bf16.msra.mxu0 0
  %2482 = vmatprep.subr.bf16.mxu0 0
  %2483 = vmatpush1.bf16.msra.mxu0 0
  %2484 = vmatprep.subr.bf16.mxu0 0
  %2485 = vmatpush1.bf16.msra.mxu0 0
  %2486 = vmatprep.subr.bf16.mxu0 0
  %2487 = vmatpush1.bf16.msra.mxu0 0
  %2488 = vmatprep.subr.bf16.mxu0 0
  %2489 = vmatpush1.bf16.msra.mxu0 0
  %2490 = vmatprep.subr.bf16.mxu0 0
  %2491 = vmatpush1.bf16.msra.mxu0 0
  %2492 = vmatprep.subr.bf16.mxu0 0
  %2493 = vmatpush1.bf16.msra.mxu0 0
  %2494 = vmatprep.subr.bf16.mxu0 0
  %2495 = vmatpush1.bf16.msra.mxu0 0
  %2496 = vmatprep.subr.bf16.mxu0 0
  %2497 = vmatpush1.bf16.msra.mxu0 0
  %2498 = vmatprep.subr.bf16.mxu0 0
  %2499 = vmatpush1.bf16.msra.mxu0 0
  %2500 = vmatprep.subr.bf16.mxu0 0
  %2501 = vmatpush1.bf16.msra.mxu0 0
  %2502 = vmatprep.mubr.bf16.mxu0 0
  %2503 = vmatmul.mubr.bf16.gmra.mrb[0].mxu0 %v2459
  %v2504 = vpop.f32.mrb[0].mxu0
  %v2505 = vadd.f32 0.0, %v2504
  %v2506 = vpop.f32.mrb[0].mxu0
  %v2507 = vpop.f32.mrb[0].mxu0
  %v2508 = vadd.f32 0.0, %v2507
  %v2509 = vpop.f32.mrb[0].mxu0
  %2510 = vmatprep.mubr.bf16.mxu0 0
  %2511 = vmatmul.mubr.bf16.gmra.mrb[0].mxu0 %v2462
  %v2512 = vpop.f32.mrb[0].mxu0
  %v2513 = vadd.f32 0.0, %v2512
  %v2514 = vpop.f32.mrb[0].mxu0
  %v2515 = vpop.f32.mrb[0].mxu0
  %v2516 = vadd.f32 0.0, %v2515
  %v2517 = vpop.f32.mrb[0].mxu0
  %2518 = vmatprep.mubr.bf16.mxu0 0
  %2519 = vmatmul.mubr.bf16.gmra.mrb[0].mxu0 %v2465
  %v2520 = vpop.f32.mrb[0].mxu0
  %v2521 = vadd.f32 0.0, %v2520
  %v2522 = vpop.f32.mrb[0].mxu0
  %v2523 = vpop.f32.mrb[0].mxu0
  %v2524 = vpop.f32.mrb[0].mxu0
  %2525 = vdwg.mxu0
  %2526 = vrot.lane.b32.xlu0 %v1866, 104
  %v2527 = vpop.permute.xlu0 %2526
  %2528 = vrot.lane.b32.xlu0 %v1867, 104
  %v2529 = vpop.permute.xlu0 %2528
  %2530 = vrot.lane.b32.xlu0 %v1868, 104
  %v2531 = vpop.permute.xlu0 %2530
  %2532 = vrot.lane.b32.xlu0 %v1866, 72
  %v2533 = vpop.permute.xlu0 %2532
  %2534 = vrot.lane.b32.xlu0 %v1867, 72
  %v2535 = vpop.permute.xlu0 %2534
  %2536 = vrot.lane.b32.xlu0 %v1868, 72
  %v2537 = vpop.permute.xlu0 %2536
  %v2539 = vsel %vm320, %v2527, 0
  %v2542 = vsel %vm320, %v2529, 0
  %v2545 = vsel %vm320, %v2531, 0
  %v2548 = vsel %vm320, %v2533, 0
  %v2551 = vsel %vm320, %v2535, 0
  %v2554 = vsel %vm320, %v2537, 0
  %2556 = vmatprep.subr.bf16.mxu0 0
  %2557 = vmatpush1.bf16.xpose.msra.mxu0 %v2548
  %2558 = vmatprep.subr.bf16.mxu0 0
  %2559 = vmatpush1.bf16.xpose.msra.mxu0 %v2551
  %2560 = vmatprep.subr.bf16.mxu0 0
  %2561 = vmatpush1.bf16.xpose.msra.mxu0 %v2554
  %2562 = vmatprep.subr.bf16.mxu0 0
  %2563 = vmatpush1.bf16.xpose.msra.mxu0 0
  %2564 = vmatprep.subr.bf16.mxu0 0
  %2565 = vmatpush1.bf16.xpose.msra.mxu0 0
  %2566 = vmatprep.subr.bf16.mxu0 0
  %2567 = vmatpush1.bf16.xpose.msra.mxu0 0
  %2568 = vmatprep.subr.bf16.mxu0 0
  %2569 = vmatpush1.bf16.xpose.msra.mxu0 0
  %2570 = vmatprep.subr.bf16.mxu0 0
  %2571 = vmatpush1.bf16.xpose.msra.mxu0 0
  %2572 = vmatprep.subr.bf16.mxu0 0
  %2573 = vmatpush1.bf16.xpose.msra.mxu0 0
  %2574 = vmatprep.subr.bf16.mxu0 0
  %2575 = vmatpush1.bf16.xpose.msra.mxu0 0
  %2576 = vmatprep.subr.bf16.mxu0 0
  %2577 = vmatpush1.bf16.xpose.msra.mxu0 0
  %2578 = vmatprep.subr.bf16.mxu0 0
  %2579 = vmatpush1.bf16.xpose.msra.mxu0 0
  %2580 = vmatprep.subr.bf16.mxu0 0
  %2581 = vmatpush1.bf16.xpose.msra.mxu0 0
  %2582 = vmatprep.subr.bf16.mxu0 0
  %2583 = vmatpush1.bf16.xpose.msra.mxu0 0
  %2584 = vmatprep.subr.bf16.mxu0 0
  %2585 = vmatpush1.bf16.xpose.msra.mxu0 0
  %2586 = vmatprep.subr.bf16.mxu0 0
  %2587 = vmatpush1.bf16.xpose.msra.mxu0 0
  %2588 = vmatprep.mubr.bf16.mxu0 0
  %2589 = vmatmul.mubr.bf16.gmra.mrb[0].mxu0 %v2539
  %v2590 = vpop.f32.mrb[0].mxu0
  %v2591 = vadd.f32 %v126, %v2590
  %v2592 = vpop.f32.mrb[0].mxu0
  %v2593 = vpop.f32.mrb[0].mxu0
  %v2594 = vadd.f32 %v127, %v2593
  %v2595 = vpop.f32.mrb[0].mxu0
  %2596 = vmatprep.mubr.bf16.mxu0 0
  %2597 = vmatmul.mubr.bf16.gmra.mrb[0].mxu0 %v2542
  %v2598 = vpop.f32.mrb[0].mxu0
  %v2599 = vadd.f32 %v128, %v2598
  %v2600 = vpop.f32.mrb[0].mxu0
  %v2601 = vpop.f32.mrb[0].mxu0
  %v2602 = vadd.f32 %v129, %v2601
  %v2603 = vpop.f32.mrb[0].mxu0
  %2604 = vmatprep.mubr.bf16.mxu0 0
  %2605 = vmatmul.mubr.bf16.gmra.mrb[0].mxu0 %v2545
  %v2606 = vpop.f32.mrb[0].mxu0
  %v2607 = vadd.f32 %v130, %v2606
  %v2608 = vpop.f32.mrb[0].mxu0
  %v2609 = vpop.f32.mrb[0].mxu0
  %v2610 = vpop.f32.mrb[0].mxu0
  %2611 = vdwg.mxu0
  %v2612 = vsel %vm395, %v2591, -inf
  %2613 = vmax.xlane.f32.xlu0 %v2612
  %v2614 = vpop.xlane.xlu0 %2613
  %v2615 = vsel %vm395, %v2594, -inf
  %2616 = vmax.xlane.f32.xlu0 %v2615
  %v2617 = vpop.xlane.xlu0 %2616
  %v2618 = vsel %vm395, %v2599, -inf
  %2619 = vmax.xlane.f32.xlu0 %v2618
  %v2620 = vpop.xlane.xlu0 %2619
  %v2621 = vsel %vm395, %v2602, -inf
  %2622 = vmax.xlane.f32.xlu0 %v2621
  %v2623 = vpop.xlane.xlu0 %2622
  %v2624 = vsel %vm408, %v2607, -inf
  %2625 = vmax.xlane.f32.xlu0 %v2624
  %v2626 = vpop.xlane.xlu0 %2625
  %v2627 = vsub.f32 %v2591, %v2614
  %v2628 = vsub.f32 %v2594, %v2617
  %v2629 = vsub.f32 %v2599, %v2620
  %v2630 = vsub.f32 %v2602, %v2623
  %v2631 = vsub.f32 %v2607, %v2626
  %v2632 = vmul.f32 %v2627, 1.442695
  %v2633 = vpow.pop %v2632
  %v2634 = vmul.f32 %v2628, 1.442695
  %v2635 = vpow.pop %v2634
  %v2636 = vmul.f32 %v2629, 1.442695
  %v2637 = vpow.pop %v2636
  %v2638 = vmul.f32 %v2630, 1.442695
  %v2639 = vpow.pop %v2638
  %v2640 = vmul.f32 %v2631, 1.442695
  %v2641 = vpow.pop %v2640
  %v2642 = vsel %vm395, %v2633, 0.0
  %2643 = vadd.xlane.f32.xlu0 %v2642
  %v2644 = vpop.xlane.xlu0 %2643
  %v2645 = vsel %vm395, %v2635, 0.0
  %2646 = vadd.xlane.f32.xlu0 %v2645
  %v2647 = vpop.xlane.xlu0 %2646
  %v2648 = vsel %vm395, %v2637, 0.0
  %2649 = vadd.xlane.f32.xlu0 %v2648
  %v2650 = vpop.xlane.xlu0 %2649
  %v2651 = vsel %vm395, %v2639, 0.0
  %2652 = vadd.xlane.f32.xlu0 %v2651
  %v2653 = vpop.xlane.xlu0 %2652
  %v2654 = vsel %vm408, %v2641, 0.0
  %2655 = vadd.xlane.f32.xlu0 %v2654
  %v2656 = vpop.xlane.xlu0 %2655
  %v2657 = vrcp.pop %v2644
  %v2658 = vrcp.pop %v2647
  %v2659 = vrcp.pop %v2650
  %v2660 = vrcp.pop %v2653
  %v2661 = vrcp.pop %v2656
  %v2662 = vmul.f32 %v2633, %v2657
  %v2663 = vmul.f32 %v2635, %v2658
  %v2664 = vmul.f32 %v2637, %v2659
  %v2665 = vmul.f32 %v2639, %v2660
  %v2666 = vmul.f32 %v2641, %v2661
  %v2667 = vpack.c.bf16 %v2663, %v2662
  %v2668 = vpack.c.bf16 %v2665, %v2664
  %v2669 = vpack.c.bf16 %v2666, %v2666
  %2670 = vrot.lane.b32.xlu0 %v1866, 40
  %v2671 = vpop.permute.xlu0 %2670
  %2672 = vrot.lane.b32.xlu0 %v1867, 40
  %v2673 = vpop.permute.xlu0 %2672
  %2674 = vrot.lane.b32.xlu0 %v1868, 40
  %v2675 = vpop.permute.xlu0 %2674
  %v2679 = vsel %vm395, %v2667, 0
  %v2682 = vsel %vm395, %v2668, 0
  %v2685 = vsel %vm395, %v2669, 0
  %v2688 = vsel %vm472, %v2675, 0
  %2690 = vmatprep.subr.bf16.mxu0 0
  %2691 = vmatpush1.bf16.msra.mxu0 %v2671
  %2692 = vmatprep.subr.bf16.mxu0 0
  %2693 = vmatpush1.bf16.msra.mxu0 %v2673
  %2694 = vmatprep.subr.bf16.mxu0 0
  %2695 = vmatpush1.bf16.msra.mxu0 %v2688
  %2696 = vmatprep.subr.bf16.mxu0 0
  %2697 = vmatpush1.bf16.msra.mxu0 0
  %2698 = vmatprep.subr.bf16.mxu0 0
  %2699 = vmatpush1.bf16.msra.mxu0 0
  %2700 = vmatprep.subr.bf16.mxu0 0
  %2701 = vmatpush1.bf16.msra.mxu0 0
  %2702 = vmatprep.subr.bf16.mxu0 0
  %2703 = vmatpush1.bf16.msra.mxu0 0
  %2704 = vmatprep.subr.bf16.mxu0 0
  %2705 = vmatpush1.bf16.msra.mxu0 0
  %2706 = vmatprep.subr.bf16.mxu0 0
  %2707 = vmatpush1.bf16.msra.mxu0 0
  %2708 = vmatprep.subr.bf16.mxu0 0
  %2709 = vmatpush1.bf16.msra.mxu0 0
  %2710 = vmatprep.subr.bf16.mxu0 0
  %2711 = vmatpush1.bf16.msra.mxu0 0
  %2712 = vmatprep.subr.bf16.mxu0 0
  %2713 = vmatpush1.bf16.msra.mxu0 0
  %2714 = vmatprep.subr.bf16.mxu0 0
  %2715 = vmatpush1.bf16.msra.mxu0 0
  %2716 = vmatprep.subr.bf16.mxu0 0
  %2717 = vmatpush1.bf16.msra.mxu0 0
  %2718 = vmatprep.subr.bf16.mxu0 0
  %2719 = vmatpush1.bf16.msra.mxu0 0
  %2720 = vmatprep.subr.bf16.mxu0 0
  %2721 = vmatpush1.bf16.msra.mxu0 0
  %2722 = vmatprep.mubr.bf16.mxu0 0
  %2723 = vmatmul.mubr.bf16.gmra.mrb[0].mxu0 %v2679
  %v2724 = vpop.f32.mrb[0].mxu0
  %v2725 = vadd.f32 0.0, %v2724
  %v2726 = vpop.f32.mrb[0].mxu0
  %v2727 = vpop.f32.mrb[0].mxu0
  %v2728 = vadd.f32 0.0, %v2727
  %v2729 = vpop.f32.mrb[0].mxu0
  %2730 = vmatprep.mubr.bf16.mxu0 0
  %2731 = vmatmul.mubr.bf16.gmra.mrb[0].mxu0 %v2682
  %v2732 = vpop.f32.mrb[0].mxu0
  %v2733 = vadd.f32 0.0, %v2732
  %v2734 = vpop.f32.mrb[0].mxu0
  %v2735 = vpop.f32.mrb[0].mxu0
  %v2736 = vadd.f32 0.0, %v2735
  %v2737 = vpop.f32.mrb[0].mxu0
  %2738 = vmatprep.mubr.bf16.mxu0 0
  %2739 = vmatmul.mubr.bf16.gmra.mrb[0].mxu0 %v2685
  %v2740 = vpop.f32.mrb[0].mxu0
  %v2741 = vadd.f32 0.0, %v2740
  %v2742 = vpop.f32.mrb[0].mxu0
  %v2743 = vpop.f32.mrb[0].mxu0
  %v2744 = vpop.f32.mrb[0].mxu0
  %2745 = vdwg.mxu0
  %2751 = vrot.lane.b32.xlu0 %v2285, 8
  %v2752 = vpop.permute.xlu0 %2751
  %2753 = vrot.lane.b32.xlu0 %v2288, 8
  %v2754 = vpop.permute.xlu0 %2753
  %2755 = vrot.lane.b32.xlu0 %v2293, 8
  %v2756 = vpop.permute.xlu0 %2755
  %2757 = vrot.lane.b32.xlu0 %v2296, 8
  %v2758 = vpop.permute.xlu0 %2757
  %2759 = vrot.lane.b32.xlu0 %v2301, 8
  %v2760 = vpop.permute.xlu0 %2759
  %2771 = vrot.lane.b32.xlu0 %v2505, 16
  %v2772 = vpop.permute.xlu0 %2771
  %2773 = vrot.lane.b32.xlu0 %v2508, 16
  %v2774 = vpop.permute.xlu0 %2773
  %2775 = vrot.lane.b32.xlu0 %v2513, 16
  %v2776 = vpop.permute.xlu0 %2775
  %2777 = vrot.lane.b32.xlu0 %v2516, 16
  %v2778 = vpop.permute.xlu0 %2777
  %2779 = vrot.lane.b32.xlu0 %v2521, 16
  %v2780 = vpop.permute.xlu0 %2779
  %2791 = vrot.lane.b32.xlu0 %v2725, 24
  %v2792 = vpop.permute.xlu0 %2791
  %2793 = vrot.lane.b32.xlu0 %v2728, 24
  %v2794 = vpop.permute.xlu0 %2793
  %2795 = vrot.lane.b32.xlu0 %v2733, 24
  %v2796 = vpop.permute.xlu0 %2795
  %2797 = vrot.lane.b32.xlu0 %v2736, 24
  %v2798 = vpop.permute.xlu0 %2797
  %2799 = vrot.lane.b32.xlu0 %v2741, 24
  %v2800 = vpop.permute.xlu0 %2799
  %v2806 = vsel %vm320, %v2065, %v2752
  %v2807 = vsel %vm320, %v2068, %v2754
  %v2808 = vsel %vm320, %v2073, %v2756
  %v2809 = vsel %vm320, %v2076, %v2758
  %v2810 = vsel %vm320, %v2081, %v2760
  %v2811 = vsel %vm1257, %v2806, %v2772
  %v2812 = vsel %vm1257, %v2807, %v2774
  %v2813 = vsel %vm1257, %v2808, %v2776
  %v2814 = vsel %vm1257, %v2809, %v2778
  %v2815 = vsel %vm1257, %v2810, %v2780
  %v2816 = vsel %vm1263, %v2811, %v2792
  %v2817 = vsel %vm1263, %v2812, %v2794
  %v2818 = vsel %vm1263, %v2813, %v2796
  %v2819 = vsel %vm1263, %v2814, %v2798
  %v2820 = vsel %vm1263, %v2815, %v2800
  %v2821 = vpack.c.bf16 %v2817, %v2816
  %v2822 = vpack.c.bf16 %v2819, %v2818
  %v2823 = vpack.c.bf16 %v2820, %v2820
  %v2824 = vld [vmem:[%s1 + $0x80] sm:$0xf]
  %v2825 = vld [vmem:[%s1 + $0x84] sm:$0xf]
  %v2826 = vld [vmem:[%s1 + $0x88] sm:$0xf]
  %v2827 = vld [vmem:[%s1 + $0x8c] sm:$0xf]
  %v2828 = vld [vmem:[%s2 + $0x4f] sm:$0x1]
  %v2829 = vlaneseq
  %v2830 = vshrl.u32 %v2829, 7
  %v2831 = vsub.s32 0, %v2830
  %v2832 = vrot.slane %v2828, %v2831
  %v2837 = vunpack.c.l.b16 %v2824
  %v2838 = vunpack.c.l.b16 %v2825
  %v2839 = vunpack.c.l.b16 %v2826
  %v2840 = vunpack.c.l.b16 %v2827
  %v2841 = vpack.c.b16 %v2838, %v2837
  %v2842 = vpack.c.b16 %v2840, %v2839
  %v2846 = vsel %vm133, %v2821, 0
  %v2849 = vsel %vm133, %v2822, 0
  %v2852 = vsel %vm133, %v2823, 0
  %2854 = vmatprep.subr.bf16.mxu0 0
  %2855 = vmatpush1.bf16.msra.mxu0 %v2841
  %2856 = vmatprep.subr.bf16.mxu0 0
  %2857 = vmatpush1.bf16.msra.mxu0 %v2842
  %2858 = vmatprep.subr.bf16.mxu0 0
  %2859 = vmatpush1.bf16.msra.mxu0 0
  %2860 = vmatprep.subr.bf16.mxu0 0
  %2861 = vmatpush1.bf16.msra.mxu0 0
  %2862 = vmatprep.subr.bf16.mxu0 0
  %2863 = vmatpush1.bf16.msra.mxu0 0
  %2864 = vmatprep.subr.bf16.mxu0 0
  %2865 = vmatpush1.bf16.msra.mxu0 0
  %2866 = vmatprep.subr.bf16.mxu0 0
  %2867 = vmatpush1.bf16.msra.mxu0 0
  %2868 = vmatprep.subr.bf16.mxu0 0
  %2869 = vmatpush1.bf16.msra.mxu0 0
  %2870 = vmatprep.subr.bf16.mxu0 0
  %2871 = vmatpush1.bf16.msra.mxu0 0
  %2872 = vmatprep.subr.bf16.mxu0 0
  %2873 = vmatpush1.bf16.msra.mxu0 0
  %2874 = vmatprep.subr.bf16.mxu0 0
  %2875 = vmatpush1.bf16.msra.mxu0 0
  %2876 = vmatprep.subr.bf16.mxu0 0
  %2877 = vmatpush1.bf16.msra.mxu0 0
  %2878 = vmatprep.subr.bf16.mxu0 0
  %2879 = vmatpush1.bf16.msra.mxu0 0
  %2880 = vmatprep.subr.bf16.mxu0 0
  %2881 = vmatpush1.bf16.msra.mxu0 0
  %2882 = vmatprep.subr.bf16.mxu0 0
  %2883 = vmatpush1.bf16.msra.mxu0 0
  %2884 = vmatprep.subr.bf16.mxu0 0
  %2885 = vmatpush1.bf16.msra.mxu0 0
  %2886 = vmatprep.mubr.bf16.mxu0 0
  %2887 = vmatmul.mubr.bf16.gmra.mrb[0].mxu0 %v2846
  %v2888 = vpop.f32.mrb[0].mxu0
  %v2889 = vadd.f32 %v2832, %v2888
  %v2890 = vpop.f32.mrb[0].mxu0
  %v2891 = vpop.f32.mrb[0].mxu0
  %v2892 = vadd.f32 %v2832, %v2891
  %v2893 = vpop.f32.mrb[0].mxu0
  %2894 = vmatprep.mubr.bf16.mxu0 0
  %2895 = vmatmul.mubr.bf16.gmra.mrb[0].mxu0 %v2849
  %v2896 = vpop.f32.mrb[0].mxu0
  %v2897 = vadd.f32 %v2832, %v2896
  %v2898 = vpop.f32.mrb[0].mxu0
  %v2899 = vpop.f32.mrb[0].mxu0
  %v2900 = vadd.f32 %v2832, %v2899
  %v2901 = vpop.f32.mrb[0].mxu0
  %2902 = vmatprep.mubr.bf16.mxu0 0
  %2903 = vmatmul.mubr.bf16.gmra.mrb[0].mxu0 %v2852
  %v2904 = vpop.f32.mrb[0].mxu0
  %v2905 = vadd.f32 %v2832, %v2904
  %v2906 = vpop.f32.mrb[0].mxu0
  %v2907 = vpop.f32.mrb[0].mxu0
  %v2908 = vpop.f32.mrb[0].mxu0
  %2909 = vdwg.mxu0
  %v2910 = vadd.f32 %v1687, %v2889
  %v2911 = vadd.f32 %v1688, %v2892
  %v2912 = vadd.f32 %v1689, %v2897
  %v2913 = vadd.f32 %v1690, %v2900
  %v2914 = vadd.f32 %v1691, %v2905
  %v2915 = vld [vmem:[%s2 + $0x50] sm:$0x1]
  %v2916 = vld [vmem:[%s2 + $0x51] sm:$0x1]
  %v2917 = vsel %vm133, %v2910, 0.0
  %2918 = vadd.xlane.f32.xlu0 %v2917
  %v2919 = vpop.xlane.xlu0 %2918
  %v2920 = vsel %vm133, %v2911, 0.0
  %2921 = vadd.xlane.f32.xlu0 %v2920
  %v2922 = vpop.xlane.xlu0 %2921
  %v2923 = vsel %vm133, %v2912, 0.0
  %2924 = vadd.xlane.f32.xlu0 %v2923
  %v2925 = vpop.xlane.xlu0 %2924
  %v2926 = vsel %vm133, %v2913, 0.0
  %2927 = vadd.xlane.f32.xlu0 %v2926
  %v2928 = vpop.xlane.xlu0 %2927
  %v2929 = vsel %vm146, %v2914, 0.0
  %2930 = vadd.xlane.f32.xlu0 %v2929
  %v2931 = vpop.xlane.xlu0 %2930
  %v2932 = vmul.f32 %v2919, %v150
  %v2933 = vmul.f32 %v2922, %v150
  %v2934 = vmul.f32 %v2925, %v150
  %v2935 = vmul.f32 %v2928, %v150
  %v2936 = vmul.f32 %v2931, %v150
  %v2937 = vsub.f32 %v2910, %v2932
  %v2938 = vsub.f32 %v2911, %v2933
  %v2939 = vsub.f32 %v2912, %v2934
  %v2940 = vsub.f32 %v2913, %v2935
  %v2941 = vsub.f32 %v2914, %v2936
  %v2942 = vmul.f32 %v2937, %v2937
  %v2943 = vmul.f32 %v2938, %v2938
  %v2944 = vmul.f32 %v2939, %v2939
  %v2945 = vmul.f32 %v2940, %v2940
  %v2946 = vmul.f32 %v2941, %v2941
  %v2947 = vsel %vm133, %v2942, 0.0
  %2948 = vadd.xlane.f32.xlu0 %v2947
  %v2949 = vpop.xlane.xlu0 %2948
  %v2950 = vsel %vm133, %v2943, 0.0
  %2951 = vadd.xlane.f32.xlu0 %v2950
  %v2952 = vpop.xlane.xlu0 %2951
  %v2953 = vsel %vm133, %v2944, 0.0
  %2954 = vadd.xlane.f32.xlu0 %v2953
  %v2955 = vpop.xlane.xlu0 %2954
  %v2956 = vsel %vm133, %v2945, 0.0
  %2957 = vadd.xlane.f32.xlu0 %v2956
  %v2958 = vpop.xlane.xlu0 %2957
  %v2959 = vsel %vm146, %v2946, 0.0
  %2960 = vadd.xlane.f32.xlu0 %v2959
  %v2961 = vpop.xlane.xlu0 %2960
  %v2962 = vmul.f32 %v2949, %v150
  %v2963 = vmul.f32 %v2952, %v150
  %v2964 = vmul.f32 %v2955, %v150
  %v2965 = vmul.f32 %v2958, %v150
  %v2966 = vmul.f32 %v2961, %v150
  %v2967 = vadd.f32 %v2962, 1e-05
  %v2968 = vadd.f32 %v2963, 1e-05
  %v2969 = vadd.f32 %v2964, 1e-05
  %v2970 = vadd.f32 %v2965, 1e-05
  %v2971 = vadd.f32 %v2966, 1e-05
  %v2972 = vrsqrt.pop %v2967
  %v2973 = vrsqrt.pop %v2968
  %v2974 = vrsqrt.pop %v2969
  %v2975 = vrsqrt.pop %v2970
  %v2976 = vrsqrt.pop %v2971
  %v2977 = vmul.f32 %v2937, %v2972
  %v2978 = vmul.f32 %v2938, %v2973
  %v2979 = vmul.f32 %v2939, %v2974
  %v2980 = vmul.f32 %v2940, %v2975
  %v2981 = vmul.f32 %v2941, %v2976
  %v2982 = vlaneseq
  %v2983 = vshrl.u32 %v2982, 7
  %v2984 = vsub.s32 0, %v2983
  %v2985 = vrot.slane %v2915, %v2984
  %v2986 = vmul.f32 %v2977, %v2985
  %v2987 = vmul.f32 %v2978, %v2985
  %v2988 = vmul.f32 %v2979, %v2985
  %v2989 = vmul.f32 %v2980, %v2985
  %v2990 = vmul.f32 %v2981, %v2985
  %v2991 = vlaneseq
  %v2992 = vshrl.u32 %v2991, 7
  %v2993 = vsub.s32 0, %v2992
  %v2994 = vrot.slane %v2916, %v2993
  %v2995 = vadd.f32 %v2986, %v2994
  %v2996 = vadd.f32 %v2987, %v2994
  %v2997 = vadd.f32 %v2988, %v2994
  %v2998 = vadd.f32 %v2989, %v2994
  %v2999 = vadd.f32 %v2990, %v2994
  %v3000 = vpack.c.bf16 %v2996, %v2995
  %v3001 = vpack.c.bf16 %v2998, %v2997
  %v3002 = vpack.c.bf16 %v2999, %v2999
  %v3003 = vld [vmem:[%s1 + $0x90] sm:$0xf]
  %v3004 = vld [vmem:[%s1 + $0x94] sm:$0xf]
  %v3005 = vld [vmem:[%s1 + $0x98] sm:$0xf]
  %v3006 = vld [vmem:[%s1 + $0x9c] sm:$0xf]
  %v3007 = vld [vmem:[%s2 + $0x52] sm:$0x1]
  %v3008 = vlaneseq
  %v3009 = vshrl.u32 %v3008, 7
  %v3010 = vsub.s32 0, %v3009
  %v3011 = vrot.slane %v3007, %v3010
  %v3016 = vunpack.c.l.b16 %v3003
  %v3017 = vunpack.c.l.b16 %v3004
  %v3018 = vunpack.c.l.b16 %v3005
  %v3019 = vunpack.c.l.b16 %v3006
  %v3020 = vpack.c.b16 %v3017, %v3016
  %v3021 = vpack.c.b16 %v3019, %v3018
  %v3025 = vsel %vm133, %v3000, 0
  %v3028 = vsel %vm133, %v3001, 0
  %v3031 = vsel %vm133, %v3002, 0
  %3033 = vmatprep.subr.bf16.mxu0 0
  %3034 = vmatpush1.bf16.msra.mxu0 %v3020
  %3035 = vmatprep.subr.bf16.mxu0 0
  %3036 = vmatpush1.bf16.msra.mxu0 %v3021
  %3037 = vmatprep.subr.bf16.mxu0 0
  %3038 = vmatpush1.bf16.msra.mxu0 0
  %3039 = vmatprep.subr.bf16.mxu0 0
  %3040 = vmatpush1.bf16.msra.mxu0 0
  %3041 = vmatprep.subr.bf16.mxu0 0
  %3042 = vmatpush1.bf16.msra.mxu0 0
  %3043 = vmatprep.subr.bf16.mxu0 0
  %3044 = vmatpush1.bf16.msra.mxu0 0
  %3045 = vmatprep.subr.bf16.mxu0 0
  %3046 = vmatpush1.bf16.msra.mxu0 0
  %3047 = vmatprep.subr.bf16.mxu0 0
  %3048 = vmatpush1.bf16.msra.mxu0 0
  %3049 = vmatprep.subr.bf16.mxu0 0
  %3050 = vmatpush1.bf16.msra.mxu0 0
  %3051 = vmatprep.subr.bf16.mxu0 0
  %3052 = vmatpush1.bf16.msra.mxu0 0
  %3053 = vmatprep.subr.bf16.mxu0 0
  %3054 = vmatpush1.bf16.msra.mxu0 0
  %3055 = vmatprep.subr.bf16.mxu0 0
  %3056 = vmatpush1.bf16.msra.mxu0 0
  %3057 = vmatprep.subr.bf16.mxu0 0
  %3058 = vmatpush1.bf16.msra.mxu0 0
  %3059 = vmatprep.subr.bf16.mxu0 0
  %3060 = vmatpush1.bf16.msra.mxu0 0
  %3061 = vmatprep.subr.bf16.mxu0 0
  %3062 = vmatpush1.bf16.msra.mxu0 0
  %3063 = vmatprep.subr.bf16.mxu0 0
  %3064 = vmatpush1.bf16.msra.mxu0 0
  %3065 = vmatprep.mubr.bf16.mxu0 0
  %3066 = vmatmul.mubr.bf16.gmra.mrb[0].mxu0 %v3025
  %v3067 = vpop.f32.mrb[0].mxu0
  %v3068 = vadd.f32 %v3011, %v3067
  %v3069 = vpop.f32.mrb[0].mxu0
  %v3070 = vpop.f32.mrb[0].mxu0
  %v3071 = vadd.f32 %v3011, %v3070
  %v3072 = vpop.f32.mrb[0].mxu0
  %3073 = vmatprep.mubr.bf16.mxu0 0
  %3074 = vmatmul.mubr.bf16.gmra.mrb[0].mxu0 %v3028
  %v3075 = vpop.f32.mrb[0].mxu0
  %v3076 = vadd.f32 %v3011, %v3075
  %v3077 = vpop.f32.mrb[0].mxu0
  %v3078 = vpop.f32.mrb[0].mxu0
  %v3079 = vadd.f32 %v3011, %v3078
  %v3080 = vpop.f32.mrb[0].mxu0
  %3081 = vmatprep.mubr.bf16.mxu0 0
  %3082 = vmatmul.mubr.bf16.gmra.mrb[0].mxu0 %v3031
  %v3083 = vpop.f32.mrb[0].mxu0
  %v3084 = vadd.f32 %v3011, %v3083
  %v3085 = vpop.f32.mrb[0].mxu0
  %v3086 = vpop.f32.mrb[0].mxu0
  %v3087 = vpop.f32.mrb[0].mxu0
  %3088 = vdwg.mxu0
  %v3089 = vmul.f32 %v3068, %v3068
  %v3090 = vmul.f32 %v3071, %v3071
  %v3091 = vmul.f32 %v3076, %v3076
  %v3092 = vmul.f32 %v3079, %v3079
  %v3093 = vmul.f32 %v3084, %v3084
  %v3094 = vmul.f32 %v3068, %v3089
  %v3095 = vmul.f32 %v3071, %v3090
  %v3096 = vmul.f32 %v3076, %v3091
  %v3097 = vmul.f32 %v3079, %v3092
  %v3098 = vmul.f32 %v3084, %v3093
  %v3099 = vmul.f32 %v3094, 0.044715
  %v3100 = vmul.f32 %v3095, 0.044715
  %v3101 = vmul.f32 %v3096, 0.044715
  %v3102 = vmul.f32 %v3097, 0.044715
  %v3103 = vmul.f32 %v3098, 0.044715
  %v3104 = vadd.f32 %v3068, %v3099
  %v3105 = vadd.f32 %v3071, %v3100
  %v3106 = vadd.f32 %v3076, %v3101
  %v3107 = vadd.f32 %v3079, %v3102
  %v3108 = vadd.f32 %v3084, %v3103
  %v3109 = vmul.f32 %v3104, 0.7978846
  %v3110 = vmul.f32 %v3105, 0.7978846
  %v3111 = vmul.f32 %v3106, 0.7978846
  %v3112 = vmul.f32 %v3107, 0.7978846
  %v3113 = vmul.f32 %v3108, 0.7978846
  %v3114 = vtanh.pop %v3109
  %v3115 = vtanh.pop %v3110
  %v3116 = vtanh.pop %v3111
  %v3117 = vtanh.pop %v3112
  %v3118 = vtanh.pop %v3113
  %v3119 = vadd.f32 %v3114, 1.0
  %v3120 = vadd.f32 %v3115, 1.0
  %v3121 = vadd.f32 %v3116, 1.0
  %v3122 = vadd.f32 %v3117, 1.0
  %v3123 = vadd.f32 %v3118, 1.0
  %v3124 = vmul.f32 %v3119, 0.5
  %v3125 = vmul.f32 %v3120, 0.5
  %v3126 = vmul.f32 %v3121, 0.5
  %v3127 = vmul.f32 %v3122, 0.5
  %v3128 = vmul.f32 %v3123, 0.5
  %v3129 = vmul.f32 %v3068, %v3124
  %v3130 = vmul.f32 %v3071, %v3125
  %v3131 = vmul.f32 %v3076, %v3126
  %v3132 = vmul.f32 %v3079, %v3127
  %v3133 = vmul.f32 %v3084, %v3128
  %v3134 = vpack.c.bf16 %v3130, %v3129
  %v3135 = vpack.c.bf16 %v3132, %v3131
  %v3136 = vpack.c.bf16 %v3133, %v3133
  %v3137 = vld [vmem:[%s1 + $0xa0] sm:$0xf]
  %v3138 = vld [vmem:[%s1 + $0xa4] sm:$0xf]
  %v3139 = vld [vmem:[%s1 + $0xa8] sm:$0xf]
  %v3140 = vld [vmem:[%s1 + $0xac] sm:$0xf]
  %v3141 = vld [vmem:[%s1 + $0xb0] sm:$0xf]
  %v3142 = vld [vmem:[%s1 + $0xb4] sm:$0xf]
  %v3143 = vld [vmem:[%s1 + $0xb8] sm:$0xf]
  %v3144 = vld [vmem:[%s1 + $0xbc] sm:$0xf]
  %v3145 = vld [vmem:[%s2 + $0x53] sm:$0x1]
  %v3146 = vlaneseq
  %v3147 = vshrl.u32 %v3146, 7
  %v3148 = vsub.s32 0, %v3147
  %v3149 = vrot.slane %v3145, %v3148
  %v3158 = vunpack.c.l.b16 %v3137
  %v3159 = vunpack.c.l.b16 %v3138
  %v3160 = vunpack.c.l.b16 %v3139
  %v3161 = vunpack.c.l.b16 %v3140
  %v3162 = vunpack.c.l.b16 %v3141
  %v3163 = vunpack.c.l.b16 %v3142
  %v3164 = vunpack.c.l.b16 %v3143
  %v3165 = vunpack.c.l.b16 %v3144
  %v3166 = vpack.c.b16 %v3159, %v3158
  %v3167 = vpack.c.b16 %v3161, %v3160
  %v3168 = vpack.c.b16 %v3163, %v3162
  %v3169 = vpack.c.b16 %v3165, %v3164
  %v3175 = vsel %vm60, %v3134, 0
  %v3178 = vsel %vm60, %v3135, 0
  %v3181 = vsel %vm60, %v3136, 0
  %3183 = vmatprep.subr.bf16.mxu0 0
  %3184 = vmatpush1.bf16.msra.mxu0 %v3166
  %3185 = vmatprep.subr.bf16.mxu0 0
  %3186 = vmatpush1.bf16.msra.mxu0 %v3167
  %3187 = vmatprep.subr.bf16.mxu0 0
  %3188 = vmatpush1.bf16.msra.mxu0 %v3168
  %3189 = vmatprep.subr.bf16.mxu0 0
  %3190 = vmatpush1.bf16.msra.mxu0 %v3169
  %3191 = vmatprep.subr.bf16.mxu0 0
  %3192 = vmatpush1.bf16.msra.mxu0 0
  %3193 = vmatprep.subr.bf16.mxu0 0
  %3194 = vmatpush1.bf16.msra.mxu0 0
  %3195 = vmatprep.subr.bf16.mxu0 0
  %3196 = vmatpush1.bf16.msra.mxu0 0
  %3197 = vmatprep.subr.bf16.mxu0 0
  %3198 = vmatpush1.bf16.msra.mxu0 0
  %3199 = vmatprep.subr.bf16.mxu0 0
  %3200 = vmatpush1.bf16.msra.mxu0 0
  %3201 = vmatprep.subr.bf16.mxu0 0
  %3202 = vmatpush1.bf16.msra.mxu0 0
  %3203 = vmatprep.subr.bf16.mxu0 0
  %3204 = vmatpush1.bf16.msra.mxu0 0
  %3205 = vmatprep.subr.bf16.mxu0 0
  %3206 = vmatpush1.bf16.msra.mxu0 0
  %3207 = vmatprep.subr.bf16.mxu0 0
  %3208 = vmatpush1.bf16.msra.mxu0 0
  %3209 = vmatprep.subr.bf16.mxu0 0
  %3210 = vmatpush1.bf16.msra.mxu0 0
  %3211 = vmatprep.subr.bf16.mxu0 0
  %3212 = vmatpush1.bf16.msra.mxu0 0
  %3213 = vmatprep.subr.bf16.mxu0 0
  %3214 = vmatpush1.bf16.msra.mxu0 0
  %3215 = vmatprep.mubr.bf16.mxu0 0
  %3216 = vmatmul.mubr.bf16.gmra.mrb[0].mxu0 %v3175
  %v3217 = vpop.f32.mrb[0].mxu0
  %v3218 = vadd.f32 %v3149, %v3217
  %v3219 = vpop.f32.mrb[0].mxu0
  %v3220 = vpop.f32.mrb[0].mxu0
  %v3221 = vadd.f32 %v3149, %v3220
  %v3222 = vpop.f32.mrb[0].mxu0
  %3223 = vmatprep.mubr.bf16.mxu0 0
  %3224 = vmatmul.mubr.bf16.gmra.mrb[0].mxu0 %v3178
  %v3225 = vpop.f32.mrb[0].mxu0
  %v3226 = vadd.f32 %v3149, %v3225
  %v3227 = vpop.f32.mrb[0].mxu0
  %v3228 = vpop.f32.mrb[0].mxu0
  %v3229 = vadd.f32 %v3149, %v3228
  %v3230 = vpop.f32.mrb[0].mxu0
  %3231 = vmatprep.mubr.bf16.mxu0 0
  %3232 = vmatmul.mubr.bf16.gmra.mrb[0].mxu0 %v3181
  %v3233 = vpop.f32.mrb[0].mxu0
  %v3234 = vadd.f32 %v3149, %v3233
  %v3235 = vpop.f32.mrb[0].mxu0
  %v3236 = vpop.f32.mrb[0].mxu0
  %v3237 = vpop.f32.mrb[0].mxu0
  %3238 = vdwg.mxu0
  %v3239 = vadd.f32 %v2910, %v3218
  %v3240 = vadd.f32 %v2911, %v3221
  %v3241 = vadd.f32 %v2912, %v3226
  %v3242 = vadd.f32 %v2913, %v3229
  %v3243 = vadd.f32 %v2914, %v3234
  %v3244 = vld [vmem:[%s2 + $0x54] sm:$0x1]
  %v3245 = vld [vmem:[%s2 + $0x55] sm:$0x1]
  %v3246 = vsel %vm133, %v3239, 0.0
  %3247 = vadd.xlane.f32.xlu0 %v3246
  %v3248 = vpop.xlane.xlu0 %3247
  %v3249 = vsel %vm133, %v3240, 0.0
  %3250 = vadd.xlane.f32.xlu0 %v3249
  %v3251 = vpop.xlane.xlu0 %3250
  %v3252 = vsel %vm133, %v3241, 0.0
  %3253 = vadd.xlane.f32.xlu0 %v3252
  %v3254 = vpop.xlane.xlu0 %3253
  %v3255 = vsel %vm133, %v3242, 0.0
  %3256 = vadd.xlane.f32.xlu0 %v3255
  %v3257 = vpop.xlane.xlu0 %3256
  %v3258 = vsel %vm146, %v3243, 0.0
  %3259 = vadd.xlane.f32.xlu0 %v3258
  %v3260 = vpop.xlane.xlu0 %3259
  %v3261 = vmul.f32 %v3248, %v150
  %v3262 = vmul.f32 %v3251, %v150
  %v3263 = vmul.f32 %v3254, %v150
  %v3264 = vmul.f32 %v3257, %v150
  %v3265 = vmul.f32 %v3260, %v150
  %v3266 = vsub.f32 %v3239, %v3261
  %v3267 = vsub.f32 %v3240, %v3262
  %v3268 = vsub.f32 %v3241, %v3263
  %v3269 = vsub.f32 %v3242, %v3264
  %v3270 = vsub.f32 %v3243, %v3265
  %v3271 = vmul.f32 %v3266, %v3266
  %v3272 = vmul.f32 %v3267, %v3267
  %v3273 = vmul.f32 %v3268, %v3268
  %v3274 = vmul.f32 %v3269, %v3269
  %v3275 = vmul.f32 %v3270, %v3270
  %v3276 = vsel %vm133, %v3271, 0.0
  %3277 = vadd.xlane.f32.xlu0 %v3276
  %v3278 = vpop.xlane.xlu0 %3277
  %v3279 = vsel %vm133, %v3272, 0.0
  %3280 = vadd.xlane.f32.xlu0 %v3279
  %v3281 = vpop.xlane.xlu0 %3280
  %v3282 = vsel %vm133, %v3273, 0.0
  %3283 = vadd.xlane.f32.xlu0 %v3282
  %v3284 = vpop.xlane.xlu0 %3283
  %v3285 = vsel %vm133, %v3274, 0.0
  %3286 = vadd.xlane.f32.xlu0 %v3285
  %v3287 = vpop.xlane.xlu0 %3286
  %v3288 = vsel %vm146, %v3275, 0.0
  %3289 = vadd.xlane.f32.xlu0 %v3288
  %v3290 = vpop.xlane.xlu0 %3289
  %v3291 = vmul.f32 %v3278, %v150
  %v3292 = vmul.f32 %v3281, %v150
  %v3293 = vmul.f32 %v3284, %v150
  %v3294 = vmul.f32 %v3287, %v150
  %v3295 = vmul.f32 %v3290, %v150
  %v3296 = vadd.f32 %v3291, 1e-05
  %v3297 = vadd.f32 %v3292, 1e-05
  %v3298 = vadd.f32 %v3293, 1e-05
  %v3299 = vadd.f32 %v3294, 1e-05
  %v3300 = vadd.f32 %v3295, 1e-05
  %v3301 = vrsqrt.pop %v3296
  %v3302 = vrsqrt.pop %v3297
  %v3303 = vrsqrt.pop %v3298
  %v3304 = vrsqrt.pop %v3299
  %v3305 = vrsqrt.pop %v3300
  %v3306 = vmul.f32 %v3266, %v3301
  %v3307 = vmul.f32 %v3267, %v3302
  %v3308 = vmul.f32 %v3268, %v3303
  %v3309 = vmul.f32 %v3269, %v3304
  %v3310 = vmul.f32 %v3270, %v3305
  %v3311 = vlaneseq
  %v3312 = vshrl.u32 %v3311, 7
  %v3313 = vsub.s32 0, %v3312
  %v3314 = vrot.slane %v3244, %v3313
  %v3315 = vmul.f32 %v3306, %v3314
  %v3316 = vmul.f32 %v3307, %v3314
  %v3317 = vmul.f32 %v3308, %v3314
  %v3318 = vmul.f32 %v3309, %v3314
  %v3319 = vmul.f32 %v3310, %v3314
  %v3320 = vlaneseq
  %v3321 = vshrl.u32 %v3320, 7
  %v3322 = vsub.s32 0, %v3321
  %v3323 = vrot.slane %v3245, %v3322
  %v3324 = vadd.f32 %v3315, %v3323
  %v3325 = vadd.f32 %v3316, %v3323
  %v3326 = vadd.f32 %v3317, %v3323
  %v3327 = vadd.f32 %v3318, %v3323
  %v3328 = vadd.f32 %v3319, %v3323
  %v3329 = vpack.c.bf16 %v3325, %v3324
  %v3330 = vpack.c.bf16 %v3327, %v3326
  %v3331 = vpack.c.bf16 %v3328, %v3328
  %v3332 = vld [vmem:[%s1 + $0xc0] sm:$0xf]
  %v3333 = vld [vmem:[%s1 + $0xc4] sm:$0xf]
  %v3334 = vld [vmem:[%s1 + $0xc8] sm:$0xf]
  %v3335 = vld [vmem:[%s1 + $0xcc] sm:$0xf]
  %v3336 = vld [vmem:[%s2 + $0x56] sm:$0x1]
  %v3337 = vlaneseq
  %v3338 = vshrl.u32 %v3337, 7
  %v3339 = vsub.s32 0, %v3338
  %v3340 = vrot.slane %v3336, %v3339
  %v3345 = vunpack.c.l.b16 %v3332
  %v3346 = vunpack.c.l.b16 %v3333
  %v3347 = vunpack.c.l.b16 %v3334
  %v3348 = vunpack.c.l.b16 %v3335
  %v3349 = vpack.c.b16 %v3346, %v3345
  %v3350 = vpack.c.b16 %v3348, %v3347
  %v3354 = vsel %vm133, %v3329, 0
  %v3357 = vsel %vm133, %v3330, 0
  %v3360 = vsel %vm133, %v3331, 0
  %3362 = vmatprep.subr.bf16.mxu0 0
  %3363 = vmatpush1.bf16.msra.mxu0 %v3349
  %3364 = vmatprep.subr.bf16.mxu0 0
  %3365 = vmatpush1.bf16.msra.mxu0 %v3350
  %3366 = vmatprep.subr.bf16.mxu0 0
  %3367 = vmatpush1.bf16.msra.mxu0 0
  %3368 = vmatprep.subr.bf16.mxu0 0
  %3369 = vmatpush1.bf16.msra.mxu0 0
  %3370 = vmatprep.subr.bf16.mxu0 0
  %3371 = vmatpush1.bf16.msra.mxu0 0
  %3372 = vmatprep.subr.bf16.mxu0 0
  %3373 = vmatpush1.bf16.msra.mxu0 0
  %3374 = vmatprep.subr.bf16.mxu0 0
  %3375 = vmatpush1.bf16.msra.mxu0 0
  %3376 = vmatprep.subr.bf16.mxu0 0
  %3377 = vmatpush1.bf16.msra.mxu0 0
  %3378 = vmatprep.subr.bf16.mxu0 0
  %3379 = vmatpush1.bf16.msra.mxu0 0
  %3380 = vmatprep.subr.bf16.mxu0 0
  %3381 = vmatpush1.bf16.msra.mxu0 0
  %3382 = vmatprep.subr.bf16.mxu0 0
  %3383 = vmatpush1.bf16.msra.mxu0 0
  %3384 = vmatprep.subr.bf16.mxu0 0
  %3385 = vmatpush1.bf16.msra.mxu0 0
  %3386 = vmatprep.subr.bf16.mxu0 0
  %3387 = vmatpush1.bf16.msra.mxu0 0
  %3388 = vmatprep.subr.bf16.mxu0 0
  %3389 = vmatpush1.bf16.msra.mxu0 0
  %3390 = vmatprep.subr.bf16.mxu0 0
  %3391 = vmatpush1.bf16.msra.mxu0 0
  %3392 = vmatprep.subr.bf16.mxu0 0
  %3393 = vmatpush1.bf16.msra.mxu0 0
  %3394 = vmatprep.mubr.bf16.mxu0 0
  %3395 = vmatmul.mubr.bf16.gmra.mrb[0].mxu0 %v3354
  %v3396 = vpop.f32.mrb[0].mxu0
  %v3397 = vadd.f32 %v3340, %v3396
  %v3398 = vpop.f32.mrb[0].mxu0
  %v3399 = vpop.f32.mrb[0].mxu0
  %v3400 = vadd.f32 %v3340, %v3399
  %v3401 = vpop.f32.mrb[0].mxu0
  %3402 = vmatprep.mubr.bf16.mxu0 0
  %3403 = vmatmul.mubr.bf16.gmra.mrb[0].mxu0 %v3357
  %v3404 = vpop.f32.mrb[0].mxu0
  %v3405 = vadd.f32 %v3340, %v3404
  %v3406 = vpop.f32.mrb[0].mxu0
  %v3407 = vpop.f32.mrb[0].mxu0
  %v3408 = vadd.f32 %v3340, %v3407
  %v3409 = vpop.f32.mrb[0].mxu0
  %3410 = vmatprep.mubr.bf16.mxu0 0
  %3411 = vmatmul.mubr.bf16.gmra.mrb[0].mxu0 %v3360
  %v3412 = vpop.f32.mrb[0].mxu0
  %v3413 = vadd.f32 %v3340, %v3412
  %v3414 = vpop.f32.mrb[0].mxu0
  %v3415 = vpop.f32.mrb[0].mxu0
  %v3416 = vpop.f32.mrb[0].mxu0
  %3417 = vdwg.mxu0
  %v3418 = vtanh.pop %v3397
  %v3419 = vtanh.pop %v3400
  %v3420 = vtanh.pop %v3405
  %v3421 = vtanh.pop %v3408
  %v3422 = vtanh.pop %v3413
  %v3423 = vpack.c.bf16 %v3419, %v3418
  %v3424 = vpack.c.bf16 %v3421, %v3420
  %v3425 = vpack.c.bf16 %v3422, %v3422
  %v3426 = vld [vmem:[%s1 + $0xd0] sm:$0xf]
  %v3427 = vld [vmem:[%s1 + $0xd4] sm:$0xf]
  %v3428 = vld [vmem:[%s1 + $0xd8] sm:$0xf]
  %v3429 = vld [vmem:[%s1 + $0xdc] sm:$0xf]
  %v3430 = vld [vmem:[%s1 + $0xe0] sm:$0xf]
  %v3431 = vld [vmem:[%s1 + $0xe4] sm:$0xf]
  %v3432 = vld [vmem:[%s1 + $0xe8] sm:$0xf]
  %v3433 = vld [vmem:[%s1 + $0xec] sm:$0xf]
  %v3434 = vld [vmem:[%s2 + $0x57] sm:$0x1]
  %v3435 = vlaneseq
  %v3436 = vshrl.u32 %v3435, 7
  %v3437 = vsub.s32 0, %v3436
  %v3438 = vrot.slane %v3434, %v3437
  %v3447 = vunpack.c.l.b16 %v3426
  %v3448 = vunpack.c.l.b16 %v3427
  %v3449 = vunpack.c.l.b16 %v3428
  %v3450 = vunpack.c.l.b16 %v3429
  %v3451 = vunpack.c.l.b16 %v3430
  %v3452 = vunpack.c.l.b16 %v3431
  %v3453 = vunpack.c.l.b16 %v3432
  %v3454 = vunpack.c.l.b16 %v3433
  %v3455 = vpack.c.b16 %v3448, %v3447
  %v3456 = vpack.c.b16 %v3450, %v3449
  %v3457 = vpack.c.b16 %v3452, %v3451
  %v3458 = vpack.c.b16 %v3454, %v3453
  %v3464 = vsel %vm60, %v3423, 0
  %v3467 = vsel %vm60, %v3424, 0
  %v3470 = vsel %vm60, %v3425, 0
  %3472 = vmatprep.subr.bf16.mxu0 0
  %3473 = vmatpush1.bf16.msra.mxu0 %v3455
  %3474 = vmatprep.subr.bf16.mxu0 0
  %3475 = vmatpush1.bf16.msra.mxu0 %v3456
  %3476 = vmatprep.subr.bf16.mxu0 0
  %3477 = vmatpush1.bf16.msra.mxu0 %v3457
  %3478 = vmatprep.subr.bf16.mxu0 0
  %3479 = vmatpush1.bf16.msra.mxu0 %v3458
  %3480 = vmatprep.subr.bf16.mxu0 0
  %3481 = vmatpush1.bf16.msra.mxu0 0
  %3482 = vmatprep.subr.bf16.mxu0 0
  %3483 = vmatpush1.bf16.msra.mxu0 0
  %3484 = vmatprep.subr.bf16.mxu0 0
  %3485 = vmatpush1.bf16.msra.mxu0 0
  %3486 = vmatprep.subr.bf16.mxu0 0
  %3487 = vmatpush1.bf16.msra.mxu0 0
  %3488 = vmatprep.subr.bf16.mxu0 0
  %3489 = vmatpush1.bf16.msra.mxu0 0
  %3490 = vmatprep.subr.bf16.mxu0 0
  %3491 = vmatpush1.bf16.msra.mxu0 0
  %3492 = vmatprep.subr.bf16.mxu0 0
  %3493 = vmatpush1.bf16.msra.mxu0 0
  %3494 = vmatprep.subr.bf16.mxu0 0
  %3495 = vmatpush1.bf16.msra.mxu0 0
  %3496 = vmatprep.subr.bf16.mxu0 0
  %3497 = vmatpush1.bf16.msra.mxu0 0
  %3498 = vmatprep.subr.bf16.mxu0 0
  %3499 = vmatpush1.bf16.msra.mxu0 0
  %3500 = vmatprep.subr.bf16.mxu0 0
  %3501 = vmatpush1.bf16.msra.mxu0 0
  %3502 = vmatprep.subr.bf16.mxu0 0
  %3503 = vmatpush1.bf16.msra.mxu0 0
  %3504 = vmatprep.mubr.bf16.mxu0 0
  %3505 = vmatmul.mubr.bf16.gmra.mrb[0].mxu0 %v3464
  %v3506 = vpop.f32.mrb[0].mxu0
  %v3507 = vadd.f32 %v3438, %v3506
  %v3508 = vpop.f32.mrb[0].mxu0
  %v3509 = vpop.f32.mrb[0].mxu0
  %v3510 = vadd.f32 %v3438, %v3509
  %v3511 = vpop.f32.mrb[0].mxu0
  %3512 = vmatprep.mubr.bf16.mxu0 0
  %3513 = vmatmul.mubr.bf16.gmra.mrb[0].mxu0 %v3467
  %v3514 = vpop.f32.mrb[0].mxu0
  %v3515 = vadd.f32 %v3438, %v3514
  %v3516 = vpop.f32.mrb[0].mxu0
  %v3517 = vpop.f32.mrb[0].mxu0
  %v3518 = vadd.f32 %v3438, %v3517
  %v3519 = vpop.f32.mrb[0].mxu0
  %3520 = vmatprep.mubr.bf16.mxu0 0
  %3521 = vmatmul.mubr.bf16.gmra.mrb[0].mxu0 %v3470
  %v3522 = vpop.f32.mrb[0].mxu0
  %v3523 = vadd.f32 %v3438, %v3522
  %v3524 = vpop.f32.mrb[0].mxu0
  %v3525 = vpop.f32.mrb[0].mxu0
  %v3526 = vpop.f32.mrb[0].mxu0
  %3527 = vdwg.mxu0
  %3528 = vmax.xlane.f32.xlu0 %v3507
  %v3529 = vpop.xlane.xlu0 %3528
  %3530 = vmax.xlane.f32.xlu0 %v3510
  %v3531 = vpop.xlane.xlu0 %3530
  %3532 = vmax.xlane.f32.xlu0 %v3515
  %v3533 = vpop.xlane.xlu0 %3532
  %3534 = vmax.xlane.f32.xlu0 %v3518
  %v3535 = vpop.xlane.xlu0 %3534
  %vm3536 = vcmask 1041408
  %v3537 = vsel %vm3536, %v3523, -inf
  %3538 = vmax.xlane.f32.xlu0 %v3537
  %v3539 = vpop.xlane.xlu0 %3538
  %v3540 = vsub.f32 %v3507, %v3529
  %v3541 = vsub.f32 %v3510, %v3531
  %v3542 = vsub.f32 %v3515, %v3533
  %v3543 = vsub.f32 %v3518, %v3535
  %v3544 = vsub.f32 %v3523, %v3539
  %v3545 = vmul.f32 %v3540, 1.442695
  %v3546 = vpow.pop %v3545
  %v3547 = vmul.f32 %v3541, 1.442695
  %v3548 = vpow.pop %v3547
  %v3549 = vmul.f32 %v3542, 1.442695
  %v3550 = vpow.pop %v3549
  %v3551 = vmul.f32 %v3543, 1.442695
  %v3552 = vpow.pop %v3551
  %v3553 = vmul.f32 %v3544, 1.442695
  %v3554 = vpow.pop %v3553
  %3555 = vadd.xlane.f32.xlu0 %v3546
  %v3556 = vpop.xlane.xlu0 %3555
  %3557 = vadd.xlane.f32.xlu0 %v3548
  %v3558 = vpop.xlane.xlu0 %3557
  %3559 = vadd.xlane.f32.xlu0 %v3550
  %v3560 = vpop.xlane.xlu0 %3559
  %3561 = vadd.xlane.f32.xlu0 %v3552
  %v3562 = vpop.xlane.xlu0 %3561
  %v3563 = vsel %vm3536, %v3554, 0.0
  %3564 = vadd.xlane.f32.xlu0 %v3563
  %v3565 = vpop.xlane.xlu0 %3564
  %v3566 = vlog2.pop %v3556
  %v3567 = vmul.f32 %v3566, 0.6931472
  %v3568 = vlog2.pop %v3558
  %v3569 = vmul.f32 %v3568, 0.6931472
  %v3570 = vlog2.pop %v3560
  %v3571 = vmul.f32 %v3570, 0.6931472
  %v3572 = vlog2.pop %v3562
  %v3573 = vmul.f32 %v3572, 0.6931472
  %v3574 = vlog2.pop %v3565
  %v3575 = vmul.f32 %v3574, 0.6931472
  %v3576 = vsub.f32 %v3540, %v3567
  %v3577 = vsub.f32 %v3541, %v3569
  %v3578 = vsub.f32 %v3542, %v3571
  %v3579 = vsub.f32 %v3543, %v3573
  %v3580 = vsub.f32 %v3544, %v3575
  %3581 = vst [vmem:[%s3] sm:$0xff] %v3576
  %3582 = vst [vmem:[%s3 + $0x8] sm:$0xff] %v3577
  %3583 = vst [vmem:[%s3 + $0x10] sm:$0xff] %v3578
  %3584 = vst [vmem:[%s3 + $0x18] sm:$0xff] %v3579
  %3585 = vst [vmem:[%s3 + $0x20] sm:$0x3] %v3580
  // Predicated region
  $region14: #{vit_forward.1} parent=0 // pred_check
    _
  $region15: #{vit_forward.1} parent=0 // pred_check_branch
    %3587 = sbr.rel (0) target = $region17
  $region16: #{vit_forward.1} parent=0 // pred_region
    _
  $region17: #{vit_forward.1} parent=0 // pred_fallthru
    _
  // Predicated region
  $region18: #{vit_forward.1} parent=0 // pred_check
    _
  $region19: #{vit_forward.1} parent=0 // pred_check_branch
    %3589 = sbr.rel (0) target = $region21
  $region20: #{vit_forward.1} parent=0 // pred_region
    _
  $region21: #{vit_forward.1} parent=0 // pred_fallthru
    _

</llo_original>
